<compile_context>
chip_gen: v5e
topology: v5e:2x2
jax: 0.10.0
libtpu: 0.0.40
codegen_flags: <defaults>
</compile_context>

<pallas_src>
import numpy as np

import jax
import jax.numpy as jnp
from jax import lax
from jax.experimental import pallas as pl
from jax.experimental.pallas import tpu as pltpu


# --------------------------------------------------------------------------- #
# erf helper (Abramowitz & Stegun 7.1.26, |abs err| < 1.5e-7).  Exact reciprocal
# (still EUP work) keeps comfortable headroom inside the 5e-4 test tolerance.
# --------------------------------------------------------------------------- #
def _erf_approx(x):
    a1, a2, a3, a4, a5 = 0.254829592, -0.284496736, 1.421413741, -1.453152027, 1.061405429
    p = 0.3275911
    ax = jnp.abs(x)
    t = 1.0 / (1.0 + p * ax)
    poly = ((((a5 * t + a4) * t + a3) * t + a2) * t + a1) * t
    e = 1.0 - poly * jnp.exp(-ax * ax)
    return jnp.where(x >= 0.0, e, -e)


# --------------------------------------------------------------------------- #
# Pass 1: multi-scale conv + per-tile per-channel (sum, sum-of-squares).
# Grid = (N, H // TH).  x block = one halo row tile (THp = TH + 2P rows).
# --------------------------------------------------------------------------- #
def conv_stats_kernel(x_ref, w1_ref, wdw_ref, b_ref, net_ref, stats_ref):
    _, _, THp, W, C = x_ref.shape
    TH = net_ref.shape[1]
    P = (THp - TH) // 2               # halo rows = max dilation = groups - 1
    Gm1 = wdw_ref.shape[0]

    xt = x_ref[0, 0]                  # (THp, W, C), channels lane-dense

    # ---- group 0: dense 1x1 conv on the MXU.  w1 is zero outside the group-0
    # block, so non-group-0 output lanes stay exactly 0.
    center = xt[P:P + TH]                                        # (TH, W, C)
    y = jnp.dot(center.reshape(TH * W, C), w1_ref[...],
                preferred_element_type=jnp.float32).reshape(TH, W, C)

    # ---- groups 1..G-1: depthwise 3x3 (dilation = g), folded over full lane
    # width via per-lane tap weights (zero outside their group).  H shifts are
    # leading-dim slices (free); W shifts are one XLU roll + boundary mask per
    # distinct shift, reused by every tap with that shift.
    col = lax.broadcasted_iota(jnp.int32, (THp, W, C), 1)
    acc = jnp.zeros((TH, W, C), jnp.float32)
    for sx in range(-P, P + 1):
        if sx == 0:
            slab = xt
            kx = 1
            gs = range(1, Gm1 + 1)     # the kx==1 column of every group
        else:
            slab = pltpu.roll(xt, shift=(-sx) % W, axis=1)
            valid = jnp.logical_and(col + sx >= 0, col + sx < W)
            slab = jnp.where(valid, slab, 0.0)
            kx = 0 if sx < 0 else 2
            gs = (abs(sx),)            # only the group whose dilation == |sx|
        for g in gs:
            for ky in range(3):
                r0 = P + (ky - 1) * g                              # static
                w_t = wdw_ref[g - 1, 3 * ky + kx:3 * ky + kx + 1, :]   # (1, C)
                acc = acc + slab[r0:r0 + TH] * w_t

    net = y + acc + b_ref[...]                                    # (TH, W, C)
    net_ref[0] = net.astype(net_ref.dtype)

    flat = net.reshape(TH * W, C)
    s1 = jnp.sum(flat, axis=0, keepdims=True)
    s2 = jnp.sum(flat * flat, axis=0, keepdims=True)
    stats_ref[0, 0] = jnp.concatenate([s1, s2], axis=0)           # one (2, C) store


# --------------------------------------------------------------------------- #
# Pass 2: fused BatchNorm (pre-folded per-channel scale/shift) + exact GELU.
# --------------------------------------------------------------------------- #
def bn_gelu_kernel(scale_ref, shift_ref, net_ref, o_ref):
    y = net_ref[0].astype(jnp.float32) * scale_ref[...] + shift_ref[...]
    o_ref[0] = (0.5 * y * (1.0 + _erf_approx(y * 0.7071067811865476))).astype(o_ref.dtype)


# --------------------------------------------------------------------------- #
# Wrapper: layout glue, pallas_calls, BN stat folding.
# --------------------------------------------------------------------------- #
def _largest_divisor_leq(n, k):
    for t in range(min(n, k), 0, -1):
        if n % t == 0:
            return t
    return 1


def _vmem_limit(nbytes):
    # explicit scoped-VMEM request: real footprint x4 headroom, clamped to a
    # range that is safe on v5e/v6e/v7x.
    return int(min(96 * 2 ** 20, max(16 * 2 ** 20, 4 * int(nbytes))))


def msconv2d_forward(x_nchw, params, *, groups, row_tile=32, net_dtype=jnp.float32):
    N, C, H, W = x_nchw.shape
    assert C % groups == 0 and groups >= 2
    gc = C // groups
    P = groups - 1
    TH = _largest_divisor_leq(H, row_tile)     # never falls back to huge tiles
    num_h = H // TH
    THp = TH + 2 * P

    # --- glue: NCHW -> channels-last, H-only zero pad, halo row tiles ---------
    x_nhwc = jnp.transpose(x_nchw, (0, 2, 3, 1))                    # (N, H, W, C)
    x_pad = jnp.pad(x_nhwc, ((0, 0), (P, P), (0, 0), (0, 0)))       # pad H only
    x_halo = jnp.stack([x_pad[:, i * TH:i * TH + THp] for i in range(num_h)],
                       axis=1)                                      # (N, num_h, THp, W, C)

    # --- fold the group structure into full-C (lane-dense) weights ------------
    w1_full = jnp.zeros((C, C), jnp.float32).at[:gc, :gc].set(params["w1"].T)
    wdw = jnp.zeros((groups - 1, 3, 3, C), jnp.float32)
    bias = jnp.zeros((C,), jnp.float32).at[:gc].set(params["b1"])
    for g in range(1, groups):
        sl = slice(g * gc, (g + 1) * gc)
        wdw = wdw.at[g - 1, :, :, sl].set(params["wd"][g - 1])
        bias = bias.at[sl].set(params["bd"][g - 1])
    wdw = wdw.reshape(groups - 1, 9, C)
    bias = bias.reshape(1, C)

    net_bytes = jnp.dtype(net_dtype).itemsize
    vmem1 = _vmem_limit(4 * (2 * THp * W * C + 2 * 2 * C + C * C + (groups - 1) * 9 * C + C)
                        + 2 * TH * W * C * net_bytes)

    net, stats = pl.pallas_call(
        conv_stats_kernel,
        grid=(N, num_h),
        in_specs=[
            pl.BlockSpec((1, 1, THp, W, C), lambda n, h: (n, h, 0, 0, 0)),
            pl.BlockSpec((C, C), lambda n, h: (0, 0)),
            pl.BlockSpec((groups - 1, 9, C), lambda n, h: (0, 0, 0)),
            pl.BlockSpec((1, C), lambda n, h: (0, 0)),
        ],
        out_specs=[
            pl.BlockSpec((1, TH, W, C), lambda n, h: (n, h, 0, 0)),
            pl.BlockSpec((1, 1, 2, C), lambda n, h: (n, h, 0, 0)),
        ],
        out_shape=[
            jax.ShapeDtypeStruct((N, H, W, C), net_dtype),
            jax.ShapeDtypeStruct((N, num_h, 2, C), jnp.float32),
        ],
        compiler_params=pltpu.CompilerParams(
            dimension_semantics=("parallel", "parallel"),
            vmem_limit_bytes=vmem1),
    )(x_halo, w1_full, wdw, bias)

    # --- tiny per-channel reduction + fold BN affine into scale/shift ---------
    cnt = float(N * H * W)
    s1 = jnp.sum(stats[:, :, 0], axis=(0, 1))                      # (C,)
    s2 = jnp.sum(stats[:, :, 1], axis=(0, 1))
    mean = s1 / cnt
    var = jnp.maximum(s2 / cnt - mean * mean, 0.0)                  # biased (train-mode)
    inv = lax.rsqrt(var + 1e-5)
    scale = (params["gamma"] * inv).reshape(1, C)
    shift = (params["beta"] - params["gamma"] * inv * mean).reshape(1, C)

    vmem2 = _vmem_limit(2 * TH * W * C * (net_bytes + 4) + 4 * 4 * C)
    out_nhwc = pl.pallas_call(
        bn_gelu_kernel,
        grid=(N, num_h),
        in_specs=[
            pl.BlockSpec((1, C), lambda n, h: (0, 0)),
            pl.BlockSpec((1, C), lambda n, h: (0, 0)),
            pl.BlockSpec((1, TH, W, C), lambda n, h: (n, h, 0, 0)),
        ],
        out_specs=pl.BlockSpec((1, TH, W, C), lambda n, h: (n, h, 0, 0)),
        out_shape=jax.ShapeDtypeStruct((N, H, W, C), jnp.float32),
        compiler_params=pltpu.CompilerParams(
            dimension_semantics=("parallel", "parallel"),
            vmem_limit_bytes=vmem2),
    )(scale, shift, net)

    # TODO(synk): emit NCHW directly from pass 2 to drop this full-tensor transpose.
    return jnp.transpose(out_nhwc, (0, 3, 1, 2))


# --------------------------------------------------------------------------- #
# Deterministic parameter init (shapes dictated by MSConv2d.__init__).
# --------------------------------------------------------------------------- #
def init_params(key, ch, groups):
    gc = ch // groups
    k = jax.random.split(key, 6)
    return dict(
        w1=0.3 * jax.random.normal(k[0], (gc, gc), jnp.float32),           # Conv2d(gc,gc,1) [out,in]
        b1=0.1 * jax.random.normal(k[1], (gc,), jnp.float32),
        wd=0.3 * jax.random.normal(k[2], (groups - 1, 3, 3, gc), jnp.float32),  # depthwise 3x3 / group
        bd=0.1 * jax.random.normal(k[3], (groups - 1, gc), jnp.float32),
        gamma=1.0 + 0.1 * jax.random.normal(k[4], (ch,), jnp.float32),     # BN affine
        beta=0.1 * jax.random.normal(k[5], (ch,), jnp.float32),
    )


# --------------------------------------------------------------------------- #
# Pure-JAX reference (lax convs, exact erf GELU) for validation.
# --------------------------------------------------------------------------- #
def reference_forward(x, params, groups):
    N, C, H, W = x.shape
    gc = C // groups
    feats = jnp.split(x, groups, axis=1)
    outs = []
    w1 = params["w1"].reshape(gc, gc, 1, 1)
    y0 = lax.conv_general_dilated(
        feats[0], w1, (1, 1), [(0, 0), (0, 0)],
        dimension_numbers=("NCHW", "OIHW", "NCHW"))
    outs.append(y0 + params["b1"].reshape(1, gc, 1, 1))
    for g in range(1, groups):
        d = g
        wg = jnp.transpose(params["wd"][g - 1], (2, 0, 1)).reshape(gc, 1, 3, 3)
        yg = lax.conv_general_dilated(
            feats[g], wg, (1, 1), [(d, d), (d, d)], rhs_dilation=(d, d),
            dimension_numbers=("NCHW", "OIHW", "NCHW"), feature_group_count=gc)
        outs.append(yg + params["bd"][g - 1].reshape(1, gc, 1, 1))
    net = jnp.concatenate(outs, axis=1)
    mean = jnp.mean(net, axis=(0, 2, 3), keepdims=True)
    var = jnp.mean((net - mean) ** 2, axis=(0, 2, 3), keepdims=True)
    xhat = (net - mean) / jnp.sqrt(var + 1e-5)
    ybn = xhat * params["gamma"].reshape(1, C, 1, 1) + params["beta"].reshape(1, C, 1, 1)
    return 0.5 * ybn * (1.0 + jax.scipy.special.erf(ybn / jnp.sqrt(2.0)))


if __name__ == "__main__":
    N, C, H, W = 2, 8, 16, 16
    groups = 4

    key = jax.random.PRNGKey(0)
    kx, kp = jax.random.split(key)
    x = jax.random.normal(kx, (N, C, H, W), jnp.float32)
    params = init_params(kp, C, groups)

    fwd = jax.jit(msconv2d_forward, static_argnames=("groups", "row_tile", "net_dtype"))
    out = jax.block_until_ready(fwd(x, params, groups=groups))

    ref = reference_forward(x, params, groups)
    np.testing.assert_allclose(np.asarray(out), np.asarray(ref), atol=5e-4, rtol=5e-4)

    print("KERNEL_OK")
</pallas_src>

<mosaic_0001>
module attributes {stable_mosaic.version = 11 : i64} {
  func.func @conv_stats_kernel(%arg0: i32, %arg1: i32, %arg2: memref<1x1x22x16x8xf32, #tpu.memory_space<vmem>>, %arg3: memref<8x8xf32, #tpu.memory_space<vmem>>, %arg4: memref<3x9x8xf32, #tpu.memory_space<vmem>>, %arg5: memref<1x8xf32, #tpu.memory_space<vmem>>, %arg6: memref<1x16x16x8xf32, #tpu.memory_space<vmem>>, %arg7: memref<1x1x2x8xf32, #tpu.memory_space<vmem>>) attributes {dimension_semantics = [#tpu.dimension_semantics<parallel>, #tpu.dimension_semantics<parallel>], iteration_bounds = array<i64: 2, 1>, scalar_prefetch = 0 : i64, scratch_operands = 0 : i64, tpu.core_type = #tpu.core_type<tc>, window_params = [{transform_indices = @transform_0, window_bounds = array<i64: 1, 1, 22, 16, 8>}, {pipeline_mode = #tpu.pipeline_mode<synchronous>, transform_indices = @transform_1, window_bounds = array<i64: 8, 8>}, {pipeline_mode = #tpu.pipeline_mode<synchronous>, transform_indices = @transform_2, window_bounds = array<i64: 3, 9, 8>}, {pipeline_mode = #tpu.pipeline_mode<synchronous>, transform_indices = @transform_3, window_bounds = array<i64: 1, 8>}, {transform_indices = @transform_4, window_bounds = array<i64: 1, 16, 16, 8>}, {transform_indices = @transform_5, window_bounds = array<i64: 1, 1, 2, 8>}]} {
    %c0 = arith.constant 0 : index
    %c0_0 = arith.constant 0 : index
    %c0_1 = arith.constant 0 : index
    %c0_2 = arith.constant 0 : index
    %c0_3 = arith.constant 0 : index
    %0 = vector.load %arg2[%c0, %c0_0, %c0_1, %c0_2, %c0_3] : memref<1x1x22x16x8xf32, #tpu.memory_space<vmem>>, vector<1x1x22x16x8xf32>
    %1 = vector.shape_cast %0 : vector<1x1x22x16x8xf32> to vector<22x16x8xf32>
    %2 = vector.extract_strided_slice %1 {offsets = [3, 0, 0], sizes = [16, 16, 8], strides = [1, 1, 1]} : vector<22x16x8xf32> to vector<16x16x8xf32>
    %3 = vector.shape_cast %2 : vector<16x16x8xf32> to vector<256x8xf32>
    %c0_4 = arith.constant 0 : index
    %c0_5 = arith.constant 0 : index
    %4 = vector.load %arg3[%c0_4, %c0_5] : memref<8x8xf32, #tpu.memory_space<vmem>>, vector<8x8xf32>
    %cst = arith.constant dense<0.000000e+00> : vector<256x8xf32>
    %5 = tpu.matmul %3, %4, %cst {dimension_numbers = #tpu.dot_dimension_numbers<[1], [0], [0], [1], [0, 0, 1, 1], [], []>} : vector<256x8xf32>, vector<8x8xf32>, vector<256x8xf32> -> vector<256x8xf32>
    %6 = vector.shape_cast %5 : vector<256x8xf32> to vector<16x16x8xf32>
    %7 = tpu.iota {dimensions = array<i32: 1>} : vector<22x16x8xi32>
    %cst_6 = arith.constant 0.000000e+00 : f32
    %8 = vector.broadcast %cst_6 : f32 to vector<16x16x8xf32>
    %c3_i32 = arith.constant 3 : i32
    %9 = tpu.dynamic_rotate %1 by %c3_i32 dim 1 : vector<22x16x8xf32>, i32 -> vector<22x16x8xf32>
    %c-3_i32 = arith.constant -3 : i32
    %10 = vector.broadcast %c-3_i32 : i32 to vector<22x16x8xi32>
    %11 = arith.addi %7, %10 : vector<22x16x8xi32>
    %c0_i32 = arith.constant 0 : i32
    %12 = vector.broadcast %c0_i32 : i32 to vector<22x16x8xi32>
    %13 = arith.cmpi sge, %11, %12 : vector<22x16x8xi32>
    %c-3_i32_7 = arith.constant -3 : i32
    %14 = vector.broadcast %c-3_i32_7 : i32 to vector<22x16x8xi32>
    %15 = arith.addi %7, %14 : vector<22x16x8xi32>
    %c16_i32 = arith.constant 16 : i32
    %16 = vector.broadcast %c16_i32 : i32 to vector<22x16x8xi32>
    %17 = arith.cmpi slt, %15, %16 : vector<22x16x8xi32>
    %18 = arith.andi %13, %17 : vector<22x16x8xi1>
    %cst_8 = arith.constant 0.000000e+00 : f32
    %19 = vector.broadcast %cst_8 : f32 to vector<22x16x8xf32>
    %20 = arith.select %18, %9, %19 : vector<22x16x8xi1>, vector<22x16x8xf32>
    %c2 = arith.constant 2 : index
    %c0_9 = arith.constant 0 : index
    %c0_10 = arith.constant 0 : index
    %21 = vector.load %arg4[%c2, %c0_9, %c0_10] : memref<3x9x8xf32, #tpu.memory_space<vmem>>, vector<1x1x8xf32>
    %22 = vector.shape_cast %21 : vector<1x1x8xf32> to vector<1x8xf32>
    %23 = vector.extract_strided_slice %20 {offsets = [0, 0, 0], sizes = [16, 16, 8], strides = [1, 1, 1]} : vector<22x16x8xf32> to vector<16x16x8xf32>
    %24 = vector.shape_cast %22 : vector<1x8xf32> to vector<1x1x8xf32>
    %25 = vector.broadcast %24 : vector<1x1x8xf32> to vector<16x16x8xf32>
    %26 = arith.mulf %23, %25 : vector<16x16x8xf32>
    %27 = arith.addf %8, %26 : vector<16x16x8xf32>
    %c2_11 = arith.constant 2 : index
    %c3 = arith.constant 3 : index
    %c0_12 = arith.constant 0 : index
    %28 = vector.load %arg4[%c2_11, %c3, %c0_12] : memref<3x9x8xf32, #tpu.memory_space<vmem>>, vector<1x1x8xf32>
    %29 = vector.shape_cast %28 : vector<1x1x8xf32> to vector<1x8xf32>
    %30 = vector.extract_strided_slice %20 {offsets = [3, 0, 0], sizes = [16, 16, 8], strides = [1, 1, 1]} : vector<22x16x8xf32> to vector<16x16x8xf32>
    %31 = vector.shape_cast %29 : vector<1x8xf32> to vector<1x1x8xf32>
    %32 = vector.broadcast %31 : vector<1x1x8xf32> to vector<16x16x8xf32>
    %33 = arith.mulf %30, %32 : vector<16x16x8xf32>
    %34 = arith.addf %27, %33 : vector<16x16x8xf32>
    %c2_13 = arith.constant 2 : index
    %c6 = arith.constant 6 : index
    %c0_14 = arith.constant 0 : index
    %35 = vector.load %arg4[%c2_13, %c6, %c0_14] : memref<3x9x8xf32, #tpu.memory_space<vmem>>, vector<1x1x8xf32>
    %36 = vector.shape_cast %35 : vector<1x1x8xf32> to vector<1x8xf32>
    %37 = vector.extract_strided_slice %20 {offsets = [6, 0, 0], sizes = [16, 16, 8], strides = [1, 1, 1]} : vector<22x16x8xf32> to vector<16x16x8xf32>
    %38 = vector.shape_cast %36 : vector<1x8xf32> to vector<1x1x8xf32>
    %39 = vector.broadcast %38 : vector<1x1x8xf32> to vector<16x16x8xf32>
    %40 = arith.mulf %37, %39 : vector<16x16x8xf32>
    %41 = arith.addf %34, %40 : vector<16x16x8xf32>
    %c2_i32 = arith.constant 2 : i32
    %42 = tpu.dynamic_rotate %1 by %c2_i32 dim 1 : vector<22x16x8xf32>, i32 -> vector<22x16x8xf32>
    %c-2_i32 = arith.constant -2 : i32
    %43 = vector.broadcast %c-2_i32 : i32 to vector<22x16x8xi32>
    %44 = arith.addi %7, %43 : vector<22x16x8xi32>
    %c0_i32_15 = arith.constant 0 : i32
    %45 = vector.broadcast %c0_i32_15 : i32 to vector<22x16x8xi32>
    %46 = arith.cmpi sge, %44, %45 : vector<22x16x8xi32>
    %c-2_i32_16 = arith.constant -2 : i32
    %47 = vector.broadcast %c-2_i32_16 : i32 to vector<22x16x8xi32>
    %48 = arith.addi %7, %47 : vector<22x16x8xi32>
    %c16_i32_17 = arith.constant 16 : i32
    %49 = vector.broadcast %c16_i32_17 : i32 to vector<22x16x8xi32>
    %50 = arith.cmpi slt, %48, %49 : vector<22x16x8xi32>
    %51 = arith.andi %46, %50 : vector<22x16x8xi1>
    %cst_18 = arith.constant 0.000000e+00 : f32
    %52 = vector.broadcast %cst_18 : f32 to vector<22x16x8xf32>
    %53 = arith.select %51, %42, %52 : vector<22x16x8xi1>, vector<22x16x8xf32>
    %c1 = arith.constant 1 : index
    %c0_19 = arith.constant 0 : index
    %c0_20 = arith.constant 0 : index
    %54 = vector.load %arg4[%c1, %c0_19, %c0_20] : memref<3x9x8xf32, #tpu.memory_space<vmem>>, vector<1x1x8xf32>
    %55 = vector.shape_cast %54 : vector<1x1x8xf32> to vector<1x8xf32>
    %56 = vector.extract_strided_slice %53 {offsets = [1, 0, 0], sizes = [16, 16, 8], strides = [1, 1, 1]} : vector<22x16x8xf32> to vector<16x16x8xf32>
    %57 = vector.shape_cast %55 : vector<1x8xf32> to vector<1x1x8xf32>
    %58 = vector.broadcast %57 : vector<1x1x8xf32> to vector<16x16x8xf32>
    %59 = arith.mulf %56, %58 : vector<16x16x8xf32>
    %60 = arith.addf %41, %59 : vector<16x16x8xf32>
    %c1_21 = arith.constant 1 : index
    %c3_22 = arith.constant 3 : index
    %c0_23 = arith.constant 0 : index
    %61 = vector.load %arg4[%c1_21, %c3_22, %c0_23] : memref<3x9x8xf32, #tpu.memory_space<vmem>>, vector<1x1x8xf32>
    %62 = vector.shape_cast %61 : vector<1x1x8xf32> to vector<1x8xf32>
    %63 = vector.extract_strided_slice %53 {offsets = [3, 0, 0], sizes = [16, 16, 8], strides = [1, 1, 1]} : vector<22x16x8xf32> to vector<16x16x8xf32>
    %64 = vector.shape_cast %62 : vector<1x8xf32> to vector<1x1x8xf32>
    %65 = vector.broadcast %64 : vector<1x1x8xf32> to vector<16x16x8xf32>
    %66 = arith.mulf %63, %65 : vector<16x16x8xf32>
    %67 = arith.addf %60, %66 : vector<16x16x8xf32>
    %c1_24 = arith.constant 1 : index
    %c6_25 = arith.constant 6 : index
    %c0_26 = arith.constant 0 : index
    %68 = vector.load %arg4[%c1_24, %c6_25, %c0_26] : memref<3x9x8xf32, #tpu.memory_space<vmem>>, vector<1x1x8xf32>
    %69 = vector.shape_cast %68 : vector<1x1x8xf32> to vector<1x8xf32>
    %70 = vector.extract_strided_slice %53 {offsets = [5, 0, 0], sizes = [16, 16, 8], strides = [1, 1, 1]} : vector<22x16x8xf32> to vector<16x16x8xf32>
    %71 = vector.shape_cast %69 : vector<1x8xf32> to vector<1x1x8xf32>
    %72 = vector.broadcast %71 : vector<1x1x8xf32> to vector<16x16x8xf32>
    %73 = arith.mulf %70, %72 : vector<16x16x8xf32>
    %74 = arith.addf %67, %73 : vector<16x16x8xf32>
    %c1_i32 = arith.constant 1 : i32
    %75 = tpu.dynamic_rotate %1 by %c1_i32 dim 1 : vector<22x16x8xf32>, i32 -> vector<22x16x8xf32>
    %c-1_i32 = arith.constant -1 : i32
    %76 = vector.broadcast %c-1_i32 : i32 to vector<22x16x8xi32>
    %77 = arith.addi %7, %76 : vector<22x16x8xi32>
    %c0_i32_27 = arith.constant 0 : i32
    %78 = vector.broadcast %c0_i32_27 : i32 to vector<22x16x8xi32>
    %79 = arith.cmpi sge, %77, %78 : vector<22x16x8xi32>
    %c-1_i32_28 = arith.constant -1 : i32
    %80 = vector.broadcast %c-1_i32_28 : i32 to vector<22x16x8xi32>
    %81 = arith.addi %7, %80 : vector<22x16x8xi32>
    %c16_i32_29 = arith.constant 16 : i32
    %82 = vector.broadcast %c16_i32_29 : i32 to vector<22x16x8xi32>
    %83 = arith.cmpi slt, %81, %82 : vector<22x16x8xi32>
    %84 = arith.andi %79, %83 : vector<22x16x8xi1>
    %cst_30 = arith.constant 0.000000e+00 : f32
    %85 = vector.broadcast %cst_30 : f32 to vector<22x16x8xf32>
    %86 = arith.select %84, %75, %85 : vector<22x16x8xi1>, vector<22x16x8xf32>
    %c0_31 = arith.constant 0 : index
    %c0_32 = arith.constant 0 : index
    %c0_33 = arith.constant 0 : index
    %87 = vector.load %arg4[%c0_31, %c0_32, %c0_33] : memref<3x9x8xf32, #tpu.memory_space<vmem>>, vector<1x1x8xf32>
    %88 = vector.shape_cast %87 : vector<1x1x8xf32> to vector<1x8xf32>
    %89 = vector.extract_strided_slice %86 {offsets = [2, 0, 0], sizes = [16, 16, 8], strides = [1, 1, 1]} : vector<22x16x8xf32> to vector<16x16x8xf32>
    %90 = vector.shape_cast %88 : vector<1x8xf32> to vector<1x1x8xf32>
    %91 = vector.broadcast %90 : vector<1x1x8xf32> to vector<16x16x8xf32>
    %92 = arith.mulf %89, %91 : vector<16x16x8xf32>
    %93 = arith.addf %74, %92 : vector<16x16x8xf32>
    %c0_34 = arith.constant 0 : index
    %c3_35 = arith.constant 3 : index
    %c0_36 = arith.constant 0 : index
    %94 = vector.load %arg4[%c0_34, %c3_35, %c0_36] : memref<3x9x8xf32, #tpu.memory_space<vmem>>, vector<1x1x8xf32>
    %95 = vector.shape_cast %94 : vector<1x1x8xf32> to vector<1x8xf32>
    %96 = vector.extract_strided_slice %86 {offsets = [3, 0, 0], sizes = [16, 16, 8], strides = [1, 1, 1]} : vector<22x16x8xf32> to vector<16x16x8xf32>
    %97 = vector.shape_cast %95 : vector<1x8xf32> to vector<1x1x8xf32>
    %98 = vector.broadcast %97 : vector<1x1x8xf32> to vector<16x16x8xf32>
    %99 = arith.mulf %96, %98 : vector<16x16x8xf32>
    %100 = arith.addf %93, %99 : vector<16x16x8xf32>
    %c0_37 = arith.constant 0 : index
    %c6_38 = arith.constant 6 : index
    %c0_39 = arith.constant 0 : index
    %101 = vector.load %arg4[%c0_37, %c6_38, %c0_39] : memref<3x9x8xf32, #tpu.memory_space<vmem>>, vector<1x1x8xf32>
    %102 = vector.shape_cast %101 : vector<1x1x8xf32> to vector<1x8xf32>
    %103 = vector.extract_strided_slice %86 {offsets = [4, 0, 0], sizes = [16, 16, 8], strides = [1, 1, 1]} : vector<22x16x8xf32> to vector<16x16x8xf32>
    %104 = vector.shape_cast %102 : vector<1x8xf32> to vector<1x1x8xf32>
    %105 = vector.broadcast %104 : vector<1x1x8xf32> to vector<16x16x8xf32>
    %106 = arith.mulf %103, %105 : vector<16x16x8xf32>
    %107 = arith.addf %100, %106 : vector<16x16x8xf32>
    %c0_40 = arith.constant 0 : index
    %c1_41 = arith.constant 1 : index
    %c0_42 = arith.constant 0 : index
    %108 = vector.load %arg4[%c0_40, %c1_41, %c0_42] : memref<3x9x8xf32, #tpu.memory_space<vmem>>, vector<1x1x8xf32>
    %109 = vector.shape_cast %108 : vector<1x1x8xf32> to vector<1x8xf32>
    %110 = vector.extract_strided_slice %1 {offsets = [2, 0, 0], sizes = [16, 16, 8], strides = [1, 1, 1]} : vector<22x16x8xf32> to vector<16x16x8xf32>
    %111 = vector.shape_cast %109 : vector<1x8xf32> to vector<1x1x8xf32>
    %112 = vector.broadcast %111 : vector<1x1x8xf32> to vector<16x16x8xf32>
    %113 = arith.mulf %110, %112 : vector<16x16x8xf32>
    %114 = arith.addf %107, %113 : vector<16x16x8xf32>
    %c0_43 = arith.constant 0 : index
    %c4 = arith.constant 4 : index
    %c0_44 = arith.constant 0 : index
    %115 = vector.load %arg4[%c0_43, %c4, %c0_44] : memref<3x9x8xf32, #tpu.memory_space<vmem>>, vector<1x1x8xf32>
    %116 = vector.shape_cast %115 : vector<1x1x8xf32> to vector<1x8xf32>
    %117 = vector.extract_strided_slice %1 {offsets = [3, 0, 0], sizes = [16, 16, 8], strides = [1, 1, 1]} : vector<22x16x8xf32> to vector<16x16x8xf32>
    %118 = vector.shape_cast %116 : vector<1x8xf32> to vector<1x1x8xf32>
    %119 = vector.broadcast %118 : vector<1x1x8xf32> to vector<16x16x8xf32>
    %120 = arith.mulf %117, %119 : vector<16x16x8xf32>
    %121 = arith.addf %114, %120 : vector<16x16x8xf32>
    %c0_45 = arith.constant 0 : index
    %c7 = arith.constant 7 : index
    %c0_46 = arith.constant 0 : index
    %122 = vector.load %arg4[%c0_45, %c7, %c0_46] : memref<3x9x8xf32, #tpu.memory_space<vmem>>, vector<1x1x8xf32>
    %123 = vector.shape_cast %122 : vector<1x1x8xf32> to vector<1x8xf32>
    %124 = vector.extract_strided_slice %1 {offsets = [4, 0, 0], sizes = [16, 16, 8], strides = [1, 1, 1]} : vector<22x16x8xf32> to vector<16x16x8xf32>
    %125 = vector.shape_cast %123 : vector<1x8xf32> to vector<1x1x8xf32>
    %126 = vector.broadcast %125 : vector<1x1x8xf32> to vector<16x16x8xf32>
    %127 = arith.mulf %124, %126 : vector<16x16x8xf32>
    %128 = arith.addf %121, %127 : vector<16x16x8xf32>
    %c1_47 = arith.constant 1 : index
    %c1_48 = arith.constant 1 : index
    %c0_49 = arith.constant 0 : index
    %129 = vector.load %arg4[%c1_47, %c1_48, %c0_49] : memref<3x9x8xf32, #tpu.memory_space<vmem>>, vector<1x1x8xf32>
    %130 = vector.shape_cast %129 : vector<1x1x8xf32> to vector<1x8xf32>
    %131 = vector.extract_strided_slice %1 {offsets = [1, 0, 0], sizes = [16, 16, 8], strides = [1, 1, 1]} : vector<22x16x8xf32> to vector<16x16x8xf32>
    %132 = vector.shape_cast %130 : vector<1x8xf32> to vector<1x1x8xf32>
    %133 = vector.broadcast %132 : vector<1x1x8xf32> to vector<16x16x8xf32>
    %134 = arith.mulf %131, %133 : vector<16x16x8xf32>
    %135 = arith.addf %128, %134 : vector<16x16x8xf32>
    %c1_50 = arith.constant 1 : index
    %c4_51 = arith.constant 4 : index
    %c0_52 = arith.constant 0 : index
    %136 = vector.load %arg4[%c1_50, %c4_51, %c0_52] : memref<3x9x8xf32, #tpu.memory_space<vmem>>, vector<1x1x8xf32>
    %137 = vector.shape_cast %136 : vector<1x1x8xf32> to vector<1x8xf32>
    %138 = vector.extract_strided_slice %1 {offsets = [3, 0, 0], sizes = [16, 16, 8], strides = [1, 1, 1]} : vector<22x16x8xf32> to vector<16x16x8xf32>
    %139 = vector.shape_cast %137 : vector<1x8xf32> to vector<1x1x8xf32>
    %140 = vector.broadcast %139 : vector<1x1x8xf32> to vector<16x16x8xf32>
    %141 = arith.mulf %138, %140 : vector<16x16x8xf32>
    %142 = arith.addf %135, %141 : vector<16x16x8xf32>
    %c1_53 = arith.constant 1 : index
    %c7_54 = arith.constant 7 : index
    %c0_55 = arith.constant 0 : index
    %143 = vector.load %arg4[%c1_53, %c7_54, %c0_55] : memref<3x9x8xf32, #tpu.memory_space<vmem>>, vector<1x1x8xf32>
    %144 = vector.shape_cast %143 : vector<1x1x8xf32> to vector<1x8xf32>
    %145 = vector.extract_strided_slice %1 {offsets = [5, 0, 0], sizes = [16, 16, 8], strides = [1, 1, 1]} : vector<22x16x8xf32> to vector<16x16x8xf32>
    %146 = vector.shape_cast %144 : vector<1x8xf32> to vector<1x1x8xf32>
    %147 = vector.broadcast %146 : vector<1x1x8xf32> to vector<16x16x8xf32>
    %148 = arith.mulf %145, %147 : vector<16x16x8xf32>
    %149 = arith.addf %142, %148 : vector<16x16x8xf32>
    %c2_56 = arith.constant 2 : index
    %c1_57 = arith.constant 1 : index
    %c0_58 = arith.constant 0 : index
    %150 = vector.load %arg4[%c2_56, %c1_57, %c0_58] : memref<3x9x8xf32, #tpu.memory_space<vmem>>, vector<1x1x8xf32>
    %151 = vector.shape_cast %150 : vector<1x1x8xf32> to vector<1x8xf32>
    %152 = vector.extract_strided_slice %1 {offsets = [0, 0, 0], sizes = [16, 16, 8], strides = [1, 1, 1]} : vector<22x16x8xf32> to vector<16x16x8xf32>
    %153 = vector.shape_cast %151 : vector<1x8xf32> to vector<1x1x8xf32>
    %154 = vector.broadcast %153 : vector<1x1x8xf32> to vector<16x16x8xf32>
    %155 = arith.mulf %152, %154 : vector<16x16x8xf32>
    %156 = arith.addf %149, %155 : vector<16x16x8xf32>
    %c2_59 = arith.constant 2 : index
    %c4_60 = arith.constant 4 : index
    %c0_61 = arith.constant 0 : index
    %157 = vector.load %arg4[%c2_59, %c4_60, %c0_61] : memref<3x9x8xf32, #tpu.memory_space<vmem>>, vector<1x1x8xf32>
    %158 = vector.shape_cast %157 : vector<1x1x8xf32> to vector<1x8xf32>
    %159 = vector.extract_strided_slice %1 {offsets = [3, 0, 0], sizes = [16, 16, 8], strides = [1, 1, 1]} : vector<22x16x8xf32> to vector<16x16x8xf32>
    %160 = vector.shape_cast %158 : vector<1x8xf32> to vector<1x1x8xf32>
    %161 = vector.broadcast %160 : vector<1x1x8xf32> to vector<16x16x8xf32>
    %162 = arith.mulf %159, %161 : vector<16x16x8xf32>
    %163 = arith.addf %156, %162 : vector<16x16x8xf32>
    %c2_62 = arith.constant 2 : index
    %c7_63 = arith.constant 7 : index
    %c0_64 = arith.constant 0 : index
    %164 = vector.load %arg4[%c2_62, %c7_63, %c0_64] : memref<3x9x8xf32, #tpu.memory_space<vmem>>, vector<1x1x8xf32>
    %165 = vector.shape_cast %164 : vector<1x1x8xf32> to vector<1x8xf32>
    %166 = vector.extract_strided_slice %1 {offsets = [6, 0, 0], sizes = [16, 16, 8], strides = [1, 1, 1]} : vector<22x16x8xf32> to vector<16x16x8xf32>
    %167 = vector.shape_cast %165 : vector<1x8xf32> to vector<1x1x8xf32>
    %168 = vector.broadcast %167 : vector<1x1x8xf32> to vector<16x16x8xf32>
    %169 = arith.mulf %166, %168 : vector<16x16x8xf32>
    %170 = arith.addf %163, %169 : vector<16x16x8xf32>
    %c15_i32 = arith.constant 15 : i32
    %171 = tpu.dynamic_rotate %1 by %c15_i32 dim 1 : vector<22x16x8xf32>, i32 -> vector<22x16x8xf32>
    %c1_i32_65 = arith.constant 1 : i32
    %172 = vector.broadcast %c1_i32_65 : i32 to vector<22x16x8xi32>
    %173 = arith.addi %7, %172 : vector<22x16x8xi32>
    %c0_i32_66 = arith.constant 0 : i32
    %174 = vector.broadcast %c0_i32_66 : i32 to vector<22x16x8xi32>
    %175 = arith.cmpi sge, %173, %174 : vector<22x16x8xi32>
    %c1_i32_67 = arith.constant 1 : i32
    %176 = vector.broadcast %c1_i32_67 : i32 to vector<22x16x8xi32>
    %177 = arith.addi %7, %176 : vector<22x16x8xi32>
    %c16_i32_68 = arith.constant 16 : i32
    %178 = vector.broadcast %c16_i32_68 : i32 to vector<22x16x8xi32>
    %179 = arith.cmpi slt, %177, %178 : vector<22x16x8xi32>
    %180 = arith.andi %175, %179 : vector<22x16x8xi1>
    %cst_69 = arith.constant 0.000000e+00 : f32
    %181 = vector.broadcast %cst_69 : f32 to vector<22x16x8xf32>
    %182 = arith.select %180, %171, %181 : vector<22x16x8xi1>, vector<22x16x8xf32>
    %c0_70 = arith.constant 0 : index
    %c2_71 = arith.constant 2 : index
    %c0_72 = arith.constant 0 : index
    %183 = vector.load %arg4[%c0_70, %c2_71, %c0_72] : memref<3x9x8xf32, #tpu.memory_space<vmem>>, vector<1x1x8xf32>
    %184 = vector.shape_cast %183 : vector<1x1x8xf32> to vector<1x8xf32>
    %185 = vector.extract_strided_slice %182 {offsets = [2, 0, 0], sizes = [16, 16, 8], strides = [1, 1, 1]} : vector<22x16x8xf32> to vector<16x16x8xf32>
    %186 = vector.shape_cast %184 : vector<1x8xf32> to vector<1x1x8xf32>
    %187 = vector.broadcast %186 : vector<1x1x8xf32> to vector<16x16x8xf32>
    %188 = arith.mulf %185, %187 : vector<16x16x8xf32>
    %189 = arith.addf %170, %188 : vector<16x16x8xf32>
    %c0_73 = arith.constant 0 : index
    %c5 = arith.constant 5 : index
    %c0_74 = arith.constant 0 : index
    %190 = vector.load %arg4[%c0_73, %c5, %c0_74] : memref<3x9x8xf32, #tpu.memory_space<vmem>>, vector<1x1x8xf32>
    %191 = vector.shape_cast %190 : vector<1x1x8xf32> to vector<1x8xf32>
    %192 = vector.extract_strided_slice %182 {offsets = [3, 0, 0], sizes = [16, 16, 8], strides = [1, 1, 1]} : vector<22x16x8xf32> to vector<16x16x8xf32>
    %193 = vector.shape_cast %191 : vector<1x8xf32> to vector<1x1x8xf32>
    %194 = vector.broadcast %193 : vector<1x1x8xf32> to vector<16x16x8xf32>
    %195 = arith.mulf %192, %194 : vector<16x16x8xf32>
    %196 = arith.addf %189, %195 : vector<16x16x8xf32>
    %c0_75 = arith.constant 0 : index
    %c8 = arith.constant 8 : index
    %c0_76 = arith.constant 0 : index
    %197 = vector.load %arg4[%c0_75, %c8, %c0_76] : memref<3x9x8xf32, #tpu.memory_space<vmem>>, vector<1x1x8xf32>
    %198 = vector.shape_cast %197 : vector<1x1x8xf32> to vector<1x8xf32>
    %199 = vector.extract_strided_slice %182 {offsets = [4, 0, 0], sizes = [16, 16, 8], strides = [1, 1, 1]} : vector<22x16x8xf32> to vector<16x16x8xf32>
    %200 = vector.shape_cast %198 : vector<1x8xf32> to vector<1x1x8xf32>
    %201 = vector.broadcast %200 : vector<1x1x8xf32> to vector<16x16x8xf32>
    %202 = arith.mulf %199, %201 : vector<16x16x8xf32>
    %203 = arith.addf %196, %202 : vector<16x16x8xf32>
    %c14_i32 = arith.constant 14 : i32
    %204 = tpu.dynamic_rotate %1 by %c14_i32 dim 1 : vector<22x16x8xf32>, i32 -> vector<22x16x8xf32>
    %c2_i32_77 = arith.constant 2 : i32
    %205 = vector.broadcast %c2_i32_77 : i32 to vector<22x16x8xi32>
    %206 = arith.addi %7, %205 : vector<22x16x8xi32>
    %c0_i32_78 = arith.constant 0 : i32
    %207 = vector.broadcast %c0_i32_78 : i32 to vector<22x16x8xi32>
    %208 = arith.cmpi sge, %206, %207 : vector<22x16x8xi32>
    %c2_i32_79 = arith.constant 2 : i32
    %209 = vector.broadcast %c2_i32_79 : i32 to vector<22x16x8xi32>
    %210 = arith.addi %7, %209 : vector<22x16x8xi32>
    %c16_i32_80 = arith.constant 16 : i32
    %211 = vector.broadcast %c16_i32_80 : i32 to vector<22x16x8xi32>
    %212 = arith.cmpi slt, %210, %211 : vector<22x16x8xi32>
    %213 = arith.andi %208, %212 : vector<22x16x8xi1>
    %cst_81 = arith.constant 0.000000e+00 : f32
    %214 = vector.broadcast %cst_81 : f32 to vector<22x16x8xf32>
    %215 = arith.select %213, %204, %214 : vector<22x16x8xi1>, vector<22x16x8xf32>
    %c1_82 = arith.constant 1 : index
    %c2_83 = arith.constant 2 : index
    %c0_84 = arith.constant 0 : index
    %216 = vector.load %arg4[%c1_82, %c2_83, %c0_84] : memref<3x9x8xf32, #tpu.memory_space<vmem>>, vector<1x1x8xf32>
    %217 = vector.shape_cast %216 : vector<1x1x8xf32> to vector<1x8xf32>
    %218 = vector.extract_strided_slice %215 {offsets = [1, 0, 0], sizes = [16, 16, 8], strides = [1, 1, 1]} : vector<22x16x8xf32> to vector<16x16x8xf32>
    %219 = vector.shape_cast %217 : vector<1x8xf32> to vector<1x1x8xf32>
    %220 = vector.broadcast %219 : vector<1x1x8xf32> to vector<16x16x8xf32>
    %221 = arith.mulf %218, %220 : vector<16x16x8xf32>
    %222 = arith.addf %203, %221 : vector<16x16x8xf32>
    %c1_85 = arith.constant 1 : index
    %c5_86 = arith.constant 5 : index
    %c0_87 = arith.constant 0 : index
    %223 = vector.load %arg4[%c1_85, %c5_86, %c0_87] : memref<3x9x8xf32, #tpu.memory_space<vmem>>, vector<1x1x8xf32>
    %224 = vector.shape_cast %223 : vector<1x1x8xf32> to vector<1x8xf32>
    %225 = vector.extract_strided_slice %215 {offsets = [3, 0, 0], sizes = [16, 16, 8], strides = [1, 1, 1]} : vector<22x16x8xf32> to vector<16x16x8xf32>
    %226 = vector.shape_cast %224 : vector<1x8xf32> to vector<1x1x8xf32>
    %227 = vector.broadcast %226 : vector<1x1x8xf32> to vector<16x16x8xf32>
    %228 = arith.mulf %225, %227 : vector<16x16x8xf32>
    %229 = arith.addf %222, %228 : vector<16x16x8xf32>
    %c1_88 = arith.constant 1 : index
    %c8_89 = arith.constant 8 : index
    %c0_90 = arith.constant 0 : index
    %230 = vector.load %arg4[%c1_88, %c8_89, %c0_90] : memref<3x9x8xf32, #tpu.memory_space<vmem>>, vector<1x1x8xf32>
    %231 = vector.shape_cast %230 : vector<1x1x8xf32> to vector<1x8xf32>
    %232 = vector.extract_strided_slice %215 {offsets = [5, 0, 0], sizes = [16, 16, 8], strides = [1, 1, 1]} : vector<22x16x8xf32> to vector<16x16x8xf32>
    %233 = vector.shape_cast %231 : vector<1x8xf32> to vector<1x1x8xf32>
    %234 = vector.broadcast %233 : vector<1x1x8xf32> to vector<16x16x8xf32>
    %235 = arith.mulf %232, %234 : vector<16x16x8xf32>
    %236 = arith.addf %229, %235 : vector<16x16x8xf32>
    %c13_i32 = arith.constant 13 : i32
    %237 = tpu.dynamic_rotate %1 by %c13_i32 dim 1 : vector<22x16x8xf32>, i32 -> vector<22x16x8xf32>
    %c3_i32_91 = arith.constant 3 : i32
    %238 = vector.broadcast %c3_i32_91 : i32 to vector<22x16x8xi32>
    %239 = arith.addi %7, %238 : vector<22x16x8xi32>
    %c0_i32_92 = arith.constant 0 : i32
    %240 = vector.broadcast %c0_i32_92 : i32 to vector<22x16x8xi32>
    %241 = arith.cmpi sge, %239, %240 : vector<22x16x8xi32>
    %c3_i32_93 = arith.constant 3 : i32
    %242 = vector.broadcast %c3_i32_93 : i32 to vector<22x16x8xi32>
    %243 = arith.addi %7, %242 : vector<22x16x8xi32>
    %c16_i32_94 = arith.constant 16 : i32
    %244 = vector.broadcast %c16_i32_94 : i32 to vector<22x16x8xi32>
    %245 = arith.cmpi slt, %243, %244 : vector<22x16x8xi32>
    %246 = arith.andi %241, %245 : vector<22x16x8xi1>
    %cst_95 = arith.constant 0.000000e+00 : f32
    %247 = vector.broadcast %cst_95 : f32 to vector<22x16x8xf32>
    %248 = arith.select %246, %237, %247 : vector<22x16x8xi1>, vector<22x16x8xf32>
    %c2_96 = arith.constant 2 : index
    %c2_97 = arith.constant 2 : index
    %c0_98 = arith.constant 0 : index
    %249 = vector.load %arg4[%c2_96, %c2_97, %c0_98] : memref<3x9x8xf32, #tpu.memory_space<vmem>>, vector<1x1x8xf32>
    %250 = vector.shape_cast %249 : vector<1x1x8xf32> to vector<1x8xf32>
    %251 = vector.extract_strided_slice %248 {offsets = [0, 0, 0], sizes = [16, 16, 8], strides = [1, 1, 1]} : vector<22x16x8xf32> to vector<16x16x8xf32>
    %252 = vector.shape_cast %250 : vector<1x8xf32> to vector<1x1x8xf32>
    %253 = vector.broadcast %252 : vector<1x1x8xf32> to vector<16x16x8xf32>
    %254 = arith.mulf %251, %253 : vector<16x16x8xf32>
    %255 = arith.addf %236, %254 : vector<16x16x8xf32>
    %c2_99 = arith.constant 2 : index
    %c5_100 = arith.constant 5 : index
    %c0_101 = arith.constant 0 : index
    %256 = vector.load %arg4[%c2_99, %c5_100, %c0_101] : memref<3x9x8xf32, #tpu.memory_space<vmem>>, vector<1x1x8xf32>
    %257 = vector.shape_cast %256 : vector<1x1x8xf32> to vector<1x8xf32>
    %258 = vector.extract_strided_slice %248 {offsets = [3, 0, 0], sizes = [16, 16, 8], strides = [1, 1, 1]} : vector<22x16x8xf32> to vector<16x16x8xf32>
    %259 = vector.shape_cast %257 : vector<1x8xf32> to vector<1x1x8xf32>
    %260 = vector.broadcast %259 : vector<1x1x8xf32> to vector<16x16x8xf32>
    %261 = arith.mulf %258, %260 : vector<16x16x8xf32>
    %262 = arith.addf %255, %261 : vector<16x16x8xf32>
    %c2_102 = arith.constant 2 : index
    %c8_103 = arith.constant 8 : index
    %c0_104 = arith.constant 0 : index
    %263 = vector.load %arg4[%c2_102, %c8_103, %c0_104] : memref<3x9x8xf32, #tpu.memory_space<vmem>>, vector<1x1x8xf32>
    %264 = vector.shape_cast %263 : vector<1x1x8xf32> to vector<1x8xf32>
    %265 = vector.extract_strided_slice %248 {offsets = [6, 0, 0], sizes = [16, 16, 8], strides = [1, 1, 1]} : vector<22x16x8xf32> to vector<16x16x8xf32>
    %266 = vector.shape_cast %264 : vector<1x8xf32> to vector<1x1x8xf32>
    %267 = vector.broadcast %266 : vector<1x1x8xf32> to vector<16x16x8xf32>
    %268 = arith.mulf %265, %267 : vector<16x16x8xf32>
    %269 = arith.addf %262, %268 : vector<16x16x8xf32>
    %270 = arith.addf %6, %269 : vector<16x16x8xf32>
    %c0_105 = arith.constant 0 : index
    %c0_106 = arith.constant 0 : index
    %271 = vector.load %arg5[%c0_105, %c0_106] : memref<1x8xf32, #tpu.memory_space<vmem>>, vector<1x8xf32>
    %272 = vector.shape_cast %271 : vector<1x8xf32> to vector<1x1x8xf32>
    %273 = vector.broadcast %272 : vector<1x1x8xf32> to vector<16x16x8xf32>
    %274 = arith.addf %270, %273 : vector<16x16x8xf32>
    %c0_107 = arith.constant 0 : index
    %c0_108 = arith.constant 0 : index
    %c0_109 = arith.constant 0 : index
    %c0_110 = arith.constant 0 : index
    %275 = vector.load %arg6[%c0_107, %c0_108, %c0_109, %c0_110] : memref<1x16x16x8xf32, #tpu.memory_space<vmem>>, vector<1x16x16x8xf32>
    %276 = vector.shape_cast %275 : vector<1x16x16x8xf32> to vector<16x16x8xf32>
    %277 = vector.shape_cast %274 : vector<16x16x8xf32> to vector<1x16x16x8xf32>
    tpu.vector_store %arg6[%c0_107, %c0_108, %c0_109, %c0_110], %277 {strides = array<i32>} : memref<1x16x16x8xf32, #tpu.memory_space<vmem>>, vector<1x16x16x8xf32>,
    %278 = vector.shape_cast %274 : vector<16x16x8xf32> to vector<256x8xf32>
    %cst_111 = arith.constant dense<0.000000e+00> : vector<8xf32>
    %279 = vector.multi_reduction <add>, %278, %cst_111 [0] : vector<256x8xf32> to vector<8xf32>
    %280 = vector.shape_cast %279 : vector<8xf32> to vector<1x8xf32>
    %281 = arith.mulf %278, %278 : vector<256x8xf32>
    %cst_112 = arith.constant dense<0.000000e+00> : vector<8xf32>
    %282 = vector.multi_reduction <add>, %281, %cst_112 [0] : vector<256x8xf32> to vector<8xf32>
    %283 = vector.shape_cast %282 : vector<8xf32> to vector<1x8xf32>
    %284 = tpu.concatenate %280, %283 in 0 : vector<1x8xf32>, vector<1x8xf32> -> vector<2x8xf32>
    %c0_113 = arith.constant 0 : index
    %c0_114 = arith.constant 0 : index
    %c0_115 = arith.constant 0 : index
    %c0_116 = arith.constant 0 : index
    %285 = vector.load %arg7[%c0_113, %c0_114, %c0_115, %c0_116] : memref<1x1x2x8xf32, #tpu.memory_space<vmem>>, vector<1x1x2x8xf32>
    %286 = vector.shape_cast %285 : vector<1x1x2x8xf32> to vector<2x8xf32>
    %287 = vector.shape_cast %284 : vector<2x8xf32> to vector<1x1x2x8xf32>
    tpu.vector_store %arg7[%c0_113, %c0_114, %c0_115, %c0_116], %287 {strides = array<i32>} : memref<1x1x2x8xf32, #tpu.memory_space<vmem>>, vector<1x1x2x8xf32>,
    return
  }
  func.func @transform_0(%arg0: i32, %arg1: i32) -> (i32, i32, i32, i32, i32) {
    %c0_i32 = arith.constant 0 : i32
    %c0_i32_0 = arith.constant 0 : i32
    %c0_i32_1 = arith.constant 0 : i32
    %c0_i32_2 = arith.constant 0 : i32
    return %arg0, %arg1, %c0_i32, %c0_i32_0, %c0_i32_1 : i32, i32, i32, i32, i32
  }
  func.func @transform_1(%arg0: i32, %arg1: i32) -> (i32, i32) {
    %c0_i32 = arith.constant 0 : i32
    %c0_i32_0 = arith.constant 0 : i32
    %c0_i32_1 = arith.constant 0 : i32
    return %c0_i32, %c0_i32_0 : i32, i32
  }
  func.func @transform_2(%arg0: i32, %arg1: i32) -> (i32, i32, i32) {
    %c0_i32 = arith.constant 0 : i32
    %c0_i32_0 = arith.constant 0 : i32
    %c0_i32_1 = arith.constant 0 : i32
    %c0_i32_2 = arith.constant 0 : i32
    return %c0_i32, %c0_i32_0, %c0_i32_1 : i32, i32, i32
  }
  func.func @transform_3(%arg0: i32, %arg1: i32) -> (i32, i32) {
    %c0_i32 = arith.constant 0 : i32
    %c0_i32_0 = arith.constant 0 : i32
    %c0_i32_1 = arith.constant 0 : i32
    return %c0_i32, %c0_i32_0 : i32, i32
  }
  func.func @transform_4(%arg0: i32, %arg1: i32) -> (i32, i32, i32, i32) {
    %c0_i32 = arith.constant 0 : i32
    %c0_i32_0 = arith.constant 0 : i32
    %c0_i32_1 = arith.constant 0 : i32
    return %arg0, %arg1, %c0_i32, %c0_i32_0 : i32, i32, i32, i32
  }
  func.func @transform_5(%arg0: i32, %arg1: i32) -> (i32, i32, i32, i32) {
    %c0_i32 = arith.constant 0 : i32
    %c0_i32_0 = arith.constant 0 : i32
    %c0_i32_1 = arith.constant 0 : i32
    return %arg0, %arg1, %c0_i32, %c0_i32_0 : i32, i32, i32, i32
  }
}

module attributes {stable_mosaic.version = 11 : i64} {
  func.func @bn_gelu_kernel(%arg0: i32, %arg1: i32, %arg2: memref<1x8xf32, #tpu.memory_space<vmem>>, %arg3: memref<1x8xf32, #tpu.memory_space<vmem>>, %arg4: memref<1x16x16x8xf32, #tpu.memory_space<vmem>>, %arg5: memref<1x16x16x8xf32, #tpu.memory_space<vmem>>) attributes {dimension_semantics = [#tpu.dimension_semantics<parallel>, #tpu.dimension_semantics<parallel>], iteration_bounds = array<i64: 2, 1>, scalar_prefetch = 0 : i64, scratch_operands = 0 : i64, tpu.core_type = #tpu.core_type<tc>, window_params = [{pipeline_mode = #tpu.pipeline_mode<synchronous>, transform_indices = @transform_0, window_bounds = array<i64: 1, 8>}, {pipeline_mode = #tpu.pipeline_mode<synchronous>, transform_indices = @transform_1, window_bounds = array<i64: 1, 8>}, {transform_indices = @transform_2, window_bounds = array<i64: 1, 16, 16, 8>}, {transform_indices = @transform_3, window_bounds = array<i64: 1, 16, 16, 8>}]} {
    %c0 = arith.constant 0 : index
    %c0_0 = arith.constant 0 : index
    %c0_1 = arith.constant 0 : index
    %c0_2 = arith.constant 0 : index
    %0 = vector.load %arg4[%c0, %c0_0, %c0_1, %c0_2] : memref<1x16x16x8xf32, #tpu.memory_space<vmem>>, vector<1x16x16x8xf32>
    %1 = vector.shape_cast %0 : vector<1x16x16x8xf32> to vector<16x16x8xf32>
    %c0_3 = arith.constant 0 : index
    %c0_4 = arith.constant 0 : index
    %2 = vector.load %arg2[%c0_3, %c0_4] : memref<1x8xf32, #tpu.memory_space<vmem>>, vector<1x8xf32>
    %3 = vector.shape_cast %2 : vector<1x8xf32> to vector<1x1x8xf32>
    %4 = vector.broadcast %3 : vector<1x1x8xf32> to vector<16x16x8xf32>
    %5 = arith.mulf %1, %4 : vector<16x16x8xf32>
    %c0_5 = arith.constant 0 : index
    %c0_6 = arith.constant 0 : index
    %6 = vector.load %arg3[%c0_5, %c0_6] : memref<1x8xf32, #tpu.memory_space<vmem>>, vector<1x8xf32>
    %7 = vector.shape_cast %6 : vector<1x8xf32> to vector<1x1x8xf32>
    %8 = vector.broadcast %7 : vector<1x1x8xf32> to vector<16x16x8xf32>
    %9 = arith.addf %5, %8 : vector<16x16x8xf32>
    %cst = arith.constant 5.000000e-01 : f32
    %10 = vector.broadcast %cst : f32 to vector<16x16x8xf32>
    %11 = arith.mulf %10, %9 : vector<16x16x8xf32>
    %cst_7 = arith.constant 0.707106769 : f32
    %12 = vector.broadcast %cst_7 : f32 to vector<16x16x8xf32>
    %13 = arith.mulf %9, %12 : vector<16x16x8xf32>
    %14 = math.absf %13 : vector<16x16x8xf32>
    %cst_8 = arith.constant 0.327591091 : f32
    %15 = vector.broadcast %cst_8 : f32 to vector<16x16x8xf32>
    %16 = arith.mulf %15, %14 : vector<16x16x8xf32>
    %cst_9 = arith.constant 1.000000e+00 : f32
    %17 = vector.broadcast %cst_9 : f32 to vector<16x16x8xf32>
    %18 = arith.addf %17, %16 : vector<16x16x8xf32>
    %cst_10 = arith.constant 1.000000e+00 : f32
    %19 = vector.broadcast %cst_10 : f32 to vector<16x16x8xf32>
    %20 = arith.divf %19, %18 : vector<16x16x8xf32>
    %cst_11 = arith.constant 1.06140542 : f32
    %21 = vector.broadcast %cst_11 : f32 to vector<16x16x8xf32>
    %22 = arith.mulf %21, %20 : vector<16x16x8xf32>
    %cst_12 = arith.constant -1.45315206 : f32
    %23 = vector.broadcast %cst_12 : f32 to vector<16x16x8xf32>
    %24 = arith.addf %22, %23 : vector<16x16x8xf32>
    %25 = arith.mulf %24, %20 : vector<16x16x8xf32>
    %cst_13 = arith.constant 1.42141378 : f32
    %26 = vector.broadcast %cst_13 : f32 to vector<16x16x8xf32>
    %27 = arith.addf %25, %26 : vector<16x16x8xf32>
    %28 = arith.mulf %27, %20 : vector<16x16x8xf32>
    %cst_14 = arith.constant -0.284496725 : f32
    %29 = vector.broadcast %cst_14 : f32 to vector<16x16x8xf32>
    %30 = arith.addf %28, %29 : vector<16x16x8xf32>
    %31 = arith.mulf %30, %20 : vector<16x16x8xf32>
    %cst_15 = arith.constant 0.254829586 : f32
    %32 = vector.broadcast %cst_15 : f32 to vector<16x16x8xf32>
    %33 = arith.addf %31, %32 : vector<16x16x8xf32>
    %34 = arith.mulf %33, %20 : vector<16x16x8xf32>
    %cst_16 = arith.constant 0.000000e+00 : f32
    %35 = vector.broadcast %cst_16 : f32 to vector<16x16x8xf32>
    %36 = arith.subf %35, %14 : vector<16x16x8xf32>
    %37 = arith.mulf %36, %14 : vector<16x16x8xf32>
    %38 = math.exp %37 : vector<16x16x8xf32>
    %39 = arith.mulf %34, %38 : vector<16x16x8xf32>
    %cst_17 = arith.constant 1.000000e+00 : f32
    %40 = vector.broadcast %cst_17 : f32 to vector<16x16x8xf32>
    %41 = arith.subf %40, %39 : vector<16x16x8xf32>
    %cst_18 = arith.constant 0.000000e+00 : f32
    %42 = vector.broadcast %cst_18 : f32 to vector<16x16x8xf32>
    %43 = arith.cmpf oge, %13, %42 : vector<16x16x8xf32>
    %cst_19 = arith.constant 0.000000e+00 : f32
    %44 = vector.broadcast %cst_19 : f32 to vector<16x16x8xf32>
    %45 = arith.subf %44, %41 : vector<16x16x8xf32>
    %46 = arith.select %43, %41, %45 : vector<16x16x8xi1>, vector<16x16x8xf32>
    %cst_20 = arith.constant 1.000000e+00 : f32
    %47 = vector.broadcast %cst_20 : f32 to vector<16x16x8xf32>
    %48 = arith.addf %47, %46 : vector<16x16x8xf32>
    %49 = arith.mulf %11, %48 : vector<16x16x8xf32>
    %c0_21 = arith.constant 0 : index
    %c0_22 = arith.constant 0 : index
    %c0_23 = arith.constant 0 : index
    %c0_24 = arith.constant 0 : index
    %50 = vector.load %arg5[%c0_21, %c0_22, %c0_23, %c0_24] : memref<1x16x16x8xf32, #tpu.memory_space<vmem>>, vector<1x16x16x8xf32>
    %51 = vector.shape_cast %50 : vector<1x16x16x8xf32> to vector<16x16x8xf32>
    %52 = vector.shape_cast %49 : vector<16x16x8xf32> to vector<1x16x16x8xf32>
    tpu.vector_store %arg5[%c0_21, %c0_22, %c0_23, %c0_24], %52 {strides = array<i32>} : memref<1x16x16x8xf32, #tpu.memory_space<vmem>>, vector<1x16x16x8xf32>,
    return
  }
  func.func @transform_0(%arg0: i32, %arg1: i32) -> (i32, i32) {
    %c0_i32 = arith.constant 0 : i32
    %c0_i32_0 = arith.constant 0 : i32
    %c0_i32_1 = arith.constant 0 : i32
    return %c0_i32, %c0_i32_0 : i32, i32
  }
  func.func @transform_1(%arg0: i32, %arg1: i32) -> (i32, i32) {
    %c0_i32 = arith.constant 0 : i32
    %c0_i32_0 = arith.constant 0 : i32
    %c0_i32_1 = arith.constant 0 : i32
    return %c0_i32, %c0_i32_0 : i32, i32
  }
  func.func @transform_2(%arg0: i32, %arg1: i32) -> (i32, i32, i32, i32) {
    %c0_i32 = arith.constant 0 : i32
    %c0_i32_0 = arith.constant 0 : i32
    %c0_i32_1 = arith.constant 0 : i32
    return %arg0, %arg1, %c0_i32, %c0_i32_0 : i32, i32, i32, i32
  }
  func.func @transform_3(%arg0: i32, %arg1: i32) -> (i32, i32, i32, i32) {
    %c0_i32 = arith.constant 0 : i32
    %c0_i32_0 = arith.constant 0 : i32
    %c0_i32_1 = arith.constant 0 : i32
    return %arg0, %arg1, %c0_i32, %c0_i32_0 : i32, i32, i32, i32
  }
}

</mosaic_0001>

<llo_original>
// kernel: msconv2d_forward.3
$region0: #{msconv2d_forward.3}
  #allocation0 [shape = 'u32[]', space=smem, size = 0x4, offset = 0x4, fixed_abs, tag = 'smem constant byte address 0x4 - core index']
  #allocation1 [shape = 'u32[72,128]{1,0:T(1,128)}', space=vmem, size = 0x9000, scoped, tag = 'internal scratch']
  %s0 = inlined_call_operand.vmem [shape: f32[1,8], index: 0, kind: input, shape index: {}]
  %s1 = inlined_call_operand.vmem [shape: f32[1,8], index: 1, kind: input, shape index: {}]
  %s2 = inlined_call_operand.vmem [shape: f32[2,16,16,8], index: 2, kind: input, shape index: {}]
  %s3 = inlined_call_operand.vmem [shape: f32[2,16,16,8], index: 3, kind: output, shape index: {}]
  %s4 = sld [smem:[#allocation0]]
  $region45: #{msconv2d_forward.3} parent=0
    _
  %s6 = ssub.s32 1, %s4
  %s7 = scalar_select 0, %s6, %s4
  loop: start=0, step=1, limit=4
  $region2: #{msconv2d_forward.3} parent=0 // loop_pre_header
    _
  $region3: #{msconv2d_forward.3} parent=0 // loop_header
    %s9 = sphi 0, %s13
    %p10 = scmp.ge.s32.totalorder %s9, 4
    %s16 = sphi 0, %s28
    %s17 = sphi 0, %s24
    %s18 = sphi 0, %s16
    %s19 = sphi 0, %s17
    %s20 = sphi 0, %s18
    %s21 = sphi 0, %s19
    %s29 = sphi 0, %s29
    %s31 = sphi 0, %s29
    %s32 = sphi 0, %s31
    %s46 = sphi 0, %s32
    %s50 = sphi 0, %s50
    %s52 = sphi 0, %s50
    %s53 = sphi 0, %s52
    %s67 = sphi 0, %s53
    %s75 = sphi 0, %s77
    %s78 = sphi 0, %s75
    %s79 = sphi 0, %s78
    %s95 = sphi 0, %s79
    %s103 = sphi 0, %s105
    %s106 = sphi 0, %s103
    %s107 = sphi 0, %s106
    %s123 = sphi 0, %s107
  $region4: #{msconv2d_forward.3} parent=0 // loop_header_branch
    %12 = sbr.rel (%p10) target = $region8
  $region5: #{msconv2d_forward.3} parent=0 // loop_body
    %s14 = ssub.s32 %s9, 1
    %s15 = ssub.s32 %s9, 2
    %s22 = sadd.s32 1, %s17
    %p23 = scmp.ge.s32.totalorder %s22, 1
    %s24 = scalar_select %p23, 0, %s22
    %s25 = sadd.s32 1, %s16
    %s26 = scalar_select %p23, %s25, %s16
    %p27 = scmp.ge.s32.totalorder %s26, 2
    %s28 = scalar_select %p27, 0, %s26
    %s30 = sadd.s32 %s29, 1
    %p33 = scmp.eq.s32.totalorder %s9, 1
    %p34 = scmp.ne.s32.totalorder %s29, %s31
    %p35 = scmp.eq.s32.totalorder %s9, 0
    %p36 = por %p34, %p35
    %p37 = scmp.ne.s32.totalorder %s29, %s31
    %p38 = scmp.eq.s32.totalorder %s14, 1
    %p39 = por %p37, %p38
    %p40 = scmp.ne.s32.totalorder %s31, %s32
    %p41 = scmp.eq.s32.totalorder %s14, 0
    %p42 = por %p40, %p41
    %p43 = scmp.ne.s32.totalorder %s31, %s32
    %p44 = scmp.eq.s32.totalorder %s15, 1
    %p45 = por %p43, %p44
    %p47 = scmp.ne.s32.totalorder %s32, %s46
    %p48 = scmp.eq.s32.totalorder %s15, 0
    %p49 = por %p47, %p48
    %s51 = sadd.s32 %s50, 1
    %p54 = scmp.eq.s32.totalorder %s9, 1
    %p55 = scmp.ne.s32.totalorder %s50, %s52
    %p56 = scmp.eq.s32.totalorder %s9, 0
    %p57 = por %p55, %p56
    %p58 = scmp.ne.s32.totalorder %s50, %s52
    %p59 = scmp.eq.s32.totalorder %s14, 1
    %p60 = por %p58, %p59
    %p61 = scmp.ne.s32.totalorder %s52, %s53
    %p62 = scmp.eq.s32.totalorder %s14, 0
    %p63 = por %p61, %p62
    %p64 = scmp.ne.s32.totalorder %s52, %s53
    %p65 = scmp.eq.s32.totalorder %s15, 1
    %p66 = por %p64, %p65
    %p68 = scmp.ne.s32.totalorder %s53, %s67
    %p69 = scmp.eq.s32.totalorder %s15, 0
    %p70 = por %p68, %p69
    %s71 = ssub.s32 %s16, %s28
    %s72 = ssub.s32 %s17, %s24
    %s73 = sor.u32 %s71, %s72
    %p74 = scmp.eq.s32.totalorder %s73, 0
    %s76 = sadd.s32 %s75, 1
    %s77 = scalar_select %p74, %s75, %s76
    %p80 = pneg %p74
    %p81 = scmp.eq.s32.totalorder %s9, 1
    %p82 = por %p80, %p81
    %p83 = scmp.ne.s32.totalorder %s75, %s78
    %p84 = scmp.eq.s32.totalorder %s9, 0
    %p85 = por %p83, %p84
    %p86 = scmp.ne.s32.totalorder %s75, %s78
    %p87 = scmp.eq.s32.totalorder %s14, 1
    %p88 = por %p86, %p87
    %p89 = scmp.ne.s32.totalorder %s78, %s79
    %p90 = scmp.eq.s32.totalorder %s14, 0
    %p91 = por %p89, %p90
    %p92 = scmp.ne.s32.totalorder %s78, %s79
    %p93 = scmp.eq.s32.totalorder %s15, 1
    %p94 = por %p92, %p93
    %p96 = scmp.ne.s32.totalorder %s79, %s95
    %p97 = scmp.eq.s32.totalorder %s15, 0
    %p98 = por %p96, %p97
    %s99 = ssub.s32 %s16, %s28
    %s100 = ssub.s32 %s17, %s24
    %s101 = sor.u32 %s99, %s100
    %p102 = scmp.eq.s32.totalorder %s101, 0
    %s104 = sadd.s32 %s103, 1
    %s105 = scalar_select %p102, %s103, %s104
    %p108 = pneg %p102
    %p109 = scmp.eq.s32.totalorder %s9, 1
    %p110 = por %p108, %p109
    %p111 = scmp.ne.s32.totalorder %s103, %s106
    %p112 = scmp.eq.s32.totalorder %s9, 0
    %p113 = por %p111, %p112
    %p114 = scmp.ne.s32.totalorder %s103, %s106
    %p115 = scmp.eq.s32.totalorder %s14, 1
    %p116 = por %p114, %p115
    %p117 = scmp.ne.s32.totalorder %s106, %s107
    %p118 = scmp.eq.s32.totalorder %s14, 0
    %p119 = por %p117, %p118
    %p120 = scmp.ne.s32.totalorder %s106, %s107
    %p121 = scmp.eq.s32.totalorder %s15, 1
    %p122 = por %p120, %p121
    %p124 = scmp.ne.s32.totalorder %s107, %s123
    %p125 = scmp.eq.s32.totalorder %s15, 0
    %p126 = por %p124, %p125
    %p127 = scmp.le.s32.totalorder 1, %s9
    %p128 = scmp.lt.s32.totalorder %s9, 3
    %p129 = pnand %p127, %p128
    %p130 = pneg %p129
    // Predicated region
    $region9: #{msconv2d_forward.3} parent=5 // pred_check
      _
    $region10: #{msconv2d_forward.3} parent=5 // pred_check_branch
      %132 = sbr.rel (%p129) target = $region12
    $region11: #{msconv2d_forward.3} parent=5 // pred_region
      %s133 = ssub.s32 %s9, 1
      // Predicated region
      $region13: #{msconv2d_forward.3} parent=11 // pred_check
        %p134 = pneg %p42
      $region14: #{msconv2d_forward.3} parent=11 // pred_check_branch
        %136 = sbr.rel (%p134) target = $region16
      $region15: #{msconv2d_forward.3} parent=11 // pred_region
        _
      $region16: #{msconv2d_forward.3} parent=11 // pred_fallthru
        _
      // Predicated region
      $region17: #{msconv2d_forward.3} parent=11 // pred_check
        %p137 = pneg %p63
      $region18: #{msconv2d_forward.3} parent=11 // pred_check_branch
        %139 = sbr.rel (%p137) target = $region20
      $region19: #{msconv2d_forward.3} parent=11 // pred_region
        _
      $region20: #{msconv2d_forward.3} parent=11 // pred_fallthru
        _
    $region12: #{msconv2d_forward.3} parent=5 // pred_fallthru
      _
    %p140 = scmp.lt.s32.totalorder %s9, 2
    // Predicated region
    $region21: #{msconv2d_forward.3} parent=5 // pred_check
      %p141 = pneg %p140
    $region22: #{msconv2d_forward.3} parent=5 // pred_check_branch
      %143 = sbr.rel (%p141) target = $region24
    $region23: #{msconv2d_forward.3} parent=5 // pred_region
      // Predicated region
      $region25: #{msconv2d_forward.3} parent=23 // pred_check
        %p144 = pneg %p85
      $region26: #{msconv2d_forward.3} parent=23 // pred_check_branch
        %146 = sbr.rel (%p144) target = $region28
      $region27: #{msconv2d_forward.3} parent=23 // pred_region
        %s147 = smul.u32 16, %s17
        %p148 = scmp.lt.s32.totalorder %s16, 1
        %s149 = scalar_select %p148, %s16, 1
        %p150 = scmp.lt.s32.totalorder %s147, 15
        %s151 = scalar_select %p150, %s147, 15
        %s152 = smul.addr %s151, 2
        %s153 = smul.addr %s149, 32
        %s154 = sadd.s32 %s152, %s153
        %s155 = smul.addr %s154, 8
        %s156 = scalar_lea.vmem %s2, %s155
        %s157 = smul.u32 16, %s17
      $region28: #{msconv2d_forward.3} parent=23 // pred_fallthru
        _
    $region24: #{msconv2d_forward.3} parent=5 // pred_fallthru
      _
    %p158 = scmp.le.s32.totalorder 1, %s9
    %p159 = scmp.lt.s32.totalorder %s9, 3
    %p160 = pnand %p158, %p159
    %p161 = pneg %p160
    // Predicated region
    $region29: #{msconv2d_forward.3} parent=5 // pred_check
      _
    $region30: #{msconv2d_forward.3} parent=5 // pred_check_branch
      %163 = sbr.rel (%p160) target = $region32
    $region31: #{msconv2d_forward.3} parent=5 // pred_region
      %s164 = ssub.s32 %s9, 1
      %p165 = pneg %p42
      %p166 = pneg %p39
      %p167 = pneg %p63
      %p168 = pneg %p60
      %s169 = smul.u32 16, %s19
      %p170 = scmp.lt.s32.totalorder %s18, 1
      %s171 = scalar_select %p170, %s18, 1
      %p172 = scmp.lt.s32.totalorder %s169, 15
      %s173 = scalar_select %p172, %s169, 15
      %s174 = smul.addr %s173, 2
      %s175 = smul.addr %s171, 32
      %s176 = sadd.s32 %s174, %s175
      %s177 = smul.addr %s176, 8
      %s178 = scalar_lea.vmem %s2, %s177
      %p179 = pneg %p91
      %p180 = pneg %p88
      %p181 = pneg %p119
      %p182 = pneg %p116
      %s183 = smul.u32 16, %s19
      %p184 = scmp.lt.s32.totalorder %s18, 1
      %s185 = scalar_select %p184, %s18, 1
      %p186 = scmp.lt.s32.totalorder %s183, 15
      %s187 = scalar_select %p186, %s183, 15
      %s188 = smul.addr %s187, 2
      %s189 = smul.addr %s185, 32
      %s190 = sadd.s32 %s188, %s189
      %s191 = smul.addr %s190, 8
      %s192 = scalar_lea.vmem %s3, %s191
      %s193 = smul.u32 16, %s19
      %p194 = scmp.lt.s32.totalorder %s18, 1
      %s195 = scalar_select %p194, %s18, 1
      %p196 = scmp.lt.s32.totalorder %s193, 15
      %s197 = scalar_select %p196, %s193, 15
      %s198 = smul.addr %s197, 2
      %s199 = smul.addr %s195, 32
      %s200 = sadd.s32 %s198, %s199
      %s201 = smul.addr %s200, 8
      %s202 = scalar_lea.vmem %s2, %s201
      %s203 = smul.u32 16, %s19
      %s204 = smul.u32 16, %s19
      %p205 = scmp.lt.s32.totalorder %s18, 1
      %s206 = scalar_select %p205, %s18, 1
      %p207 = scmp.lt.s32.totalorder %s204, 15
      %s208 = scalar_select %p207, %s204, 15
      %s209 = smul.addr %s208, 2
      %s210 = smul.addr %s206, 32
      %s211 = sadd.s32 %s209, %s210
      %s212 = smul.addr %s211, 8
      %s213 = scalar_lea.vmem %s3, %s212
      %s214 = smul.u32 16, %s19
      %v215 = vld [vmem:[%s202] sm:$0xff]
      %v216 = vld [vmem:[%s202 + $0x8] sm:$0xff]
      %v217 = vld [vmem:[%s202 + $0x10] sm:$0xff]
      %v218 = vld [vmem:[%s202 + $0x18] sm:$0xff]
      %v219 = vld [vmem:[%s202 + $0x20] sm:$0xff]
      %v220 = vld [vmem:[%s202 + $0x28] sm:$0xff]
      %v221 = vld [vmem:[%s202 + $0x30] sm:$0xff]
      %v222 = vld [vmem:[%s202 + $0x38] sm:$0xff]
      %v223 = vld [vmem:[%s202 + $0x40] sm:$0xff]
      %v224 = vld [vmem:[%s202 + $0x48] sm:$0xff]
      %v225 = vld [vmem:[%s202 + $0x50] sm:$0xff]
      %v226 = vld [vmem:[%s202 + $0x58] sm:$0xff]
      %v227 = vld [vmem:[%s202 + $0x60] sm:$0xff]
      %v228 = vld [vmem:[%s202 + $0x68] sm:$0xff]
      %v229 = vld [vmem:[%s202 + $0x70] sm:$0xff]
      %v230 = vld [vmem:[%s202 + $0x78] sm:$0xff]
      %v231 = vld [vmem:[%s202 + $0x80] sm:$0xff]
      %v232 = vld [vmem:[%s202 + $0x88] sm:$0xff]
      %v233 = vld [vmem:[%s202 + $0x90] sm:$0xff]
      %v234 = vld [vmem:[%s202 + $0x98] sm:$0xff]
      %v235 = vld [vmem:[%s202 + $0xa0] sm:$0xff]
      %v236 = vld [vmem:[%s202 + $0xa8] sm:$0xff]
      %v237 = vld [vmem:[%s202 + $0xb0] sm:$0xff]
      %v238 = vld [vmem:[%s202 + $0xb8] sm:$0xff]
      %v239 = vld [vmem:[%s202 + $0xc0] sm:$0xff]
      %v240 = vld [vmem:[%s202 + $0xc8] sm:$0xff]
      %v241 = vld [vmem:[%s202 + $0xd0] sm:$0xff]
      %v242 = vld [vmem:[%s202 + $0xd8] sm:$0xff]
      %v243 = vld [vmem:[%s202 + $0xe0] sm:$0xff]
      %v244 = vld [vmem:[%s202 + $0xe8] sm:$0xff]
      %v245 = vld [vmem:[%s202 + $0xf0] sm:$0xff]
      %v246 = vld [vmem:[%s202 + $0xf8] sm:$0xff]
      %v247 = vld [vmem:[%s0] sm:$0x1]
      %v249 = vperm.slane %v247, 0
      %v251 = vmul.f32 %v215, %v249
      %v252 = vmul.f32 %v216, %v249
      %v253 = vmul.f32 %v217, %v249
      %v254 = vmul.f32 %v218, %v249
      %v255 = vmul.f32 %v219, %v249
      %v256 = vmul.f32 %v220, %v249
      %v257 = vmul.f32 %v221, %v249
      %v258 = vmul.f32 %v222, %v249
      %v259 = vmul.f32 %v223, %v249
      %v260 = vmul.f32 %v224, %v249
      %v261 = vmul.f32 %v225, %v249
      %v262 = vmul.f32 %v226, %v249
      %v263 = vmul.f32 %v227, %v249
      %v264 = vmul.f32 %v228, %v249
      %v265 = vmul.f32 %v229, %v249
      %v266 = vmul.f32 %v230, %v249
      %v267 = vmul.f32 %v231, %v249
      %v268 = vmul.f32 %v232, %v249
      %v269 = vmul.f32 %v233, %v249
      %v270 = vmul.f32 %v234, %v249
      %v271 = vmul.f32 %v235, %v249
      %v272 = vmul.f32 %v236, %v249
      %v273 = vmul.f32 %v237, %v249
      %v274 = vmul.f32 %v238, %v249
      %v275 = vmul.f32 %v239, %v249
      %v276 = vmul.f32 %v240, %v249
      %v277 = vmul.f32 %v241, %v249
      %v278 = vmul.f32 %v242, %v249
      %v279 = vmul.f32 %v243, %v249
      %v280 = vmul.f32 %v244, %v249
      %v281 = vmul.f32 %v245, %v249
      %v282 = vmul.f32 %v246, %v249
      %v283 = vld [vmem:[%s1] sm:$0x1]
      %v285 = vperm.slane %v283, 0
      %v287 = vadd.f32 %v251, %v285
      %v288 = vadd.f32 %v252, %v285
      %v289 = vadd.f32 %v253, %v285
      %v290 = vadd.f32 %v254, %v285
      %v291 = vadd.f32 %v255, %v285
      %v292 = vadd.f32 %v256, %v285
      %v293 = vadd.f32 %v257, %v285
      %v294 = vadd.f32 %v258, %v285
      %v295 = vadd.f32 %v259, %v285
      %v296 = vadd.f32 %v260, %v285
      %v297 = vadd.f32 %v261, %v285
      %v298 = vadd.f32 %v262, %v285
      %v299 = vadd.f32 %v263, %v285
      %v300 = vadd.f32 %v264, %v285
      %v301 = vadd.f32 %v265, %v285
      %v302 = vadd.f32 %v266, %v285
      %v303 = vadd.f32 %v267, %v285
      %v304 = vadd.f32 %v268, %v285
      %v305 = vadd.f32 %v269, %v285
      %v306 = vadd.f32 %v270, %v285
      %v307 = vadd.f32 %v271, %v285
      %v308 = vadd.f32 %v272, %v285
      %v309 = vadd.f32 %v273, %v285
      %v310 = vadd.f32 %v274, %v285
      %v311 = vadd.f32 %v275, %v285
      %v312 = vadd.f32 %v276, %v285
      %v313 = vadd.f32 %v277, %v285
      %v314 = vadd.f32 %v278, %v285
      %v315 = vadd.f32 %v279, %v285
      %v316 = vadd.f32 %v280, %v285
      %v317 = vadd.f32 %v281, %v285
      %v318 = vadd.f32 %v282, %v285
      %v319 = vmul.f32 %v287, 0.5
      %v320 = vmul.f32 %v288, 0.5
      %v321 = vmul.f32 %v289, 0.5
      %v322 = vmul.f32 %v290, 0.5
      %v323 = vmul.f32 %v291, 0.5
      %v324 = vmul.f32 %v292, 0.5
      %v325 = vmul.f32 %v293, 0.5
      %v326 = vmul.f32 %v294, 0.5
      %v327 = vmul.f32 %v295, 0.5
      %v328 = vmul.f32 %v296, 0.5
      %v329 = vmul.f32 %v297, 0.5
      %v330 = vmul.f32 %v298, 0.5
      %v331 = vmul.f32 %v299, 0.5
      %v332 = vmul.f32 %v300, 0.5
      %v333 = vmul.f32 %v301, 0.5
      %v334 = vmul.f32 %v302, 0.5
      %v335 = vmul.f32 %v303, 0.5
      %v336 = vmul.f32 %v304, 0.5
      %v337 = vmul.f32 %v305, 0.5
      %v338 = vmul.f32 %v306, 0.5
      %v339 = vmul.f32 %v307, 0.5
      %v340 = vmul.f32 %v308, 0.5
      %v341 = vmul.f32 %v309, 0.5
      %v342 = vmul.f32 %v310, 0.5
      %v343 = vmul.f32 %v311, 0.5
      %v344 = vmul.f32 %v312, 0.5
      %v345 = vmul.f32 %v313, 0.5
      %v346 = vmul.f32 %v314, 0.5
      %v347 = vmul.f32 %v315, 0.5
      %v348 = vmul.f32 %v316, 0.5
      %v349 = vmul.f32 %v317, 0.5
      %v350 = vmul.f32 %v318, 0.5
      %v351 = vmul.f32 %v287, 0.70710677
      %v352 = vmul.f32 %v288, 0.70710677
      %v353 = vmul.f32 %v289, 0.70710677
      %v354 = vmul.f32 %v290, 0.70710677
      %v355 = vmul.f32 %v291, 0.70710677
      %v356 = vmul.f32 %v292, 0.70710677
      %v357 = vmul.f32 %v293, 0.70710677
      %v358 = vmul.f32 %v294, 0.70710677
      %v359 = vmul.f32 %v295, 0.70710677
      %v360 = vmul.f32 %v296, 0.70710677
      %v361 = vmul.f32 %v297, 0.70710677
      %v362 = vmul.f32 %v298, 0.70710677
      %v363 = vmul.f32 %v299, 0.70710677
      %v364 = vmul.f32 %v300, 0.70710677
      %v365 = vmul.f32 %v301, 0.70710677
      %v366 = vmul.f32 %v302, 0.70710677
      %v367 = vmul.f32 %v303, 0.70710677
      %v368 = vmul.f32 %v304, 0.70710677
      %v369 = vmul.f32 %v305, 0.70710677
      %v370 = vmul.f32 %v306, 0.70710677
      %v371 = vmul.f32 %v307, 0.70710677
      %v372 = vmul.f32 %v308, 0.70710677
      %v373 = vmul.f32 %v309, 0.70710677
      %v374 = vmul.f32 %v310, 0.70710677
      %v375 = vmul.f32 %v311, 0.70710677
      %v376 = vmul.f32 %v312, 0.70710677
      %v377 = vmul.f32 %v313, 0.70710677
      %v378 = vmul.f32 %v314, 0.70710677
      %v379 = vmul.f32 %v315, 0.70710677
      %v380 = vmul.f32 %v316, 0.70710677
      %v381 = vmul.f32 %v317, 0.70710677
      %v382 = vmul.f32 %v318, 0.70710677
      %v383 = vand.u32 2147483647, %v351
      %v384 = vand.u32 2147483647, %v352
      %v385 = vand.u32 2147483647, %v353
      %v386 = vand.u32 2147483647, %v354
      %v387 = vand.u32 2147483647, %v355
      %v388 = vand.u32 2147483647, %v356
      %v389 = vand.u32 2147483647, %v357
      %v390 = vand.u32 2147483647, %v358
      %v391 = vand.u32 2147483647, %v359
      %v392 = vand.u32 2147483647, %v360
      %v393 = vand.u32 2147483647, %v361
      %v394 = vand.u32 2147483647, %v362
      %v395 = vand.u32 2147483647, %v363
      %v396 = vand.u32 2147483647, %v364
      %v397 = vand.u32 2147483647, %v365
      %v398 = vand.u32 2147483647, %v366
      %v399 = vand.u32 2147483647, %v367
      %v400 = vand.u32 2147483647, %v368
      %v401 = vand.u32 2147483647, %v369
      %v402 = vand.u32 2147483647, %v370
      %v403 = vand.u32 2147483647, %v371
      %v404 = vand.u32 2147483647, %v372
      %v405 = vand.u32 2147483647, %v373
      %v406 = vand.u32 2147483647, %v374
      %v407 = vand.u32 2147483647, %v375
      %v408 = vand.u32 2147483647, %v376
      %v409 = vand.u32 2147483647, %v377
      %v410 = vand.u32 2147483647, %v378
      %v411 = vand.u32 2147483647, %v379
      %v412 = vand.u32 2147483647, %v380
      %v413 = vand.u32 2147483647, %v381
      %v414 = vand.u32 2147483647, %v382
      %v415 = vmul.f32 %v383, 0.3275911
      %v416 = vmul.f32 %v384, 0.3275911
      %v417 = vmul.f32 %v385, 0.3275911
      %v418 = vmul.f32 %v386, 0.3275911
      %v419 = vmul.f32 %v387, 0.3275911
      %v420 = vmul.f32 %v388, 0.3275911
      %v421 = vmul.f32 %v389, 0.3275911
      %v422 = vmul.f32 %v390, 0.3275911
      %v423 = vmul.f32 %v391, 0.3275911
      %v424 = vmul.f32 %v392, 0.3275911
      %v425 = vmul.f32 %v393, 0.3275911
      %v426 = vmul.f32 %v394, 0.3275911
      %v427 = vmul.f32 %v395, 0.3275911
      %v428 = vmul.f32 %v396, 0.3275911
      %v429 = vmul.f32 %v397, 0.3275911
      %v430 = vmul.f32 %v398, 0.3275911
      %v431 = vmul.f32 %v399, 0.3275911
      %v432 = vmul.f32 %v400, 0.3275911
      %v433 = vmul.f32 %v401, 0.3275911
      %v434 = vmul.f32 %v402, 0.3275911
      %v435 = vmul.f32 %v403, 0.3275911
      %v436 = vmul.f32 %v404, 0.3275911
      %v437 = vmul.f32 %v405, 0.3275911
      %v438 = vmul.f32 %v406, 0.3275911
      %v439 = vmul.f32 %v407, 0.3275911
      %v440 = vmul.f32 %v408, 0.3275911
      %v441 = vmul.f32 %v409, 0.3275911
      %v442 = vmul.f32 %v410, 0.3275911
      %v443 = vmul.f32 %v411, 0.3275911
      %v444 = vmul.f32 %v412, 0.3275911
      %v445 = vmul.f32 %v413, 0.3275911
      %v446 = vmul.f32 %v414, 0.3275911
      %v447 = vadd.f32 %v415, 1.0
      %v448 = vadd.f32 %v416, 1.0
      %v449 = vadd.f32 %v417, 1.0
      %v450 = vadd.f32 %v418, 1.0
      %v451 = vadd.f32 %v419, 1.0
      %v452 = vadd.f32 %v420, 1.0
      %v453 = vadd.f32 %v421, 1.0
      %v454 = vadd.f32 %v422, 1.0
      %v455 = vadd.f32 %v423, 1.0
      %v456 = vadd.f32 %v424, 1.0
      %v457 = vadd.f32 %v425, 1.0
      %v458 = vadd.f32 %v426, 1.0
      %v459 = vadd.f32 %v427, 1.0
      %v460 = vadd.f32 %v428, 1.0
      %v461 = vadd.f32 %v429, 1.0
      %v462 = vadd.f32 %v430, 1.0
      %v463 = vadd.f32 %v431, 1.0
      %v464 = vadd.f32 %v432, 1.0
      %v465 = vadd.f32 %v433, 1.0
      %v466 = vadd.f32 %v434, 1.0
      %v467 = vadd.f32 %v435, 1.0
      %v468 = vadd.f32 %v436, 1.0
      %v469 = vadd.f32 %v437, 1.0
      %v470 = vadd.f32 %v438, 1.0
      %v471 = vadd.f32 %v439, 1.0
      %v472 = vadd.f32 %v440, 1.0
      %v473 = vadd.f32 %v441, 1.0
      %v474 = vadd.f32 %v442, 1.0
      %v475 = vadd.f32 %v443, 1.0
      %v476 = vadd.f32 %v444, 1.0
      %v477 = vadd.f32 %v445, 1.0
      %v478 = vadd.f32 %v446, 1.0
      %v479 = vrcp.pop %v447
      %v480 = vmul.f32 %v447, %v479
      %v481 = vsub.f32 1.0, %v480
      %v482 = vmul.f32 %v479, %v481
      %v483 = vadd.f32 %v479, %v482
      %vm484 = vweird.f32 %v447
      %vm485 = vweird.f32 %v479
      %vm486 = vmor %vm484, %vm485
      %v487 = vsel %vm486, %v479, %v483
      %v488 = vand.u32 2147483647, %v447
      %vm489 = vcmp.eq.f32.partialorder %v488, 8.507059e+37
      %v490 = vand.u32 %v447, 2147483648
      %v491 = vor.u32 1.1754944e-38, %v490
      %v492 = vsel %vm489, %v491, %v487
      %v493 = vmul.f32 1.0, %v492
      %v494 = vrcp.pop %v448
      %v495 = vmul.f32 %v448, %v494
      %v496 = vsub.f32 1.0, %v495
      %v497 = vmul.f32 %v494, %v496
      %v498 = vadd.f32 %v494, %v497
      %vm499 = vweird.f32 %v448
      %vm500 = vweird.f32 %v494
      %vm501 = vmor %vm499, %vm500
      %v502 = vsel %vm501, %v494, %v498
      %v503 = vand.u32 2147483647, %v448
      %vm504 = vcmp.eq.f32.partialorder %v503, 8.507059e+37
      %v505 = vand.u32 %v448, 2147483648
      %v506 = vor.u32 1.1754944e-38, %v505
      %v507 = vsel %vm504, %v506, %v502
      %v508 = vmul.f32 1.0, %v507
      %v509 = vrcp.pop %v449
      %v510 = vmul.f32 %v449, %v509
      %v511 = vsub.f32 1.0, %v510
      %v512 = vmul.f32 %v509, %v511
      %v513 = vadd.f32 %v509, %v512
      %vm514 = vweird.f32 %v449
      %vm515 = vweird.f32 %v509
      %vm516 = vmor %vm514, %vm515
      %v517 = vsel %vm516, %v509, %v513
      %v518 = vand.u32 2147483647, %v449
      %vm519 = vcmp.eq.f32.partialorder %v518, 8.507059e+37
      %v520 = vand.u32 %v449, 2147483648
      %v521 = vor.u32 1.1754944e-38, %v520
      %v522 = vsel %vm519, %v521, %v517
      %v523 = vmul.f32 1.0, %v522
      %v524 = vrcp.pop %v450
      %v525 = vmul.f32 %v450, %v524
      %v526 = vsub.f32 1.0, %v525
      %v527 = vmul.f32 %v524, %v526
      %v528 = vadd.f32 %v524, %v527
      %vm529 = vweird.f32 %v450
      %vm530 = vweird.f32 %v524
      %vm531 = vmor %vm529, %vm530
      %v532 = vsel %vm531, %v524, %v528
      %v533 = vand.u32 2147483647, %v450
      %vm534 = vcmp.eq.f32.partialorder %v533, 8.507059e+37
      %v535 = vand.u32 %v450, 2147483648
      %v536 = vor.u32 1.1754944e-38, %v535
      %v537 = vsel %vm534, %v536, %v532
      %v538 = vmul.f32 1.0, %v537
      %v539 = vrcp.pop %v451
      %v540 = vmul.f32 %v451, %v539
      %v541 = vsub.f32 1.0, %v540
      %v542 = vmul.f32 %v539, %v541
      %v543 = vadd.f32 %v539, %v542
      %vm544 = vweird.f32 %v451
      %vm545 = vweird.f32 %v539
      %vm546 = vmor %vm544, %vm545
      %v547 = vsel %vm546, %v539, %v543
      %v548 = vand.u32 2147483647, %v451
      %vm549 = vcmp.eq.f32.partialorder %v548, 8.507059e+37
      %v550 = vand.u32 %v451, 2147483648
      %v551 = vor.u32 1.1754944e-38, %v550
      %v552 = vsel %vm549, %v551, %v547
      %v553 = vmul.f32 1.0, %v552
      %v554 = vrcp.pop %v452
      %v555 = vmul.f32 %v452, %v554
      %v556 = vsub.f32 1.0, %v555
      %v557 = vmul.f32 %v554, %v556
      %v558 = vadd.f32 %v554, %v557
      %vm559 = vweird.f32 %v452
      %vm560 = vweird.f32 %v554
      %vm561 = vmor %vm559, %vm560
      %v562 = vsel %vm561, %v554, %v558
      %v563 = vand.u32 2147483647, %v452
      %vm564 = vcmp.eq.f32.partialorder %v563, 8.507059e+37
      %v565 = vand.u32 %v452, 2147483648
      %v566 = vor.u32 1.1754944e-38, %v565
      %v567 = vsel %vm564, %v566, %v562
      %v568 = vmul.f32 1.0, %v567
      %v569 = vrcp.pop %v453
      %v570 = vmul.f32 %v453, %v569
      %v571 = vsub.f32 1.0, %v570
      %v572 = vmul.f32 %v569, %v571
      %v573 = vadd.f32 %v569, %v572
      %vm574 = vweird.f32 %v453
      %vm575 = vweird.f32 %v569
      %vm576 = vmor %vm574, %vm575
      %v577 = vsel %vm576, %v569, %v573
      %v578 = vand.u32 2147483647, %v453
      %vm579 = vcmp.eq.f32.partialorder %v578, 8.507059e+37
      %v580 = vand.u32 %v453, 2147483648
      %v581 = vor.u32 1.1754944e-38, %v580
      %v582 = vsel %vm579, %v581, %v577
      %v583 = vmul.f32 1.0, %v582
      %v584 = vrcp.pop %v454
      %v585 = vmul.f32 %v454, %v584
      %v586 = vsub.f32 1.0, %v585
      %v587 = vmul.f32 %v584, %v586
      %v588 = vadd.f32 %v584, %v587
      %vm589 = vweird.f32 %v454
      %vm590 = vweird.f32 %v584
      %vm591 = vmor %vm589, %vm590
      %v592 = vsel %vm591, %v584, %v588
      %v593 = vand.u32 2147483647, %v454
      %vm594 = vcmp.eq.f32.partialorder %v593, 8.507059e+37
      %v595 = vand.u32 %v454, 2147483648
      %v596 = vor.u32 1.1754944e-38, %v595
      %v597 = vsel %vm594, %v596, %v592
      %v598 = vmul.f32 1.0, %v597
      %v599 = vrcp.pop %v455
      %v600 = vmul.f32 %v455, %v599
      %v601 = vsub.f32 1.0, %v600
      %v602 = vmul.f32 %v599, %v601
      %v603 = vadd.f32 %v599, %v602
      %vm604 = vweird.f32 %v455
      %vm605 = vweird.f32 %v599
      %vm606 = vmor %vm604, %vm605
      %v607 = vsel %vm606, %v599, %v603
      %v608 = vand.u32 2147483647, %v455
      %vm609 = vcmp.eq.f32.partialorder %v608, 8.507059e+37
      %v610 = vand.u32 %v455, 2147483648
      %v611 = vor.u32 1.1754944e-38, %v610
      %v612 = vsel %vm609, %v611, %v607
      %v613 = vmul.f32 1.0, %v612
      %v614 = vrcp.pop %v456
      %v615 = vmul.f32 %v456, %v614
      %v616 = vsub.f32 1.0, %v615
      %v617 = vmul.f32 %v614, %v616
      %v618 = vadd.f32 %v614, %v617
      %vm619 = vweird.f32 %v456
      %vm620 = vweird.f32 %v614
      %vm621 = vmor %vm619, %vm620
      %v622 = vsel %vm621, %v614, %v618
      %v623 = vand.u32 2147483647, %v456
      %vm624 = vcmp.eq.f32.partialorder %v623, 8.507059e+37
      %v625 = vand.u32 %v456, 2147483648
      %v626 = vor.u32 1.1754944e-38, %v625
      %v627 = vsel %vm624, %v626, %v622
      %v628 = vmul.f32 1.0, %v627
      %v629 = vrcp.pop %v457
      %v630 = vmul.f32 %v457, %v629
      %v631 = vsub.f32 1.0, %v630
      %v632 = vmul.f32 %v629, %v631
      %v633 = vadd.f32 %v629, %v632
      %vm634 = vweird.f32 %v457
      %vm635 = vweird.f32 %v629
      %vm636 = vmor %vm634, %vm635
      %v637 = vsel %vm636, %v629, %v633
      %v638 = vand.u32 2147483647, %v457
      %vm639 = vcmp.eq.f32.partialorder %v638, 8.507059e+37
      %v640 = vand.u32 %v457, 2147483648
      %v641 = vor.u32 1.1754944e-38, %v640
      %v642 = vsel %vm639, %v641, %v637
      %v643 = vmul.f32 1.0, %v642
      %v644 = vrcp.pop %v458
      %v645 = vmul.f32 %v458, %v644
      %v646 = vsub.f32 1.0, %v645
      %v647 = vmul.f32 %v644, %v646
      %v648 = vadd.f32 %v644, %v647
      %vm649 = vweird.f32 %v458
      %vm650 = vweird.f32 %v644
      %vm651 = vmor %vm649, %vm650
      %v652 = vsel %vm651, %v644, %v648
      %v653 = vand.u32 2147483647, %v458
      %vm654 = vcmp.eq.f32.partialorder %v653, 8.507059e+37
      %v655 = vand.u32 %v458, 2147483648
      %v656 = vor.u32 1.1754944e-38, %v655
      %v657 = vsel %vm654, %v656, %v652
      %v658 = vmul.f32 1.0, %v657
      %v659 = vrcp.pop %v459
      %v660 = vmul.f32 %v459, %v659
      %v661 = vsub.f32 1.0, %v660
      %v662 = vmul.f32 %v659, %v661
      %v663 = vadd.f32 %v659, %v662
      %vm664 = vweird.f32 %v459
      %vm665 = vweird.f32 %v659
      %vm666 = vmor %vm664, %vm665
      %v667 = vsel %vm666, %v659, %v663
      %v668 = vand.u32 2147483647, %v459
      %vm669 = vcmp.eq.f32.partialorder %v668, 8.507059e+37
      %v670 = vand.u32 %v459, 2147483648
      %v671 = vor.u32 1.1754944e-38, %v670
      %v672 = vsel %vm669, %v671, %v667
      %v673 = vmul.f32 1.0, %v672
      %v674 = vrcp.pop %v460
      %v675 = vmul.f32 %v460, %v674
      %v676 = vsub.f32 1.0, %v675
      %v677 = vmul.f32 %v674, %v676
      %v678 = vadd.f32 %v674, %v677
      %vm679 = vweird.f32 %v460
      %vm680 = vweird.f32 %v674
      %vm681 = vmor %vm679, %vm680
      %v682 = vsel %vm681, %v674, %v678
      %v683 = vand.u32 2147483647, %v460
      %vm684 = vcmp.eq.f32.partialorder %v683, 8.507059e+37
      %v685 = vand.u32 %v460, 2147483648
      %v686 = vor.u32 1.1754944e-38, %v685
      %v687 = vsel %vm684, %v686, %v682
      %v688 = vmul.f32 1.0, %v687
      %v689 = vrcp.pop %v461
      %v690 = vmul.f32 %v461, %v689
      %v691 = vsub.f32 1.0, %v690
      %v692 = vmul.f32 %v689, %v691
      %v693 = vadd.f32 %v689, %v692
      %vm694 = vweird.f32 %v461
      %vm695 = vweird.f32 %v689
      %vm696 = vmor %vm694, %vm695
      %v697 = vsel %vm696, %v689, %v693
      %v698 = vand.u32 2147483647, %v461
      %vm699 = vcmp.eq.f32.partialorder %v698, 8.507059e+37
      %v700 = vand.u32 %v461, 2147483648
      %v701 = vor.u32 1.1754944e-38, %v700
      %v702 = vsel %vm699, %v701, %v697
      %v703 = vmul.f32 1.0, %v702
      %v704 = vrcp.pop %v462
      %v705 = vmul.f32 %v462, %v704
      %v706 = vsub.f32 1.0, %v705
      %v707 = vmul.f32 %v704, %v706
      %v708 = vadd.f32 %v704, %v707
      %vm709 = vweird.f32 %v462
      %vm710 = vweird.f32 %v704
      %vm711 = vmor %vm709, %vm710
      %v712 = vsel %vm711, %v704, %v708
      %v713 = vand.u32 2147483647, %v462
      %vm714 = vcmp.eq.f32.partialorder %v713, 8.507059e+37
      %v715 = vand.u32 %v462, 2147483648
      %v716 = vor.u32 1.1754944e-38, %v715
      %v717 = vsel %vm714, %v716, %v712
      %v718 = vmul.f32 1.0, %v717
      %v719 = vrcp.pop %v463
      %v720 = vmul.f32 %v463, %v719
      %v721 = vsub.f32 1.0, %v720
      %v722 = vmul.f32 %v719, %v721
      %v723 = vadd.f32 %v719, %v722
      %vm724 = vweird.f32 %v463
      %vm725 = vweird.f32 %v719
      %vm726 = vmor %vm724, %vm725
      %v727 = vsel %vm726, %v719, %v723
      %v728 = vand.u32 2147483647, %v463
      %vm729 = vcmp.eq.f32.partialorder %v728, 8.507059e+37
      %v730 = vand.u32 %v463, 2147483648
      %v731 = vor.u32 1.1754944e-38, %v730
      %v732 = vsel %vm729, %v731, %v727
      %v733 = vmul.f32 1.0, %v732
      %v734 = vrcp.pop %v464
      %v735 = vmul.f32 %v464, %v734
      %v736 = vsub.f32 1.0, %v735
      %v737 = vmul.f32 %v734, %v736
      %v738 = vadd.f32 %v734, %v737
      %vm739 = vweird.f32 %v464
      %vm740 = vweird.f32 %v734
      %vm741 = vmor %vm739, %vm740
      %v742 = vsel %vm741, %v734, %v738
      %v743 = vand.u32 2147483647, %v464
      %vm744 = vcmp.eq.f32.partialorder %v743, 8.507059e+37
      %v745 = vand.u32 %v464, 2147483648
      %v746 = vor.u32 1.1754944e-38, %v745
      %v747 = vsel %vm744, %v746, %v742
      %v748 = vmul.f32 1.0, %v747
      %v749 = vrcp.pop %v465
      %v750 = vmul.f32 %v465, %v749
      %v751 = vsub.f32 1.0, %v750
      %v752 = vmul.f32 %v749, %v751
      %v753 = vadd.f32 %v749, %v752
      %vm754 = vweird.f32 %v465
      %vm755 = vweird.f32 %v749
      %vm756 = vmor %vm754, %vm755
      %v757 = vsel %vm756, %v749, %v753
      %v758 = vand.u32 2147483647, %v465
      %vm759 = vcmp.eq.f32.partialorder %v758, 8.507059e+37
      %v760 = vand.u32 %v465, 2147483648
      %v761 = vor.u32 1.1754944e-38, %v760
      %v762 = vsel %vm759, %v761, %v757
      %v763 = vmul.f32 1.0, %v762
      %v764 = vrcp.pop %v466
      %v765 = vmul.f32 %v466, %v764
      %v766 = vsub.f32 1.0, %v765
      %v767 = vmul.f32 %v764, %v766
      %v768 = vadd.f32 %v764, %v767
      %vm769 = vweird.f32 %v466
      %vm770 = vweird.f32 %v764
      %vm771 = vmor %vm769, %vm770
      %v772 = vsel %vm771, %v764, %v768
      %v773 = vand.u32 2147483647, %v466
      %vm774 = vcmp.eq.f32.partialorder %v773, 8.507059e+37
      %v775 = vand.u32 %v466, 2147483648
      %v776 = vor.u32 1.1754944e-38, %v775
      %v777 = vsel %vm774, %v776, %v772
      %v778 = vmul.f32 1.0, %v777
      %v779 = vrcp.pop %v467
      %v780 = vmul.f32 %v467, %v779
      %v781 = vsub.f32 1.0, %v780
      %v782 = vmul.f32 %v779, %v781
      %v783 = vadd.f32 %v779, %v782
      %vm784 = vweird.f32 %v467
      %vm785 = vweird.f32 %v779
      %vm786 = vmor %vm784, %vm785
      %v787 = vsel %vm786, %v779, %v783
      %v788 = vand.u32 2147483647, %v467
      %vm789 = vcmp.eq.f32.partialorder %v788, 8.507059e+37
      %v790 = vand.u32 %v467, 2147483648
      %v791 = vor.u32 1.1754944e-38, %v790
      %v792 = vsel %vm789, %v791, %v787
      %v793 = vmul.f32 1.0, %v792
      %v794 = vrcp.pop %v468
      %v795 = vmul.f32 %v468, %v794
      %v796 = vsub.f32 1.0, %v795
      %v797 = vmul.f32 %v794, %v796
      %v798 = vadd.f32 %v794, %v797
      %vm799 = vweird.f32 %v468
      %vm800 = vweird.f32 %v794
      %vm801 = vmor %vm799, %vm800
      %v802 = vsel %vm801, %v794, %v798
      %v803 = vand.u32 2147483647, %v468
      %vm804 = vcmp.eq.f32.partialorder %v803, 8.507059e+37
      %v805 = vand.u32 %v468, 2147483648
      %v806 = vor.u32 1.1754944e-38, %v805
      %v807 = vsel %vm804, %v806, %v802
      %v808 = vmul.f32 1.0, %v807
      %v809 = vrcp.pop %v469
      %v810 = vmul.f32 %v469, %v809
      %v811 = vsub.f32 1.0, %v810
      %v812 = vmul.f32 %v809, %v811
      %v813 = vadd.f32 %v809, %v812
      %vm814 = vweird.f32 %v469
      %vm815 = vweird.f32 %v809
      %vm816 = vmor %vm814, %vm815
      %v817 = vsel %vm816, %v809, %v813
      %v818 = vand.u32 2147483647, %v469
      %vm819 = vcmp.eq.f32.partialorder %v818, 8.507059e+37
      %v820 = vand.u32 %v469, 2147483648
      %v821 = vor.u32 1.1754944e-38, %v820
      %v822 = vsel %vm819, %v821, %v817
      %v823 = vmul.f32 1.0, %v822
      %v824 = vrcp.pop %v470
      %v825 = vmul.f32 %v470, %v824
      %v826 = vsub.f32 1.0, %v825
      %v827 = vmul.f32 %v824, %v826
      %v828 = vadd.f32 %v824, %v827
      %vm829 = vweird.f32 %v470
      %vm830 = vweird.f32 %v824
      %vm831 = vmor %vm829, %vm830
      %v832 = vsel %vm831, %v824, %v828
      %v833 = vand.u32 2147483647, %v470
      %vm834 = vcmp.eq.f32.partialorder %v833, 8.507059e+37
      %v835 = vand.u32 %v470, 2147483648
      %v836 = vor.u32 1.1754944e-38, %v835
      %v837 = vsel %vm834, %v836, %v832
      %v838 = vmul.f32 1.0, %v837
      %v839 = vrcp.pop %v471
      %v840 = vmul.f32 %v471, %v839
      %v841 = vsub.f32 1.0, %v840
      %v842 = vmul.f32 %v839, %v841
      %v843 = vadd.f32 %v839, %v842
      %vm844 = vweird.f32 %v471
      %vm845 = vweird.f32 %v839
      %vm846 = vmor %vm844, %vm845
      %v847 = vsel %vm846, %v839, %v843
      %v848 = vand.u32 2147483647, %v471
      %vm849 = vcmp.eq.f32.partialorder %v848, 8.507059e+37
      %v850 = vand.u32 %v471, 2147483648
      %v851 = vor.u32 1.1754944e-38, %v850
      %v852 = vsel %vm849, %v851, %v847
      %v853 = vmul.f32 1.0, %v852
      %v854 = vrcp.pop %v472
      %v855 = vmul.f32 %v472, %v854
      %v856 = vsub.f32 1.0, %v855
      %v857 = vmul.f32 %v854, %v856
      %v858 = vadd.f32 %v854, %v857
      %vm859 = vweird.f32 %v472
      %vm860 = vweird.f32 %v854
      %vm861 = vmor %vm859, %vm860
      %v862 = vsel %vm861, %v854, %v858
      %v863 = vand.u32 2147483647, %v472
      %vm864 = vcmp.eq.f32.partialorder %v863, 8.507059e+37
      %v865 = vand.u32 %v472, 2147483648
      %v866 = vor.u32 1.1754944e-38, %v865
      %v867 = vsel %vm864, %v866, %v862
      %v868 = vmul.f32 1.0, %v867
      %v869 = vrcp.pop %v473
      %v870 = vmul.f32 %v473, %v869
      %v871 = vsub.f32 1.0, %v870
      %v872 = vmul.f32 %v869, %v871
      %v873 = vadd.f32 %v869, %v872
      %vm874 = vweird.f32 %v473
      %vm875 = vweird.f32 %v869
      %vm876 = vmor %vm874, %vm875
      %v877 = vsel %vm876, %v869, %v873
      %v878 = vand.u32 2147483647, %v473
      %vm879 = vcmp.eq.f32.partialorder %v878, 8.507059e+37
      %v880 = vand.u32 %v473, 2147483648
      %v881 = vor.u32 1.1754944e-38, %v880
      %v882 = vsel %vm879, %v881, %v877
      %v883 = vmul.f32 1.0, %v882
      %v884 = vrcp.pop %v474
      %v885 = vmul.f32 %v474, %v884
      %v886 = vsub.f32 1.0, %v885
      %v887 = vmul.f32 %v884, %v886
      %v888 = vadd.f32 %v884, %v887
      %vm889 = vweird.f32 %v474
      %vm890 = vweird.f32 %v884
      %vm891 = vmor %vm889, %vm890
      %v892 = vsel %vm891, %v884, %v888
      %v893 = vand.u32 2147483647, %v474
      %vm894 = vcmp.eq.f32.partialorder %v893, 8.507059e+37
      %v895 = vand.u32 %v474, 2147483648
      %v896 = vor.u32 1.1754944e-38, %v895
      %v897 = vsel %vm894, %v896, %v892
      %v898 = vmul.f32 1.0, %v897
      %v899 = vrcp.pop %v475
      %v900 = vmul.f32 %v475, %v899
      %v901 = vsub.f32 1.0, %v900
      %v902 = vmul.f32 %v899, %v901
      %v903 = vadd.f32 %v899, %v902
      %vm904 = vweird.f32 %v475
      %vm905 = vweird.f32 %v899
      %vm906 = vmor %vm904, %vm905
      %v907 = vsel %vm906, %v899, %v903
      %v908 = vand.u32 2147483647, %v475
      %vm909 = vcmp.eq.f32.partialorder %v908, 8.507059e+37
      %v910 = vand.u32 %v475, 2147483648
      %v911 = vor.u32 1.1754944e-38, %v910
      %v912 = vsel %vm909, %v911, %v907
      %v913 = vmul.f32 1.0, %v912
      %v914 = vrcp.pop %v476
      %v915 = vmul.f32 %v476, %v914
      %v916 = vsub.f32 1.0, %v915
      %v917 = vmul.f32 %v914, %v916
      %v918 = vadd.f32 %v914, %v917
      %vm919 = vweird.f32 %v476
      %vm920 = vweird.f32 %v914
      %vm921 = vmor %vm919, %vm920
      %v922 = vsel %vm921, %v914, %v918
      %v923 = vand.u32 2147483647, %v476
      %vm924 = vcmp.eq.f32.partialorder %v923, 8.507059e+37
      %v925 = vand.u32 %v476, 2147483648
      %v926 = vor.u32 1.1754944e-38, %v925
      %v927 = vsel %vm924, %v926, %v922
      %v928 = vmul.f32 1.0, %v927
      %v929 = vrcp.pop %v477
      %v930 = vmul.f32 %v477, %v929
      %v931 = vsub.f32 1.0, %v930
      %v932 = vmul.f32 %v929, %v931
      %v933 = vadd.f32 %v929, %v932
      %vm934 = vweird.f32 %v477
      %vm935 = vweird.f32 %v929
      %vm936 = vmor %vm934, %vm935
      %v937 = vsel %vm936, %v929, %v933
      %v938 = vand.u32 2147483647, %v477
      %vm939 = vcmp.eq.f32.partialorder %v938, 8.507059e+37
      %v940 = vand.u32 %v477, 2147483648
      %v941 = vor.u32 1.1754944e-38, %v940
      %v942 = vsel %vm939, %v941, %v937
      %v943 = vmul.f32 1.0, %v942
      %v944 = vrcp.pop %v478
      %v945 = vmul.f32 %v478, %v944
      %v946 = vsub.f32 1.0, %v945
      %v947 = vmul.f32 %v944, %v946
      %v948 = vadd.f32 %v944, %v947
      %vm949 = vweird.f32 %v478
      %vm950 = vweird.f32 %v944
      %vm951 = vmor %vm949, %vm950
      %v952 = vsel %vm951, %v944, %v948
      %v953 = vand.u32 2147483647, %v478
      %vm954 = vcmp.eq.f32.partialorder %v953, 8.507059e+37
      %v955 = vand.u32 %v478, 2147483648
      %v956 = vor.u32 1.1754944e-38, %v955
      %v957 = vsel %vm954, %v956, %v952
      %v958 = vmul.f32 1.0, %v957
      %v959 = vmul.f32 %v493, 1.0614054
      %v960 = vmul.f32 %v508, 1.0614054
      %v961 = vmul.f32 %v523, 1.0614054
      %v962 = vmul.f32 %v538, 1.0614054
      %v963 = vmul.f32 %v553, 1.0614054
      %v964 = vmul.f32 %v568, 1.0614054
      %v965 = vmul.f32 %v583, 1.0614054
      %v966 = vmul.f32 %v598, 1.0614054
      %v967 = vmul.f32 %v613, 1.0614054
      %v968 = vmul.f32 %v628, 1.0614054
      %v969 = vmul.f32 %v643, 1.0614054
      %v970 = vmul.f32 %v658, 1.0614054
      %v971 = vmul.f32 %v673, 1.0614054
      %v972 = vmul.f32 %v688, 1.0614054
      %v973 = vmul.f32 %v703, 1.0614054
      %v974 = vmul.f32 %v718, 1.0614054
      %v975 = vmul.f32 %v733, 1.0614054
      %v976 = vmul.f32 %v748, 1.0614054
      %v977 = vmul.f32 %v763, 1.0614054
      %v978 = vmul.f32 %v778, 1.0614054
      %v979 = vmul.f32 %v793, 1.0614054
      %v980 = vmul.f32 %v808, 1.0614054
      %v981 = vmul.f32 %v823, 1.0614054
      %v982 = vmul.f32 %v838, 1.0614054
      %v983 = vmul.f32 %v853, 1.0614054
      %v984 = vmul.f32 %v868, 1.0614054
      %v985 = vmul.f32 %v883, 1.0614054
      %v986 = vmul.f32 %v898, 1.0614054
      %v987 = vmul.f32 %v913, 1.0614054
      %v988 = vmul.f32 %v928, 1.0614054
      %v989 = vmul.f32 %v943, 1.0614054
      %v990 = vmul.f32 %v958, 1.0614054
      %v991 = vadd.f32 %v959, -1.4531521
      %v992 = vadd.f32 %v960, -1.4531521
      %v993 = vadd.f32 %v961, -1.4531521
      %v994 = vadd.f32 %v962, -1.4531521
      %v995 = vadd.f32 %v963, -1.4531521
      %v996 = vadd.f32 %v964, -1.4531521
      %v997 = vadd.f32 %v965, -1.4531521
      %v998 = vadd.f32 %v966, -1.4531521
      %v999 = vadd.f32 %v967, -1.4531521
      %v1000 = vadd.f32 %v968, -1.4531521
      %v1001 = vadd.f32 %v969, -1.4531521
      %v1002 = vadd.f32 %v970, -1.4531521
      %v1003 = vadd.f32 %v971, -1.4531521
      %v1004 = vadd.f32 %v972, -1.4531521
      %v1005 = vadd.f32 %v973, -1.4531521
      %v1006 = vadd.f32 %v974, -1.4531521
      %v1007 = vadd.f32 %v975, -1.4531521
      %v1008 = vadd.f32 %v976, -1.4531521
      %v1009 = vadd.f32 %v977, -1.4531521
      %v1010 = vadd.f32 %v978, -1.4531521
      %v1011 = vadd.f32 %v979, -1.4531521
      %v1012 = vadd.f32 %v980, -1.4531521
      %v1013 = vadd.f32 %v981, -1.4531521
      %v1014 = vadd.f32 %v982, -1.4531521
      %v1015 = vadd.f32 %v983, -1.4531521
      %v1016 = vadd.f32 %v984, -1.4531521
      %v1017 = vadd.f32 %v985, -1.4531521
      %v1018 = vadd.f32 %v986, -1.4531521
      %v1019 = vadd.f32 %v987, -1.4531521
      %v1020 = vadd.f32 %v988, -1.4531521
      %v1021 = vadd.f32 %v989, -1.4531521
      %v1022 = vadd.f32 %v990, -1.4531521
      %v1023 = vmul.f32 %v991, %v493
      %v1024 = vmul.f32 %v992, %v508
      %v1025 = vmul.f32 %v993, %v523
      %v1026 = vmul.f32 %v994, %v538
      %v1027 = vmul.f32 %v995, %v553
      %v1028 = vmul.f32 %v996, %v568
      %v1029 = vmul.f32 %v997, %v583
      %v1030 = vmul.f32 %v998, %v598
      %v1031 = vmul.f32 %v999, %v613
      %v1032 = vmul.f32 %v1000, %v628
      %v1033 = vmul.f32 %v1001, %v643
      %v1034 = vmul.f32 %v1002, %v658
      %v1035 = vmul.f32 %v1003, %v673
      %v1036 = vmul.f32 %v1004, %v688
      %v1037 = vmul.f32 %v1005, %v703
      %v1038 = vmul.f32 %v1006, %v718
      %v1039 = vmul.f32 %v1007, %v733
      %v1040 = vmul.f32 %v1008, %v748
      %v1041 = vmul.f32 %v1009, %v763
      %v1042 = vmul.f32 %v1010, %v778
      %v1043 = vmul.f32 %v1011, %v793
      %v1044 = vmul.f32 %v1012, %v808
      %v1045 = vmul.f32 %v1013, %v823
      %v1046 = vmul.f32 %v1014, %v838
      %v1047 = vmul.f32 %v1015, %v853
      %v1048 = vmul.f32 %v1016, %v868
      %v1049 = vmul.f32 %v1017, %v883
      %v1050 = vmul.f32 %v1018, %v898
      %v1051 = vmul.f32 %v1019, %v913
      %v1052 = vmul.f32 %v1020, %v928
      %v1053 = vmul.f32 %v1021, %v943
      %v1054 = vmul.f32 %v1022, %v958
      %v1055 = vadd.f32 %v1023, 1.4214138
      %v1056 = vadd.f32 %v1024, 1.4214138
      %v1057 = vadd.f32 %v1025, 1.4214138
      %v1058 = vadd.f32 %v1026, 1.4214138
      %v1059 = vadd.f32 %v1027, 1.4214138
      %v1060 = vadd.f32 %v1028, 1.4214138
      %v1061 = vadd.f32 %v1029, 1.4214138
      %v1062 = vadd.f32 %v1030, 1.4214138
      %v1063 = vadd.f32 %v1031, 1.4214138
      %v1064 = vadd.f32 %v1032, 1.4214138
      %v1065 = vadd.f32 %v1033, 1.4214138
      %v1066 = vadd.f32 %v1034, 1.4214138
      %v1067 = vadd.f32 %v1035, 1.4214138
      %v1068 = vadd.f32 %v1036, 1.4214138
      %v1069 = vadd.f32 %v1037, 1.4214138
      %v1070 = vadd.f32 %v1038, 1.4214138
      %v1071 = vadd.f32 %v1039, 1.4214138
      %v1072 = vadd.f32 %v1040, 1.4214138
      %v1073 = vadd.f32 %v1041, 1.4214138
      %v1074 = vadd.f32 %v1042, 1.4214138
      %v1075 = vadd.f32 %v1043, 1.4214138
      %v1076 = vadd.f32 %v1044, 1.4214138
      %v1077 = vadd.f32 %v1045, 1.4214138
      %v1078 = vadd.f32 %v1046, 1.4214138
      %v1079 = vadd.f32 %v1047, 1.4214138
      %v1080 = vadd.f32 %v1048, 1.4214138
      %v1081 = vadd.f32 %v1049, 1.4214138
      %v1082 = vadd.f32 %v1050, 1.4214138
      %v1083 = vadd.f32 %v1051, 1.4214138
      %v1084 = vadd.f32 %v1052, 1.4214138
      %v1085 = vadd.f32 %v1053, 1.4214138
      %v1086 = vadd.f32 %v1054, 1.4214138
      %v1087 = vmul.f32 %v1055, %v493
      %v1088 = vmul.f32 %v1056, %v508
      %v1089 = vmul.f32 %v1057, %v523
      %v1090 = vmul.f32 %v1058, %v538
      %v1091 = vmul.f32 %v1059, %v553
      %v1092 = vmul.f32 %v1060, %v568
      %v1093 = vmul.f32 %v1061, %v583
      %v1094 = vmul.f32 %v1062, %v598
      %v1095 = vmul.f32 %v1063, %v613
      %v1096 = vmul.f32 %v1064, %v628
      %v1097 = vmul.f32 %v1065, %v643
      %v1098 = vmul.f32 %v1066, %v658
      %v1099 = vmul.f32 %v1067, %v673
      %v1100 = vmul.f32 %v1068, %v688
      %v1101 = vmul.f32 %v1069, %v703
      %v1102 = vmul.f32 %v1070, %v718
      %v1103 = vmul.f32 %v1071, %v733
      %v1104 = vmul.f32 %v1072, %v748
      %v1105 = vmul.f32 %v1073, %v763
      %v1106 = vmul.f32 %v1074, %v778
      %v1107 = vmul.f32 %v1075, %v793
      %v1108 = vmul.f32 %v1076, %v808
      %v1109 = vmul.f32 %v1077, %v823
      %v1110 = vmul.f32 %v1078, %v838
      %v1111 = vmul.f32 %v1079, %v853
      %v1112 = vmul.f32 %v1080, %v868
      %v1113 = vmul.f32 %v1081, %v883
      %v1114 = vmul.f32 %v1082, %v898
      %v1115 = vmul.f32 %v1083, %v913
      %v1116 = vmul.f32 %v1084, %v928
      %v1117 = vmul.f32 %v1085, %v943
      %v1118 = vmul.f32 %v1086, %v958
      %v1119 = vadd.f32 %v1087, -0.28449672
      %v1120 = vadd.f32 %v1088, -0.28449672
      %v1121 = vadd.f32 %v1089, -0.28449672
      %v1122 = vadd.f32 %v1090, -0.28449672
      %v1123 = vadd.f32 %v1091, -0.28449672
      %v1124 = vadd.f32 %v1092, -0.28449672
      %v1125 = vadd.f32 %v1093, -0.28449672
      %v1126 = vadd.f32 %v1094, -0.28449672
      %v1127 = vadd.f32 %v1095, -0.28449672
      %v1128 = vadd.f32 %v1096, -0.28449672
      %v1129 = vadd.f32 %v1097, -0.28449672
      %v1130 = vadd.f32 %v1098, -0.28449672
      %v1131 = vadd.f32 %v1099, -0.28449672
      %v1132 = vadd.f32 %v1100, -0.28449672
      %v1133 = vadd.f32 %v1101, -0.28449672
      %v1134 = vadd.f32 %v1102, -0.28449672
      %v1135 = vadd.f32 %v1103, -0.28449672
      %v1136 = vadd.f32 %v1104, -0.28449672
      %v1137 = vadd.f32 %v1105, -0.28449672
      %v1138 = vadd.f32 %v1106, -0.28449672
      %v1139 = vadd.f32 %v1107, -0.28449672
      %v1140 = vadd.f32 %v1108, -0.28449672
      %v1141 = vadd.f32 %v1109, -0.28449672
      %v1142 = vadd.f32 %v1110, -0.28449672
      %v1143 = vadd.f32 %v1111, -0.28449672
      %v1144 = vadd.f32 %v1112, -0.28449672
      %v1145 = vadd.f32 %v1113, -0.28449672
      %v1146 = vadd.f32 %v1114, -0.28449672
      %v1147 = vadd.f32 %v1115, -0.28449672
      %v1148 = vadd.f32 %v1116, -0.28449672
      %v1149 = vadd.f32 %v1117, -0.28449672
      %v1150 = vadd.f32 %v1118, -0.28449672
      %v1151 = vmul.f32 %v1119, %v493
      %v1152 = vmul.f32 %v1120, %v508
      %v1153 = vmul.f32 %v1121, %v523
      %v1154 = vmul.f32 %v1122, %v538
      %v1155 = vmul.f32 %v1123, %v553
      %v1156 = vmul.f32 %v1124, %v568
      %v1157 = vmul.f32 %v1125, %v583
      %v1158 = vmul.f32 %v1126, %v598
      %v1159 = vmul.f32 %v1127, %v613
      %v1160 = vmul.f32 %v1128, %v628
      %v1161 = vmul.f32 %v1129, %v643
      %v1162 = vmul.f32 %v1130, %v658
      %v1163 = vmul.f32 %v1131, %v673
      %v1164 = vmul.f32 %v1132, %v688
      %v1165 = vmul.f32 %v1133, %v703
      %v1166 = vmul.f32 %v1134, %v718
      %v1167 = vmul.f32 %v1135, %v733
      %v1168 = vmul.f32 %v1136, %v748
      %v1169 = vmul.f32 %v1137, %v763
      %v1170 = vmul.f32 %v1138, %v778
      %v1171 = vmul.f32 %v1139, %v793
      %v1172 = vmul.f32 %v1140, %v808
      %v1173 = vmul.f32 %v1141, %v823
      %v1174 = vmul.f32 %v1142, %v838
      %v1175 = vmul.f32 %v1143, %v853
      %v1176 = vmul.f32 %v1144, %v868
      %v1177 = vmul.f32 %v1145, %v883
      %v1178 = vmul.f32 %v1146, %v898
      %v1179 = vmul.f32 %v1147, %v913
      %v1180 = vmul.f32 %v1148, %v928
      %v1181 = vmul.f32 %v1149, %v943
      %v1182 = vmul.f32 %v1150, %v958
      %v1183 = vadd.f32 %v1151, 0.2548296
      %v1184 = vadd.f32 %v1152, 0.2548296
      %v1185 = vadd.f32 %v1153, 0.2548296
      %v1186 = vadd.f32 %v1154, 0.2548296
      %v1187 = vadd.f32 %v1155, 0.2548296
      %v1188 = vadd.f32 %v1156, 0.2548296
      %v1189 = vadd.f32 %v1157, 0.2548296
      %v1190 = vadd.f32 %v1158, 0.2548296
      %v1191 = vadd.f32 %v1159, 0.2548296
      %v1192 = vadd.f32 %v1160, 0.2548296
      %v1193 = vadd.f32 %v1161, 0.2548296
      %v1194 = vadd.f32 %v1162, 0.2548296
      %v1195 = vadd.f32 %v1163, 0.2548296
      %v1196 = vadd.f32 %v1164, 0.2548296
      %v1197 = vadd.f32 %v1165, 0.2548296
      %v1198 = vadd.f32 %v1166, 0.2548296
      %v1199 = vadd.f32 %v1167, 0.2548296
      %v1200 = vadd.f32 %v1168, 0.2548296
      %v1201 = vadd.f32 %v1169, 0.2548296
      %v1202 = vadd.f32 %v1170, 0.2548296
      %v1203 = vadd.f32 %v1171, 0.2548296
      %v1204 = vadd.f32 %v1172, 0.2548296
      %v1205 = vadd.f32 %v1173, 0.2548296
      %v1206 = vadd.f32 %v1174, 0.2548296
      %v1207 = vadd.f32 %v1175, 0.2548296
      %v1208 = vadd.f32 %v1176, 0.2548296
      %v1209 = vadd.f32 %v1177, 0.2548296
      %v1210 = vadd.f32 %v1178, 0.2548296
      %v1211 = vadd.f32 %v1179, 0.2548296
      %v1212 = vadd.f32 %v1180, 0.2548296
      %v1213 = vadd.f32 %v1181, 0.2548296
      %v1214 = vadd.f32 %v1182, 0.2548296
      %v1215 = vmul.f32 %v1183, %v493
      %v1216 = vmul.f32 %v1184, %v508
      %v1217 = vmul.f32 %v1185, %v523
      %v1218 = vmul.f32 %v1186, %v538
      %v1219 = vmul.f32 %v1187, %v553
      %v1220 = vmul.f32 %v1188, %v568
      %v1221 = vmul.f32 %v1189, %v583
      %v1222 = vmul.f32 %v1190, %v598
      %v1223 = vmul.f32 %v1191, %v613
      %v1224 = vmul.f32 %v1192, %v628
      %v1225 = vmul.f32 %v1193, %v643
      %v1226 = vmul.f32 %v1194, %v658
      %v1227 = vmul.f32 %v1195, %v673
      %v1228 = vmul.f32 %v1196, %v688
      %v1229 = vmul.f32 %v1197, %v703
      %v1230 = vmul.f32 %v1198, %v718
      %v1231 = vmul.f32 %v1199, %v733
      %v1232 = vmul.f32 %v1200, %v748
      %v1233 = vmul.f32 %v1201, %v763
      %v1234 = vmul.f32 %v1202, %v778
      %v1235 = vmul.f32 %v1203, %v793
      %v1236 = vmul.f32 %v1204, %v808
      %v1237 = vmul.f32 %v1205, %v823
      %v1238 = vmul.f32 %v1206, %v838
      %v1239 = vmul.f32 %v1207, %v853
      %v1240 = vmul.f32 %v1208, %v868
      %v1241 = vmul.f32 %v1209, %v883
      %v1242 = vmul.f32 %v1210, %v898
      %v1243 = vmul.f32 %v1211, %v913
      %v1244 = vmul.f32 %v1212, %v928
      %v1245 = vmul.f32 %v1213, %v943
      %v1246 = vmul.f32 %v1214, %v958
      %v1247 = vsub.f32 0.0, %v383
      %v1248 = vsub.f32 0.0, %v384
      %v1249 = vsub.f32 0.0, %v385
      %v1250 = vsub.f32 0.0, %v386
      %v1251 = vsub.f32 0.0, %v387
      %v1252 = vsub.f32 0.0, %v388
      %v1253 = vsub.f32 0.0, %v389
      %v1254 = vsub.f32 0.0, %v390
      %v1255 = vsub.f32 0.0, %v391
      %v1256 = vsub.f32 0.0, %v392
      %v1257 = vsub.f32 0.0, %v393
      %v1258 = vsub.f32 0.0, %v394
      %v1259 = vsub.f32 0.0, %v395
      %v1260 = vsub.f32 0.0, %v396
      %v1261 = vsub.f32 0.0, %v397
      %v1262 = vsub.f32 0.0, %v398
      %v1263 = vsub.f32 0.0, %v399
      %v1264 = vsub.f32 0.0, %v400
      %v1265 = vsub.f32 0.0, %v401
      %v1266 = vsub.f32 0.0, %v402
      %v1267 = vsub.f32 0.0, %v403
      %v1268 = vsub.f32 0.0, %v404
      %v1269 = vsub.f32 0.0, %v405
      %v1270 = vsub.f32 0.0, %v406
      %v1271 = vsub.f32 0.0, %v407
      %v1272 = vsub.f32 0.0, %v408
      %v1273 = vsub.f32 0.0, %v409
      %v1274 = vsub.f32 0.0, %v410
      %v1275 = vsub.f32 0.0, %v411
      %v1276 = vsub.f32 0.0, %v412
      %v1277 = vsub.f32 0.0, %v413
      %v1278 = vsub.f32 0.0, %v414
      %v1279 = vmul.f32 %v1247, %v383
      %v1280 = vmul.f32 %v1248, %v384
      %v1281 = vmul.f32 %v1249, %v385
      %v1282 = vmul.f32 %v1250, %v386
      %v1283 = vmul.f32 %v1251, %v387
      %v1284 = vmul.f32 %v1252, %v388
      %v1285 = vmul.f32 %v1253, %v389
      %v1286 = vmul.f32 %v1254, %v390
      %v1287 = vmul.f32 %v1255, %v391
      %v1288 = vmul.f32 %v1256, %v392
      %v1289 = vmul.f32 %v1257, %v393
      %v1290 = vmul.f32 %v1258, %v394
      %v1291 = vmul.f32 %v1259, %v395
      %v1292 = vmul.f32 %v1260, %v396
      %v1293 = vmul.f32 %v1261, %v397
      %v1294 = vmul.f32 %v1262, %v398
      %v1295 = vmul.f32 %v1263, %v399
      %v1296 = vmul.f32 %v1264, %v400
      %v1297 = vmul.f32 %v1265, %v401
      %v1298 = vmul.f32 %v1266, %v402
      %v1299 = vmul.f32 %v1267, %v403
      %v1300 = vmul.f32 %v1268, %v404
      %v1301 = vmul.f32 %v1269, %v405
      %v1302 = vmul.f32 %v1270, %v406
      %v1303 = vmul.f32 %v1271, %v407
      %v1304 = vmul.f32 %v1272, %v408
      %v1305 = vmul.f32 %v1273, %v409
      %v1306 = vmul.f32 %v1274, %v410
      %v1307 = vmul.f32 %v1275, %v411
      %v1308 = vmul.f32 %v1276, %v412
      %v1309 = vmul.f32 %v1277, %v413
      %v1310 = vmul.f32 %v1278, %v414
      %v1311 = vmul.f32 %v1279, 1.442695
      %v1312 = vpow.pop %v1311
      %v1313 = vmul.f32 %v1280, 1.442695
      %v1314 = vpow.pop %v1313
      %v1315 = vmul.f32 %v1281, 1.442695
      %v1316 = vpow.pop %v1315
      %v1317 = vmul.f32 %v1282, 1.442695
      %v1318 = vpow.pop %v1317
      %v1319 = vmul.f32 %v1283, 1.442695
      %v1320 = vpow.pop %v1319
      %v1321 = vmul.f32 %v1284, 1.442695
      %v1322 = vpow.pop %v1321
      %v1323 = vmul.f32 %v1285, 1.442695
      %v1324 = vpow.pop %v1323
      %v1325 = vmul.f32 %v1286, 1.442695
      %v1326 = vpow.pop %v1325
      %v1327 = vmul.f32 %v1287, 1.442695
      %v1328 = vpow.pop %v1327
      %v1329 = vmul.f32 %v1288, 1.442695
      %v1330 = vpow.pop %v1329
      %v1331 = vmul.f32 %v1289, 1.442695
      %v1332 = vpow.pop %v1331
      %v1333 = vmul.f32 %v1290, 1.442695
      %v1334 = vpow.pop %v1333
      %v1335 = vmul.f32 %v1291, 1.442695
      %v1336 = vpow.pop %v1335
      %v1337 = vmul.f32 %v1292, 1.442695
      %v1338 = vpow.pop %v1337
      %v1339 = vmul.f32 %v1293, 1.442695
      %v1340 = vpow.pop %v1339
      %v1341 = vmul.f32 %v1294, 1.442695
      %v1342 = vpow.pop %v1341
      %v1343 = vmul.f32 %v1295, 1.442695
      %v1344 = vpow.pop %v1343
      %v1345 = vmul.f32 %v1296, 1.442695
      %v1346 = vpow.pop %v1345
      %v1347 = vmul.f32 %v1297, 1.442695
      %v1348 = vpow.pop %v1347
      %v1349 = vmul.f32 %v1298, 1.442695
      %v1350 = vpow.pop %v1349
      %v1351 = vmul.f32 %v1299, 1.442695
      %v1352 = vpow.pop %v1351
      %v1353 = vmul.f32 %v1300, 1.442695
      %v1354 = vpow.pop %v1353
      %v1355 = vmul.f32 %v1301, 1.442695
      %v1356 = vpow.pop %v1355
      %v1357 = vmul.f32 %v1302, 1.442695
      %v1358 = vpow.pop %v1357
      %v1359 = vmul.f32 %v1303, 1.442695
      %v1360 = vpow.pop %v1359
      %v1361 = vmul.f32 %v1304, 1.442695
      %v1362 = vpow.pop %v1361
      %v1363 = vmul.f32 %v1305, 1.442695
      %v1364 = vpow.pop %v1363
      %v1365 = vmul.f32 %v1306, 1.442695
      %v1366 = vpow.pop %v1365
      %v1367 = vmul.f32 %v1307, 1.442695
      %v1368 = vpow.pop %v1367
      %v1369 = vmul.f32 %v1308, 1.442695
      %v1370 = vpow.pop %v1369
      %v1371 = vmul.f32 %v1309, 1.442695
      %v1372 = vpow.pop %v1371
      %v1373 = vmul.f32 %v1310, 1.442695
      %v1374 = vpow.pop %v1373
      %v1375 = vmul.f32 %v1215, %v1312
      %v1376 = vmul.f32 %v1216, %v1314
      %v1377 = vmul.f32 %v1217, %v1316
      %v1378 = vmul.f32 %v1218, %v1318
      %v1379 = vmul.f32 %v1219, %v1320
      %v1380 = vmul.f32 %v1220, %v1322
      %v1381 = vmul.f32 %v1221, %v1324
      %v1382 = vmul.f32 %v1222, %v1326
      %v1383 = vmul.f32 %v1223, %v1328
      %v1384 = vmul.f32 %v1224, %v1330
      %v1385 = vmul.f32 %v1225, %v1332
      %v1386 = vmul.f32 %v1226, %v1334
      %v1387 = vmul.f32 %v1227, %v1336
      %v1388 = vmul.f32 %v1228, %v1338
      %v1389 = vmul.f32 %v1229, %v1340
      %v1390 = vmul.f32 %v1230, %v1342
      %v1391 = vmul.f32 %v1231, %v1344
      %v1392 = vmul.f32 %v1232, %v1346
      %v1393 = vmul.f32 %v1233, %v1348
      %v1394 = vmul.f32 %v1234, %v1350
      %v1395 = vmul.f32 %v1235, %v1352
      %v1396 = vmul.f32 %v1236, %v1354
      %v1397 = vmul.f32 %v1237, %v1356
      %v1398 = vmul.f32 %v1238, %v1358
      %v1399 = vmul.f32 %v1239, %v1360
      %v1400 = vmul.f32 %v1240, %v1362
      %v1401 = vmul.f32 %v1241, %v1364
      %v1402 = vmul.f32 %v1242, %v1366
      %v1403 = vmul.f32 %v1243, %v1368
      %v1404 = vmul.f32 %v1244, %v1370
      %v1405 = vmul.f32 %v1245, %v1372
      %v1406 = vmul.f32 %v1246, %v1374
      %v1407 = vsub.f32 1.0, %v1375
      %v1408 = vsub.f32 1.0, %v1376
      %v1409 = vsub.f32 1.0, %v1377
      %v1410 = vsub.f32 1.0, %v1378
      %v1411 = vsub.f32 1.0, %v1379
      %v1412 = vsub.f32 1.0, %v1380
      %v1413 = vsub.f32 1.0, %v1381
      %v1414 = vsub.f32 1.0, %v1382
      %v1415 = vsub.f32 1.0, %v1383
      %v1416 = vsub.f32 1.0, %v1384
      %v1417 = vsub.f32 1.0, %v1385
      %v1418 = vsub.f32 1.0, %v1386
      %v1419 = vsub.f32 1.0, %v1387
      %v1420 = vsub.f32 1.0, %v1388
      %v1421 = vsub.f32 1.0, %v1389
      %v1422 = vsub.f32 1.0, %v1390
      %v1423 = vsub.f32 1.0, %v1391
      %v1424 = vsub.f32 1.0, %v1392
      %v1425 = vsub.f32 1.0, %v1393
      %v1426 = vsub.f32 1.0, %v1394
      %v1427 = vsub.f32 1.0, %v1395
      %v1428 = vsub.f32 1.0, %v1396
      %v1429 = vsub.f32 1.0, %v1397
      %v1430 = vsub.f32 1.0, %v1398
      %v1431 = vsub.f32 1.0, %v1399
      %v1432 = vsub.f32 1.0, %v1400
      %v1433 = vsub.f32 1.0, %v1401
      %v1434 = vsub.f32 1.0, %v1402
      %v1435 = vsub.f32 1.0, %v1403
      %v1436 = vsub.f32 1.0, %v1404
      %v1437 = vsub.f32 1.0, %v1405
      %v1438 = vsub.f32 1.0, %v1406
      %vm1439 = vcmp.ge.f32.partialorder %v351, 0.0
      %vm1440 = vcmp.ge.f32.partialorder %v352, 0.0
      %vm1441 = vcmp.ge.f32.partialorder %v353, 0.0
      %vm1442 = vcmp.ge.f32.partialorder %v354, 0.0
      %vm1443 = vcmp.ge.f32.partialorder %v355, 0.0
      %vm1444 = vcmp.ge.f32.partialorder %v356, 0.0
      %vm1445 = vcmp.ge.f32.partialorder %v357, 0.0
      %vm1446 = vcmp.ge.f32.partialorder %v358, 0.0
      %vm1447 = vcmp.ge.f32.partialorder %v359, 0.0
      %vm1448 = vcmp.ge.f32.partialorder %v360, 0.0
      %vm1449 = vcmp.ge.f32.partialorder %v361, 0.0
      %vm1450 = vcmp.ge.f32.partialorder %v362, 0.0
      %vm1451 = vcmp.ge.f32.partialorder %v363, 0.0
      %vm1452 = vcmp.ge.f32.partialorder %v364, 0.0
      %vm1453 = vcmp.ge.f32.partialorder %v365, 0.0
      %vm1454 = vcmp.ge.f32.partialorder %v366, 0.0
      %vm1455 = vcmp.ge.f32.partialorder %v367, 0.0
      %vm1456 = vcmp.ge.f32.partialorder %v368, 0.0
      %vm1457 = vcmp.ge.f32.partialorder %v369, 0.0
      %vm1458 = vcmp.ge.f32.partialorder %v370, 0.0
      %vm1459 = vcmp.ge.f32.partialorder %v371, 0.0
      %vm1460 = vcmp.ge.f32.partialorder %v372, 0.0
      %vm1461 = vcmp.ge.f32.partialorder %v373, 0.0
      %vm1462 = vcmp.ge.f32.partialorder %v374, 0.0
      %vm1463 = vcmp.ge.f32.partialorder %v375, 0.0
      %vm1464 = vcmp.ge.f32.partialorder %v376, 0.0
      %vm1465 = vcmp.ge.f32.partialorder %v377, 0.0
      %vm1466 = vcmp.ge.f32.partialorder %v378, 0.0
      %vm1467 = vcmp.ge.f32.partialorder %v379, 0.0
      %vm1468 = vcmp.ge.f32.partialorder %v380, 0.0
      %vm1469 = vcmp.ge.f32.partialorder %v381, 0.0
      %vm1470 = vcmp.ge.f32.partialorder %v382, 0.0
      %v1471 = vsub.f32 0.0, %v1407
      %v1472 = vsub.f32 0.0, %v1408
      %v1473 = vsub.f32 0.0, %v1409
      %v1474 = vsub.f32 0.0, %v1410
      %v1475 = vsub.f32 0.0, %v1411
      %v1476 = vsub.f32 0.0, %v1412
      %v1477 = vsub.f32 0.0, %v1413
      %v1478 = vsub.f32 0.0, %v1414
      %v1479 = vsub.f32 0.0, %v1415
      %v1480 = vsub.f32 0.0, %v1416
      %v1481 = vsub.f32 0.0, %v1417
      %v1482 = vsub.f32 0.0, %v1418
      %v1483 = vsub.f32 0.0, %v1419
      %v1484 = vsub.f32 0.0, %v1420
      %v1485 = vsub.f32 0.0, %v1421
      %v1486 = vsub.f32 0.0, %v1422
      %v1487 = vsub.f32 0.0, %v1423
      %v1488 = vsub.f32 0.0, %v1424
      %v1489 = vsub.f32 0.0, %v1425
      %v1490 = vsub.f32 0.0, %v1426
      %v1491 = vsub.f32 0.0, %v1427
      %v1492 = vsub.f32 0.0, %v1428
      %v1493 = vsub.f32 0.0, %v1429
      %v1494 = vsub.f32 0.0, %v1430
      %v1495 = vsub.f32 0.0, %v1431
      %v1496 = vsub.f32 0.0, %v1432
      %v1497 = vsub.f32 0.0, %v1433
      %v1498 = vsub.f32 0.0, %v1434
      %v1499 = vsub.f32 0.0, %v1435
      %v1500 = vsub.f32 0.0, %v1436
      %v1501 = vsub.f32 0.0, %v1437
      %v1502 = vsub.f32 0.0, %v1438
      %v1503 = vsel %vm1439, %v1407, %v1471
      %v1504 = vsel %vm1440, %v1408, %v1472
      %v1505 = vsel %vm1441, %v1409, %v1473
      %v1506 = vsel %vm1442, %v1410, %v1474
      %v1507 = vsel %vm1443, %v1411, %v1475
      %v1508 = vsel %vm1444, %v1412, %v1476
      %v1509 = vsel %vm1445, %v1413, %v1477
      %v1510 = vsel %vm1446, %v1414, %v1478
      %v1511 = vsel %vm1447, %v1415, %v1479
      %v1512 = vsel %vm1448, %v1416, %v1480
      %v1513 = vsel %vm1449, %v1417, %v1481
      %v1514 = vsel %vm1450, %v1418, %v1482
      %v1515 = vsel %vm1451, %v1419, %v1483
      %v1516 = vsel %vm1452, %v1420, %v1484
      %v1517 = vsel %vm1453, %v1421, %v1485
      %v1518 = vsel %vm1454, %v1422, %v1486
      %v1519 = vsel %vm1455, %v1423, %v1487
      %v1520 = vsel %vm1456, %v1424, %v1488
      %v1521 = vsel %vm1457, %v1425, %v1489
      %v1522 = vsel %vm1458, %v1426, %v1490
      %v1523 = vsel %vm1459, %v1427, %v1491
      %v1524 = vsel %vm1460, %v1428, %v1492
      %v1525 = vsel %vm1461, %v1429, %v1493
      %v1526 = vsel %vm1462, %v1430, %v1494
      %v1527 = vsel %vm1463, %v1431, %v1495
      %v1528 = vsel %vm1464, %v1432, %v1496
      %v1529 = vsel %vm1465, %v1433, %v1497
      %v1530 = vsel %vm1466, %v1434, %v1498
      %v1531 = vsel %vm1467, %v1435, %v1499
      %v1532 = vsel %vm1468, %v1436, %v1500
      %v1533 = vsel %vm1469, %v1437, %v1501
      %v1534 = vsel %vm1470, %v1438, %v1502
      %v1535 = vadd.f32 %v1503, 1.0
      %v1536 = vadd.f32 %v1504, 1.0
      %v1537 = vadd.f32 %v1505, 1.0
      %v1538 = vadd.f32 %v1506, 1.0
      %v1539 = vadd.f32 %v1507, 1.0
      %v1540 = vadd.f32 %v1508, 1.0
      %v1541 = vadd.f32 %v1509, 1.0
      %v1542 = vadd.f32 %v1510, 1.0
      %v1543 = vadd.f32 %v1511, 1.0
      %v1544 = vadd.f32 %v1512, 1.0
      %v1545 = vadd.f32 %v1513, 1.0
      %v1546 = vadd.f32 %v1514, 1.0
      %v1547 = vadd.f32 %v1515, 1.0
      %v1548 = vadd.f32 %v1516, 1.0
      %v1549 = vadd.f32 %v1517, 1.0
      %v1550 = vadd.f32 %v1518, 1.0
      %v1551 = vadd.f32 %v1519, 1.0
      %v1552 = vadd.f32 %v1520, 1.0
      %v1553 = vadd.f32 %v1521, 1.0
      %v1554 = vadd.f32 %v1522, 1.0
      %v1555 = vadd.f32 %v1523, 1.0
      %v1556 = vadd.f32 %v1524, 1.0
      %v1557 = vadd.f32 %v1525, 1.0
      %v1558 = vadd.f32 %v1526, 1.0
      %v1559 = vadd.f32 %v1527, 1.0
      %v1560 = vadd.f32 %v1528, 1.0
      %v1561 = vadd.f32 %v1529, 1.0
      %v1562 = vadd.f32 %v1530, 1.0
      %v1563 = vadd.f32 %v1531, 1.0
      %v1564 = vadd.f32 %v1532, 1.0
      %v1565 = vadd.f32 %v1533, 1.0
      %v1566 = vadd.f32 %v1534, 1.0
      %v1567 = vmul.f32 %v319, %v1535
      %v1568 = vmul.f32 %v320, %v1536
      %v1569 = vmul.f32 %v321, %v1537
      %v1570 = vmul.f32 %v322, %v1538
      %v1571 = vmul.f32 %v323, %v1539
      %v1572 = vmul.f32 %v324, %v1540
      %v1573 = vmul.f32 %v325, %v1541
      %v1574 = vmul.f32 %v326, %v1542
      %v1575 = vmul.f32 %v327, %v1543
      %v1576 = vmul.f32 %v328, %v1544
      %v1577 = vmul.f32 %v329, %v1545
      %v1578 = vmul.f32 %v330, %v1546
      %v1579 = vmul.f32 %v331, %v1547
      %v1580 = vmul.f32 %v332, %v1548
      %v1581 = vmul.f32 %v333, %v1549
      %v1582 = vmul.f32 %v334, %v1550
      %v1583 = vmul.f32 %v335, %v1551
      %v1584 = vmul.f32 %v336, %v1552
      %v1585 = vmul.f32 %v337, %v1553
      %v1586 = vmul.f32 %v338, %v1554
      %v1587 = vmul.f32 %v339, %v1555
      %v1588 = vmul.f32 %v340, %v1556
      %v1589 = vmul.f32 %v341, %v1557
      %v1590 = vmul.f32 %v342, %v1558
      %v1591 = vmul.f32 %v343, %v1559
      %v1592 = vmul.f32 %v344, %v1560
      %v1593 = vmul.f32 %v345, %v1561
      %v1594 = vmul.f32 %v346, %v1562
      %v1595 = vmul.f32 %v347, %v1563
      %v1596 = vmul.f32 %v348, %v1564
      %v1597 = vmul.f32 %v349, %v1565
      %v1598 = vmul.f32 %v350, %v1566
      %vm1599 = vcmask 64512
      %1600 = vst.msk [vmem:[%s213] sm:$0xff] %vm1599, %v1567
      %1601 = vst.msk [vmem:[%s213 + $0x8] sm:$0xff] %vm1599, %v1568
      %1602 = vst.msk [vmem:[%s213 + $0x10] sm:$0xff] %vm1599, %v1569
      %1603 = vst.msk [vmem:[%s213 + $0x18] sm:$0xff] %vm1599, %v1570
      %1604 = vst.msk [vmem:[%s213 + $0x20] sm:$0xff] %vm1599, %v1571
      %1605 = vst.msk [vmem:[%s213 + $0x28] sm:$0xff] %vm1599, %v1572
      %1606 = vst.msk [vmem:[%s213 + $0x30] sm:$0xff] %vm1599, %v1573
      %1607 = vst.msk [vmem:[%s213 + $0x38] sm:$0xff] %vm1599, %v1574
      %1608 = vst.msk [vmem:[%s213 + $0x40] sm:$0xff] %vm1599, %v1575
      %1609 = vst.msk [vmem:[%s213 + $0x48] sm:$0xff] %vm1599, %v1576
      %1610 = vst.msk [vmem:[%s213 + $0x50] sm:$0xff] %vm1599, %v1577
      %1611 = vst.msk [vmem:[%s213 + $0x58] sm:$0xff] %vm1599, %v1578
      %1612 = vst.msk [vmem:[%s213 + $0x60] sm:$0xff] %vm1599, %v1579
      %1613 = vst.msk [vmem:[%s213 + $0x68] sm:$0xff] %vm1599, %v1580
      %1614 = vst.msk [vmem:[%s213 + $0x70] sm:$0xff] %vm1599, %v1581
      %1615 = vst.msk [vmem:[%s213 + $0x78] sm:$0xff] %vm1599, %v1582
      %1616 = vst.msk [vmem:[%s213 + $0x80] sm:$0xff] %vm1599, %v1583
      %1617 = vst.msk [vmem:[%s213 + $0x88] sm:$0xff] %vm1599, %v1584
      %1618 = vst.msk [vmem:[%s213 + $0x90] sm:$0xff] %vm1599, %v1585
      %1619 = vst.msk [vmem:[%s213 + $0x98] sm:$0xff] %vm1599, %v1586
      %1620 = vst.msk [vmem:[%s213 + $0xa0] sm:$0xff] %vm1599, %v1587
      %1621 = vst.msk [vmem:[%s213 + $0xa8] sm:$0xff] %vm1599, %v1588
      %1622 = vst.msk [vmem:[%s213 + $0xb0] sm:$0xff] %vm1599, %v1589
      %1623 = vst.msk [vmem:[%s213 + $0xb8] sm:$0xff] %vm1599, %v1590
      %1624 = vst.msk [vmem:[%s213 + $0xc0] sm:$0xff] %vm1599, %v1591
      %1625 = vst.msk [vmem:[%s213 + $0xc8] sm:$0xff] %vm1599, %v1592
      %1626 = vst.msk [vmem:[%s213 + $0xd0] sm:$0xff] %vm1599, %v1593
      %1627 = vst.msk [vmem:[%s213 + $0xd8] sm:$0xff] %vm1599, %v1594
      %1628 = vst.msk [vmem:[%s213 + $0xe0] sm:$0xff] %vm1599, %v1595
      %1629 = vst.msk [vmem:[%s213 + $0xe8] sm:$0xff] %vm1599, %v1596
      %1630 = vst.msk [vmem:[%s213 + $0xf0] sm:$0xff] %vm1599, %v1597
      %1631 = vst.msk [vmem:[%s213 + $0xf8] sm:$0xff] %vm1599, %v1598
      %s1632 = smul.u32 16, %s19
      %p1633 = scmp.lt.s32.totalorder %s18, 1
      %s1634 = scalar_select %p1633, %s18, 1
      %p1635 = scmp.lt.s32.totalorder %s1632, 15
      %s1636 = scalar_select %p1635, %s1632, 15
      %s1637 = smul.addr %s1636, 2
      %s1638 = smul.addr %s1634, 32
      %s1639 = sadd.s32 %s1637, %s1638
      %s1640 = smul.addr %s1639, 8
      %s1641 = scalar_lea.vmem %s3, %s1640
      // Predicated region
      $region33: #{msconv2d_forward.3} parent=31 // pred_check
        %p1642 = pneg %p116
      $region34: #{msconv2d_forward.3} parent=31 // pred_check_branch
        %1644 = sbr.rel (%p1642) target = $region36
      $region35: #{msconv2d_forward.3} parent=31 // pred_region
        %s1645 = smul.u32 16, %s19
      $region36: #{msconv2d_forward.3} parent=31 // pred_fallthru
        _
    $region32: #{msconv2d_forward.3} parent=5 // pred_fallthru
      _
    %p1646 = scmp.le.s32.totalorder 2, %s9
    // Predicated region
    $region37: #{msconv2d_forward.3} parent=5 // pred_check
      %p1647 = pneg %p1646
    $region38: #{msconv2d_forward.3} parent=5 // pred_check_branch
      %1649 = sbr.rel (%p1647) target = $region40
    $region39: #{msconv2d_forward.3} parent=5 // pred_region
      %s1650 = ssub.s32 %s9, 2
      // Predicated region
      $region41: #{msconv2d_forward.3} parent=39 // pred_check
        %p1651 = pneg %p122
      $region42: #{msconv2d_forward.3} parent=39 // pred_check_branch
        %1653 = sbr.rel (%p1651) target = $region44
      $region43: #{msconv2d_forward.3} parent=39 // pred_region
        %s1654 = smul.u32 16, %s21
        %p1655 = scmp.lt.s32.totalorder %s20, 1
        %s1656 = scalar_select %p1655, %s20, 1
        %p1657 = scmp.lt.s32.totalorder %s1654, 15
        %s1658 = scalar_select %p1657, %s1654, 15
        %s1659 = smul.addr %s1658, 2
        %s1660 = smul.addr %s1656, 32
        %s1661 = sadd.s32 %s1659, %s1660
        %s1662 = smul.addr %s1661, 8
        %s1663 = scalar_lea.vmem %s3, %s1662
      $region44: #{msconv2d_forward.3} parent=39 // pred_fallthru
        _
    $region40: #{msconv2d_forward.3} parent=5 // pred_fallthru
      _
  $region6: #{msconv2d_forward.3} parent=0 // loop_footer
    %s13 = sadd.s32 1, %s9
  $region7: #{msconv2d_forward.3} parent=0 // loop_footer_branch
    %8 = sbr.rel target = $region3
  $region8: #{msconv2d_forward.3} parent=0 // loop_exit
    _

// kernel: msconv2d_forward.2
$region0: #{msconv2d_forward.2}
  #allocation0 [shape = 'u32[]', space=smem, size = 0x4, offset = 0x4, fixed_abs, tag = 'smem constant byte address 0x4 - core index']
  #allocation1 [shape = 'u32[72,128]{1,0:T(1,128)}', space=vmem, size = 0x9000, scoped, tag = 'internal scratch']
  %s0 = inlined_call_operand.vmem [shape: f32[2,1,22,16,8], index: 0, kind: input, shape index: {}]
  %s1 = inlined_call_operand.vmem [shape: f32[8,8], index: 1, kind: input, shape index: {}]
  %s2 = inlined_call_operand.vmem [shape: f32[3,9,8], index: 2, kind: input, shape index: {}]
  %s3 = inlined_call_operand.vmem [shape: f32[1,8], index: 3, kind: input, shape index: {}]
  %s4 = inlined_call_operand.vmem [shape: f32[2,16,16,8], index: 4, kind: output, shape index: {0}]
  %s5 = inlined_call_operand.vmem [shape: f32[2,1,2,8], index: 5, kind: output, shape index: {1}]
  %6 = xla_tuple %s4, %s5
  %s7 = sld [smem:[#allocation0]]
  $region57: #{msconv2d_forward.2} parent=0
    _
  %s9 = ssub.s32 1, %s7
  %s10 = scalar_select 0, %s9, %s7
  loop: start=0, step=1, limit=4
  $region2: #{msconv2d_forward.2} parent=0 // loop_pre_header
    _
  $region3: #{msconv2d_forward.2} parent=0 // loop_header
    %s12 = sphi 0, %s16
    %p13 = scmp.ge.s32.totalorder %s12, 4
    %s19 = sphi 0, %s31
    %s20 = sphi 0, %s27
    %s21 = sphi 0, %s19
    %s22 = sphi 0, %s20
    %s23 = sphi 0, %s21
    %s24 = sphi 0, %s22
    %s36 = sphi 0, %s38
    %s39 = sphi 0, %s36
    %s40 = sphi 0, %s39
    %s56 = sphi 0, %s40
    %s60 = sphi 0, %s60
    %s62 = sphi 0, %s60
    %s63 = sphi 0, %s62
    %s77 = sphi 0, %s63
    %s81 = sphi 0, %s81
    %s83 = sphi 0, %s81
    %s84 = sphi 0, %s83
    %s98 = sphi 0, %s84
    %s102 = sphi 0, %s102
    %s104 = sphi 0, %s102
    %s105 = sphi 0, %s104
    %s119 = sphi 0, %s105
    %s127 = sphi 0, %s129
    %s130 = sphi 0, %s127
    %s131 = sphi 0, %s130
    %s147 = sphi 0, %s131
    %s155 = sphi 0, %s157
    %s158 = sphi 0, %s155
    %s159 = sphi 0, %s158
    %s175 = sphi 0, %s159
  $region4: #{msconv2d_forward.2} parent=0 // loop_header_branch
    %15 = sbr.rel (%p13) target = $region8
  $region5: #{msconv2d_forward.2} parent=0 // loop_body
    %s17 = ssub.s32 %s12, 1
    %s18 = ssub.s32 %s12, 2
    %s25 = sadd.s32 1, %s20
    %p26 = scmp.ge.s32.totalorder %s25, 1
    %s27 = scalar_select %p26, 0, %s25
    %s28 = sadd.s32 1, %s19
    %s29 = scalar_select %p26, %s28, %s19
    %p30 = scmp.ge.s32.totalorder %s29, 2
    %s31 = scalar_select %p30, 0, %s29
    %s32 = ssub.s32 %s19, %s31
    %s33 = ssub.s32 %s20, %s27
    %s34 = sor.u32 %s32, %s33
    %p35 = scmp.eq.s32.totalorder %s34, 0
    %s37 = sadd.s32 %s36, 1
    %s38 = scalar_select %p35, %s36, %s37
    %p41 = pneg %p35
    %p42 = scmp.eq.s32.totalorder %s12, 1
    %p43 = por %p41, %p42
    %p44 = scmp.ne.s32.totalorder %s36, %s39
    %p45 = scmp.eq.s32.totalorder %s12, 0
    %p46 = por %p44, %p45
    %p47 = scmp.ne.s32.totalorder %s36, %s39
    %p48 = scmp.eq.s32.totalorder %s17, 1
    %p49 = por %p47, %p48
    %p50 = scmp.ne.s32.totalorder %s39, %s40
    %p51 = scmp.eq.s32.totalorder %s17, 0
    %p52 = por %p50, %p51
    %p53 = scmp.ne.s32.totalorder %s39, %s40
    %p54 = scmp.eq.s32.totalorder %s18, 1
    %p55 = por %p53, %p54
    %p57 = scmp.ne.s32.totalorder %s40, %s56
    %p58 = scmp.eq.s32.totalorder %s18, 0
    %p59 = por %p57, %p58
    %s61 = sadd.s32 %s60, 1
    %p64 = scmp.eq.s32.totalorder %s12, 1
    %p65 = scmp.ne.s32.totalorder %s60, %s62
    %p66 = scmp.eq.s32.totalorder %s12, 0
    %p67 = por %p65, %p66
    %p68 = scmp.ne.s32.totalorder %s60, %s62
    %p69 = scmp.eq.s32.totalorder %s17, 1
    %p70 = por %p68, %p69
    %p71 = scmp.ne.s32.totalorder %s62, %s63
    %p72 = scmp.eq.s32.totalorder %s17, 0
    %p73 = por %p71, %p72
    %p74 = scmp.ne.s32.totalorder %s62, %s63
    %p75 = scmp.eq.s32.totalorder %s18, 1
    %p76 = por %p74, %p75
    %p78 = scmp.ne.s32.totalorder %s63, %s77
    %p79 = scmp.eq.s32.totalorder %s18, 0
    %p80 = por %p78, %p79
    %s82 = sadd.s32 %s81, 1
    %p85 = scmp.eq.s32.totalorder %s12, 1
    %p86 = scmp.ne.s32.totalorder %s81, %s83
    %p87 = scmp.eq.s32.totalorder %s12, 0
    %p88 = por %p86, %p87
    %p89 = scmp.ne.s32.totalorder %s81, %s83
    %p90 = scmp.eq.s32.totalorder %s17, 1
    %p91 = por %p89, %p90
    %p92 = scmp.ne.s32.totalorder %s83, %s84
    %p93 = scmp.eq.s32.totalorder %s17, 0
    %p94 = por %p92, %p93
    %p95 = scmp.ne.s32.totalorder %s83, %s84
    %p96 = scmp.eq.s32.totalorder %s18, 1
    %p97 = por %p95, %p96
    %p99 = scmp.ne.s32.totalorder %s84, %s98
    %p100 = scmp.eq.s32.totalorder %s18, 0
    %p101 = por %p99, %p100
    %s103 = sadd.s32 %s102, 1
    %p106 = scmp.eq.s32.totalorder %s12, 1
    %p107 = scmp.ne.s32.totalorder %s102, %s104
    %p108 = scmp.eq.s32.totalorder %s12, 0
    %p109 = por %p107, %p108
    %p110 = scmp.ne.s32.totalorder %s102, %s104
    %p111 = scmp.eq.s32.totalorder %s17, 1
    %p112 = por %p110, %p111
    %p113 = scmp.ne.s32.totalorder %s104, %s105
    %p114 = scmp.eq.s32.totalorder %s17, 0
    %p115 = por %p113, %p114
    %p116 = scmp.ne.s32.totalorder %s104, %s105
    %p117 = scmp.eq.s32.totalorder %s18, 1
    %p118 = por %p116, %p117
    %p120 = scmp.ne.s32.totalorder %s105, %s119
    %p121 = scmp.eq.s32.totalorder %s18, 0
    %p122 = por %p120, %p121
    %s123 = ssub.s32 %s19, %s31
    %s124 = ssub.s32 %s20, %s27
    %s125 = sor.u32 %s123, %s124
    %p126 = scmp.eq.s32.totalorder %s125, 0
    %s128 = sadd.s32 %s127, 1
    %s129 = scalar_select %p126, %s127, %s128
    %p132 = pneg %p126
    %p133 = scmp.eq.s32.totalorder %s12, 1
    %p134 = por %p132, %p133
    %p135 = scmp.ne.s32.totalorder %s127, %s130
    %p136 = scmp.eq.s32.totalorder %s12, 0
    %p137 = por %p135, %p136
    %p138 = scmp.ne.s32.totalorder %s127, %s130
    %p139 = scmp.eq.s32.totalorder %s17, 1
    %p140 = por %p138, %p139
    %p141 = scmp.ne.s32.totalorder %s130, %s131
    %p142 = scmp.eq.s32.totalorder %s17, 0
    %p143 = por %p141, %p142
    %p144 = scmp.ne.s32.totalorder %s130, %s131
    %p145 = scmp.eq.s32.totalorder %s18, 1
    %p146 = por %p144, %p145
    %p148 = scmp.ne.s32.totalorder %s131, %s147
    %p149 = scmp.eq.s32.totalorder %s18, 0
    %p150 = por %p148, %p149
    %s151 = ssub.s32 %s19, %s31
    %s152 = ssub.s32 %s20, %s27
    %s153 = sor.u32 %s151, %s152
    %p154 = scmp.eq.s32.totalorder %s153, 0
    %s156 = sadd.s32 %s155, 1
    %s157 = scalar_select %p154, %s155, %s156
    %p160 = pneg %p154
    %p161 = scmp.eq.s32.totalorder %s12, 1
    %p162 = por %p160, %p161
    %p163 = scmp.ne.s32.totalorder %s155, %s158
    %p164 = scmp.eq.s32.totalorder %s12, 0
    %p165 = por %p163, %p164
    %p166 = scmp.ne.s32.totalorder %s155, %s158
    %p167 = scmp.eq.s32.totalorder %s17, 1
    %p168 = por %p166, %p167
    %p169 = scmp.ne.s32.totalorder %s158, %s159
    %p170 = scmp.eq.s32.totalorder %s17, 0
    %p171 = por %p169, %p170
    %p172 = scmp.ne.s32.totalorder %s158, %s159
    %p173 = scmp.eq.s32.totalorder %s18, 1
    %p174 = por %p172, %p173
    %p176 = scmp.ne.s32.totalorder %s159, %s175
    %p177 = scmp.eq.s32.totalorder %s18, 0
    %p178 = por %p176, %p177
    %p179 = scmp.le.s32.totalorder 1, %s12
    %p180 = scmp.lt.s32.totalorder %s12, 3
    %p181 = pnand %p179, %p180
    %p182 = pneg %p181
    // Predicated region
    $region9: #{msconv2d_forward.2} parent=5 // pred_check
      _
    $region10: #{msconv2d_forward.2} parent=5 // pred_check_branch
      %184 = sbr.rel (%p181) target = $region12
    $region11: #{msconv2d_forward.2} parent=5 // pred_region
      %s185 = ssub.s32 %s12, 1
      // Predicated region
      $region13: #{msconv2d_forward.2} parent=11 // pred_check
        %p186 = pneg %p73
      $region14: #{msconv2d_forward.2} parent=11 // pred_check_branch
        %188 = sbr.rel (%p186) target = $region16
      $region15: #{msconv2d_forward.2} parent=11 // pred_region
        _
      $region16: #{msconv2d_forward.2} parent=11 // pred_fallthru
        _
      // Predicated region
      $region17: #{msconv2d_forward.2} parent=11 // pred_check
        %p189 = pneg %p94
      $region18: #{msconv2d_forward.2} parent=11 // pred_check_branch
        %191 = sbr.rel (%p189) target = $region20
      $region19: #{msconv2d_forward.2} parent=11 // pred_region
        _
      $region20: #{msconv2d_forward.2} parent=11 // pred_fallthru
        _
      // Predicated region
      $region21: #{msconv2d_forward.2} parent=11 // pred_check
        %p192 = pneg %p115
      $region22: #{msconv2d_forward.2} parent=11 // pred_check_branch
        %194 = sbr.rel (%p192) target = $region24
      $region23: #{msconv2d_forward.2} parent=11 // pred_region
        _
      $region24: #{msconv2d_forward.2} parent=11 // pred_fallthru
        _
    $region12: #{msconv2d_forward.2} parent=5 // pred_fallthru
      _
    %p195 = scmp.lt.s32.totalorder %s12, 2
    // Predicated region
    $region25: #{msconv2d_forward.2} parent=5 // pred_check
      %p196 = pneg %p195
    $region26: #{msconv2d_forward.2} parent=5 // pred_check_branch
      %198 = sbr.rel (%p196) target = $region28
    $region27: #{msconv2d_forward.2} parent=5 // pred_region
      // Predicated region
      $region29: #{msconv2d_forward.2} parent=27 // pred_check
        %p199 = pneg %p46
      $region30: #{msconv2d_forward.2} parent=27 // pred_check_branch
        %201 = sbr.rel (%p199) target = $region32
      $region31: #{msconv2d_forward.2} parent=27 // pred_region
        %p202 = scmp.lt.s32.totalorder %s19, 1
        %s203 = scalar_select %p202, %s19, 1
        %p204 = scmp.lt.s32.totalorder %s20, 0
        %s205 = scalar_select %p204, %s20, 0
        %s206 = smul.addr %s205, 44
        %s207 = smul.addr %s203, 44
        %s208 = sadd.s32 %s206, %s207
        %s209 = smul.addr %s208, 8
        %s210 = scalar_lea.vmem %s0, %s209
      $region32: #{msconv2d_forward.2} parent=27 // pred_fallthru
        _
    $region28: #{msconv2d_forward.2} parent=5 // pred_fallthru
      _
    %p211 = scmp.le.s32.totalorder 1, %s12
    %p212 = scmp.lt.s32.totalorder %s12, 3
    %p213 = pnand %p211, %p212
    %p214 = pneg %p213
    // Predicated region
    $region33: #{msconv2d_forward.2} parent=5 // pred_check
      _
    $region34: #{msconv2d_forward.2} parent=5 // pred_check_branch
      %216 = sbr.rel (%p213) target = $region36
    $region35: #{msconv2d_forward.2} parent=5 // pred_region
      %s217 = ssub.s32 %s12, 1
      %p218 = scmp.lt.s32.totalorder %s21, 1
      %s219 = scalar_select %p218, %s21, 1
      %p220 = scmp.lt.s32.totalorder %s22, 0
      %s221 = scalar_select %p220, %s22, 0
      %s222 = smul.addr %s221, 44
      %s223 = smul.addr %s219, 44
      %s224 = sadd.s32 %s222, %s223
      %s225 = smul.addr %s224, 8
      %s226 = scalar_lea.vmem %s0, %s225
      %p227 = pneg %p52
      %p228 = pneg %p49
      %p229 = pneg %p73
      %p230 = pneg %p70
      %p231 = pneg %p94
      %p232 = pneg %p91
      %p233 = pneg %p115
      %p234 = pneg %p112
      %p235 = pneg %p143
      %p236 = pneg %p140
      %s237 = smul.u32 16, %s22
      %p238 = scmp.lt.s32.totalorder %s21, 1
      %s239 = scalar_select %p238, %s21, 1
      %p240 = scmp.lt.s32.totalorder %s237, 15
      %s241 = scalar_select %p240, %s237, 15
      %s242 = smul.addr %s241, 2
      %s243 = smul.addr %s239, 32
      %s244 = sadd.s32 %s242, %s243
      %s245 = smul.addr %s244, 8
      %s246 = scalar_lea.vmem %s4, %s245
      %p247 = pneg %p171
      %p248 = pneg %p168
      %p249 = scmp.lt.s32.totalorder %s21, 1
      %s250 = scalar_select %p249, %s21, 1
      %p251 = scmp.lt.s32.totalorder %s22, 0
      %s252 = scalar_select %p251, %s22, 0
      %s253 = sadd.s32 %s252, %s250
      %s254 = smul.addr %s253, 2
      %s255 = scalar_lea.vmem %s5, %s254
      %p256 = scmp.lt.s32.totalorder %s21, 1
      %s257 = scalar_select %p256, %s21, 1
      %p258 = scmp.lt.s32.totalorder %s22, 0
      %s259 = scalar_select %p258, %s22, 0
      %s260 = smul.addr %s259, 44
      %s261 = smul.addr %s257, 44
      %s262 = sadd.s32 %s260, %s261
      %s263 = smul.addr %s262, 8
      %s264 = scalar_lea.vmem %s0, %s263
      %s265 = smul.u32 16, %s22
      %p266 = scmp.lt.s32.totalorder %s21, 1
      %s267 = scalar_select %p266, %s21, 1
      %p268 = scmp.lt.s32.totalorder %s265, 15
      %s269 = scalar_select %p268, %s265, 15
      %s270 = smul.addr %s269, 2
      %s271 = smul.addr %s267, 32
      %s272 = sadd.s32 %s270, %s271
      %s273 = smul.addr %s272, 8
      %s274 = scalar_lea.vmem %s4, %s273
      %s275 = smul.u32 16, %s22
      %p276 = scmp.lt.s32.totalorder %s21, 1
      %s277 = scalar_select %p276, %s21, 1
      %p278 = scmp.lt.s32.totalorder %s22, 0
      %s279 = scalar_select %p278, %s22, 0
      %s280 = sadd.s32 %s279, %s277
      %s281 = smul.addr %s280, 2
      %s282 = scalar_lea.vmem %s5, %s281
      %v283 = vld [vmem:[%s264] sm:$0xff]
      %v284 = vld [vmem:[%s264 + $0x8] sm:$0xff]
      %v285 = vld [vmem:[%s264 + $0x10] sm:$0xff]
      %v286 = vld [vmem:[%s264 + $0x18] sm:$0xff]
      %v287 = vld [vmem:[%s264 + $0x20] sm:$0xff]
      %v288 = vld [vmem:[%s264 + $0x28] sm:$0xff]
      %v289 = vld [vmem:[%s264 + $0x30] sm:$0xff]
      %v290 = vld [vmem:[%s264 + $0x38] sm:$0xff]
      %v291 = vld [vmem:[%s264 + $0x40] sm:$0xff]
      %v292 = vld [vmem:[%s264 + $0x48] sm:$0xff]
      %v293 = vld [vmem:[%s264 + $0x50] sm:$0xff]
      %v294 = vld [vmem:[%s264 + $0x58] sm:$0xff]
      %v295 = vld [vmem:[%s264 + $0x60] sm:$0xff]
      %v296 = vld [vmem:[%s264 + $0x68] sm:$0xff]
      %v297 = vld [vmem:[%s264 + $0x70] sm:$0xff]
      %v298 = vld [vmem:[%s264 + $0x78] sm:$0xff]
      %v299 = vld [vmem:[%s264 + $0x80] sm:$0xff]
      %v300 = vld [vmem:[%s264 + $0x88] sm:$0xff]
      %v301 = vld [vmem:[%s264 + $0x90] sm:$0xff]
      %v302 = vld [vmem:[%s264 + $0x98] sm:$0xff]
      %v303 = vld [vmem:[%s264 + $0xa0] sm:$0xff]
      %v304 = vld [vmem:[%s264 + $0xa8] sm:$0xff]
      %v305 = vld [vmem:[%s264 + $0xb0] sm:$0xff]
      %v306 = vld [vmem:[%s264 + $0xb8] sm:$0xff]
      %v307 = vld [vmem:[%s264 + $0xc0] sm:$0xff]
      %v308 = vld [vmem:[%s264 + $0xc8] sm:$0xff]
      %v309 = vld [vmem:[%s264 + $0xd0] sm:$0xff]
      %v310 = vld [vmem:[%s264 + $0xd8] sm:$0xff]
      %v311 = vld [vmem:[%s264 + $0xe0] sm:$0xff]
      %v312 = vld [vmem:[%s264 + $0xe8] sm:$0xff]
      %v313 = vld [vmem:[%s264 + $0xf0] sm:$0xff]
      %v314 = vld [vmem:[%s264 + $0xf8] sm:$0xff]
      %v315 = vld [vmem:[%s264 + $0x100] sm:$0xff]
      %v316 = vld [vmem:[%s264 + $0x108] sm:$0xff]
      %v317 = vld [vmem:[%s264 + $0x110] sm:$0xff]
      %v318 = vld [vmem:[%s264 + $0x118] sm:$0xff]
      %v319 = vld [vmem:[%s264 + $0x120] sm:$0xff]
      %v320 = vld [vmem:[%s264 + $0x128] sm:$0xff]
      %v321 = vld [vmem:[%s264 + $0x130] sm:$0xff]
      %v322 = vld [vmem:[%s264 + $0x138] sm:$0xff]
      %v323 = vld [vmem:[%s264 + $0x140] sm:$0xff]
      %v324 = vld [vmem:[%s264 + $0x148] sm:$0xff]
      %v325 = vld [vmem:[%s264 + $0x150] sm:$0xff]
      %v326 = vld [vmem:[%s264 + $0x158] sm:$0xff]
      %v327 = vld [vmem:[%s1] sm:$0xff]
      %vm328 = vcmask 64512
      %v330 = vsel %vm328, %v289, 0
      %v333 = vsel %vm328, %v290, 0
      %v336 = vsel %vm328, %v291, 0
      %v339 = vsel %vm328, %v292, 0
      %v342 = vsel %vm328, %v293, 0
      %v345 = vsel %vm328, %v294, 0
      %v348 = vsel %vm328, %v295, 0
      %v351 = vsel %vm328, %v296, 0
      %v354 = vsel %vm328, %v297, 0
      %v357 = vsel %vm328, %v298, 0
      %v360 = vsel %vm328, %v299, 0
      %v363 = vsel %vm328, %v300, 0
      %v366 = vsel %vm328, %v301, 0
      %v369 = vsel %vm328, %v302, 0
      %v372 = vsel %vm328, %v303, 0
      %v375 = vsel %vm328, %v304, 0
      %v378 = vsel %vm328, %v305, 0
      %v381 = vsel %vm328, %v306, 0
      %v384 = vsel %vm328, %v307, 0
      %v387 = vsel %vm328, %v308, 0
      %v390 = vsel %vm328, %v309, 0
      %v393 = vsel %vm328, %v310, 0
      %v396 = vsel %vm328, %v311, 0
      %v399 = vsel %vm328, %v312, 0
      %v402 = vsel %vm328, %v313, 0
      %v405 = vsel %vm328, %v314, 0
      %v408 = vsel %vm328, %v315, 0
      %v411 = vsel %vm328, %v316, 0
      %v414 = vsel %vm328, %v317, 0
      %v417 = vsel %vm328, %v318, 0
      %v420 = vsel %vm328, %v319, 0
      %v423 = vsel %vm328, %v320, 0
      %425 = vmatpush.msra.mxu0 0.0
      %426 = vmatpush.msra.mxu0 0.0
      %427 = vmatpush.msra.mxu0 0.0
      %428 = vmatpush.msra.mxu0 0.0
      %429 = vmatpush.msra.mxu0 0.0
      %430 = vmatpush.msra.mxu0 0.0
      %431 = vmatpush.msra.mxu0 0.0
      %432 = vmatpush.msra.mxu0 0.0
      %433 = vmatpush.msra.mxu0 0.0
      %434 = vmatpush.msra.mxu0 0.0
      %435 = vmatpush.msra.mxu0 0.0
      %436 = vmatpush.msra.mxu0 0.0
      %437 = vmatpush.msra.mxu0 0.0
      %438 = vmatpush.msra.mxu0 0.0
      %439 = vmatpush.msra.mxu0 0.0
      %440 = vmatpush.msra.mxu0 %v327
      %441 = vmatmul.f32.gmra.mxu0 %v330
      %v442 = vpop.f32.mrf.mxu0
      %v443 = vadd.f32 0.0, %v442
      %444 = vmatmul.f32.gmra.mxu0 %v333
      %v445 = vpop.f32.mrf.mxu0
      %v446 = vadd.f32 0.0, %v445
      %447 = vmatmul.f32.gmra.mxu0 %v336
      %v448 = vpop.f32.mrf.mxu0
      %v449 = vadd.f32 0.0, %v448
      %450 = vmatmul.f32.gmra.mxu0 %v339
      %v451 = vpop.f32.mrf.mxu0
      %v452 = vadd.f32 0.0, %v451
      %453 = vmatmul.f32.gmra.mxu0 %v342
      %v454 = vpop.f32.mrf.mxu0
      %v455 = vadd.f32 0.0, %v454
      %456 = vmatmul.f32.gmra.mxu0 %v345
      %v457 = vpop.f32.mrf.mxu0
      %v458 = vadd.f32 0.0, %v457
      %459 = vmatmul.f32.gmra.mxu0 %v348
      %v460 = vpop.f32.mrf.mxu0
      %v461 = vadd.f32 0.0, %v460
      %462 = vmatmul.f32.gmra.mxu0 %v351
      %v463 = vpop.f32.mrf.mxu0
      %v464 = vadd.f32 0.0, %v463
      %465 = vmatmul.f32.gmra.mxu0 %v354
      %v466 = vpop.f32.mrf.mxu0
      %v467 = vadd.f32 0.0, %v466
      %468 = vmatmul.f32.gmra.mxu0 %v357
      %v469 = vpop.f32.mrf.mxu0
      %v470 = vadd.f32 0.0, %v469
      %471 = vmatmul.f32.gmra.mxu0 %v360
      %v472 = vpop.f32.mrf.mxu0
      %v473 = vadd.f32 0.0, %v472
      %474 = vmatmul.f32.gmra.mxu0 %v363
      %v475 = vpop.f32.mrf.mxu0
      %v476 = vadd.f32 0.0, %v475
      %477 = vmatmul.f32.gmra.mxu0 %v366
      %v478 = vpop.f32.mrf.mxu0
      %v479 = vadd.f32 0.0, %v478
      %480 = vmatmul.f32.gmra.mxu0 %v369
      %v481 = vpop.f32.mrf.mxu0
      %v482 = vadd.f32 0.0, %v481
      %483 = vmatmul.f32.gmra.mxu0 %v372
      %v484 = vpop.f32.mrf.mxu0
      %v485 = vadd.f32 0.0, %v484
      %486 = vmatmul.f32.gmra.mxu0 %v375
      %v487 = vpop.f32.mrf.mxu0
      %v488 = vadd.f32 0.0, %v487
      %489 = vmatmul.f32.gmra.mxu0 %v378
      %v490 = vpop.f32.mrf.mxu0
      %v491 = vadd.f32 0.0, %v490
      %492 = vmatmul.f32.gmra.mxu0 %v381
      %v493 = vpop.f32.mrf.mxu0
      %v494 = vadd.f32 0.0, %v493
      %495 = vmatmul.f32.gmra.mxu0 %v384
      %v496 = vpop.f32.mrf.mxu0
      %v497 = vadd.f32 0.0, %v496
      %498 = vmatmul.f32.gmra.mxu0 %v387
      %v499 = vpop.f32.mrf.mxu0
      %v500 = vadd.f32 0.0, %v499
      %501 = vmatmul.f32.gmra.mxu0 %v390
      %v502 = vpop.f32.mrf.mxu0
      %v503 = vadd.f32 0.0, %v502
      %504 = vmatmul.f32.gmra.mxu0 %v393
      %v505 = vpop.f32.mrf.mxu0
      %v506 = vadd.f32 0.0, %v505
      %507 = vmatmul.f32.gmra.mxu0 %v396
      %v508 = vpop.f32.mrf.mxu0
      %v509 = vadd.f32 0.0, %v508
      %510 = vmatmul.f32.gmra.mxu0 %v399
      %v511 = vpop.f32.mrf.mxu0
      %v512 = vadd.f32 0.0, %v511
      %513 = vmatmul.f32.gmra.mxu0 %v402
      %v514 = vpop.f32.mrf.mxu0
      %v515 = vadd.f32 0.0, %v514
      %516 = vmatmul.f32.gmra.mxu0 %v405
      %v517 = vpop.f32.mrf.mxu0
      %v518 = vadd.f32 0.0, %v517
      %519 = vmatmul.f32.gmra.mxu0 %v408
      %v520 = vpop.f32.mrf.mxu0
      %v521 = vadd.f32 0.0, %v520
      %522 = vmatmul.f32.gmra.mxu0 %v411
      %v523 = vpop.f32.mrf.mxu0
      %v524 = vadd.f32 0.0, %v523
      %525 = vmatmul.f32.gmra.mxu0 %v414
      %v526 = vpop.f32.mrf.mxu0
      %v527 = vadd.f32 0.0, %v526
      %528 = vmatmul.f32.gmra.mxu0 %v417
      %v529 = vpop.f32.mrf.mxu0
      %v530 = vadd.f32 0.0, %v529
      %531 = vmatmul.f32.gmra.mxu0 %v420
      %v532 = vpop.f32.mrf.mxu0
      %v533 = vadd.f32 0.0, %v532
      %534 = vmatmul.f32.gmra.mxu0 %v423
      %v535 = vpop.f32.mrf.mxu0
      %v536 = vadd.f32 0.0, %v535
      %537 = vdwg.mxu0
      %v538 = vlaneseq
      %v539 = vshrl.u32 %v538, 7
      %v540 = vadd.s32 %v539, 8
      %v541 = vrot.slane %v283, 5
      %v542 = vrot.slane %v285, 5
      %v543 = vrot.slane %v287, 5
      %v544 = vrot.slane %v289, 5
      %v545 = vrot.slane %v291, 5
      %v546 = vrot.slane %v293, 5
      %v547 = vrot.slane %v295, 5
      %v548 = vrot.slane %v297, 5
      %v549 = vrot.slane %v299, 5
      %v550 = vrot.slane %v301, 5
      %v551 = vrot.slane %v303, 5
      %v552 = vrot.slane %v305, 5
      %v553 = vrot.slane %v307, 5
      %v554 = vrot.slane %v309, 5
      %v555 = vrot.slane %v311, 5
      %v556 = vrot.slane %v313, 5
      %v557 = vrot.slane %v315, 5
      %v558 = vrot.slane %v317, 5
      %v559 = vrot.slane %v319, 5
      %v560 = vrot.slane %v321, 5
      %v561 = vrot.slane %v323, 5
      %v562 = vrot.slane %v325, 5
      %v563 = vrot.slane %v284, 5
      %v564 = vrot.slane %v286, 5
      %v565 = vrot.slane %v288, 5
      %v566 = vrot.slane %v290, 5
      %v567 = vrot.slane %v292, 5
      %v568 = vrot.slane %v294, 5
      %v569 = vrot.slane %v296, 5
      %v570 = vrot.slane %v298, 5
      %v571 = vrot.slane %v300, 5
      %v572 = vrot.slane %v302, 5
      %v573 = vrot.slane %v304, 5
      %v574 = vrot.slane %v306, 5
      %v575 = vrot.slane %v308, 5
      %v576 = vrot.slane %v310, 5
      %v577 = vrot.slane %v312, 5
      %v578 = vrot.slane %v314, 5
      %v579 = vrot.slane %v316, 5
      %v580 = vrot.slane %v318, 5
      %v581 = vrot.slane %v320, 5
      %v582 = vrot.slane %v322, 5
      %v583 = vrot.slane %v324, 5
      %v584 = vrot.slane %v326, 5
      %vm585 = vcmp.lt.s32.totalorder %v539, 3
      %v586 = vsel %vm585, %v541, %v563
      %v587 = vsel %vm585, %v542, %v564
      %v588 = vsel %vm585, %v543, %v565
      %v589 = vsel %vm585, %v544, %v566
      %v590 = vsel %vm585, %v545, %v567
      %v591 = vsel %vm585, %v546, %v568
      %v592 = vsel %vm585, %v547, %v569
      %v593 = vsel %vm585, %v548, %v570
      %v594 = vsel %vm585, %v549, %v571
      %v595 = vsel %vm585, %v550, %v572
      %v596 = vsel %vm585, %v551, %v573
      %v597 = vsel %vm585, %v552, %v574
      %v598 = vsel %vm585, %v553, %v575
      %v599 = vsel %vm585, %v554, %v576
      %v600 = vsel %vm585, %v555, %v577
      %v601 = vsel %vm585, %v556, %v578
      %v602 = vsel %vm585, %v557, %v579
      %v603 = vsel %vm585, %v558, %v580
      %v604 = vsel %vm585, %v559, %v581
      %v605 = vsel %vm585, %v560, %v582
      %v606 = vsel %vm585, %v561, %v583
      %v607 = vsel %vm585, %v562, %v584
      %v608 = vsel %vm585, %v563, %v541
      %v609 = vsel %vm585, %v564, %v542
      %v610 = vsel %vm585, %v565, %v543
      %v611 = vsel %vm585, %v566, %v544
      %v612 = vsel %vm585, %v567, %v545
      %v613 = vsel %vm585, %v568, %v546
      %v614 = vsel %vm585, %v569, %v547
      %v615 = vsel %vm585, %v570, %v548
      %v616 = vsel %vm585, %v571, %v549
      %v617 = vsel %vm585, %v572, %v550
      %v618 = vsel %vm585, %v573, %v551
      %v619 = vsel %vm585, %v574, %v552
      %v620 = vsel %vm585, %v575, %v553
      %v621 = vsel %vm585, %v576, %v554
      %v622 = vsel %vm585, %v577, %v555
      %v623 = vsel %vm585, %v578, %v556
      %v624 = vsel %vm585, %v579, %v557
      %v625 = vsel %vm585, %v580, %v558
      %v626 = vsel %vm585, %v581, %v559
      %v627 = vsel %vm585, %v582, %v560
      %v628 = vsel %vm585, %v583, %v561
      %v629 = vsel %vm585, %v584, %v562
      %v630 = vadd.s32 %v539, 4294967293
      %v631 = vadd.s32 %v540, 4294967293
      %vm632 = vcmp.ge.s32.totalorder %v630, 0
      %vm633 = vcmp.ge.s32.totalorder %v631, 0
      %vm634 = vcmp.lt.s32.totalorder %v630, 16
      %vm635 = vcmp.lt.s32.totalorder %v631, 16
      %vm636 = vmand %vm632, %vm634
      %vm637 = vmand %vm633, %vm635
      %v638 = vsel %vm636, %v608, 0.0
      %v639 = vsel %vm637, %v586, 0.0
      %v640 = vsel %vm636, %v609, 0.0
      %v641 = vsel %vm637, %v587, 0.0
      %v642 = vsel %vm636, %v610, 0.0
      %v643 = vsel %vm637, %v588, 0.0
      %v644 = vsel %vm636, %v611, 0.0
      %v645 = vsel %vm637, %v589, 0.0
      %v646 = vsel %vm636, %v612, 0.0
      %v647 = vsel %vm637, %v590, 0.0
      %v648 = vsel %vm636, %v613, 0.0
      %v649 = vsel %vm637, %v591, 0.0
      %v650 = vsel %vm636, %v614, 0.0
      %v651 = vsel %vm637, %v592, 0.0
      %v652 = vsel %vm636, %v615, 0.0
      %v653 = vsel %vm637, %v593, 0.0
      %v654 = vsel %vm636, %v616, 0.0
      %v655 = vsel %vm637, %v594, 0.0
      %v656 = vsel %vm636, %v617, 0.0
      %v657 = vsel %vm637, %v595, 0.0
      %v658 = vsel %vm636, %v618, 0.0
      %v659 = vsel %vm637, %v596, 0.0
      %v660 = vsel %vm636, %v619, 0.0
      %v661 = vsel %vm637, %v597, 0.0
      %v662 = vsel %vm636, %v620, 0.0
      %v663 = vsel %vm637, %v598, 0.0
      %v664 = vsel %vm636, %v621, 0.0
      %v665 = vsel %vm637, %v599, 0.0
      %v666 = vsel %vm636, %v622, 0.0
      %v667 = vsel %vm637, %v600, 0.0
      %v668 = vsel %vm636, %v623, 0.0
      %v669 = vsel %vm637, %v601, 0.0
      %v670 = vsel %vm636, %v624, 0.0
      %v671 = vsel %vm637, %v602, 0.0
      %v672 = vsel %vm636, %v625, 0.0
      %v673 = vsel %vm637, %v603, 0.0
      %v674 = vsel %vm636, %v626, 0.0
      %v675 = vsel %vm637, %v604, 0.0
      %v676 = vsel %vm636, %v627, 0.0
      %v677 = vsel %vm637, %v605, 0.0
      %v678 = vsel %vm636, %v628, 0.0
      %v679 = vsel %vm637, %v606, 0.0
      %v680 = vsel %vm636, %v629, 0.0
      %v681 = vsel %vm637, %v607, 0.0
      %s682 = scalar_lea.vmem %s2, 32
      %v683 = vld [vmem:[%s682] sm:$0x1]
      %v684 = vperm.slane %v683, 0
      %v685 = vmul.f32 %v638, %v684
      %v686 = vmul.f32 %v639, %v684
      %v687 = vmul.f32 %v640, %v684
      %v688 = vmul.f32 %v641, %v684
      %v689 = vmul.f32 %v642, %v684
      %v690 = vmul.f32 %v643, %v684
      %v691 = vmul.f32 %v644, %v684
      %v692 = vmul.f32 %v645, %v684
      %v693 = vmul.f32 %v646, %v684
      %v694 = vmul.f32 %v647, %v684
      %v695 = vmul.f32 %v648, %v684
      %v696 = vmul.f32 %v649, %v684
      %v697 = vmul.f32 %v650, %v684
      %v698 = vmul.f32 %v651, %v684
      %v699 = vmul.f32 %v652, %v684
      %v700 = vmul.f32 %v653, %v684
      %v701 = vmul.f32 %v654, %v684
      %v702 = vmul.f32 %v655, %v684
      %v703 = vmul.f32 %v656, %v684
      %v704 = vmul.f32 %v657, %v684
      %v705 = vmul.f32 %v658, %v684
      %v706 = vmul.f32 %v659, %v684
      %v707 = vmul.f32 %v660, %v684
      %v708 = vmul.f32 %v661, %v684
      %v709 = vmul.f32 %v662, %v684
      %v710 = vmul.f32 %v663, %v684
      %v711 = vmul.f32 %v664, %v684
      %v712 = vmul.f32 %v665, %v684
      %v713 = vmul.f32 %v666, %v684
      %v714 = vmul.f32 %v667, %v684
      %v715 = vmul.f32 %v668, %v684
      %v716 = vmul.f32 %v669, %v684
      %v717 = vadd.f32 %v685, 0.0
      %v718 = vadd.f32 %v686, 0.0
      %v719 = vadd.f32 %v687, 0.0
      %v720 = vadd.f32 %v688, 0.0
      %v721 = vadd.f32 %v689, 0.0
      %v722 = vadd.f32 %v690, 0.0
      %v723 = vadd.f32 %v691, 0.0
      %v724 = vadd.f32 %v692, 0.0
      %v725 = vadd.f32 %v693, 0.0
      %v726 = vadd.f32 %v694, 0.0
      %v727 = vadd.f32 %v695, 0.0
      %v728 = vadd.f32 %v696, 0.0
      %v729 = vadd.f32 %v697, 0.0
      %v730 = vadd.f32 %v698, 0.0
      %v731 = vadd.f32 %v699, 0.0
      %v732 = vadd.f32 %v700, 0.0
      %v733 = vadd.f32 %v701, 0.0
      %v734 = vadd.f32 %v702, 0.0
      %v735 = vadd.f32 %v703, 0.0
      %v736 = vadd.f32 %v704, 0.0
      %v737 = vadd.f32 %v705, 0.0
      %v738 = vadd.f32 %v706, 0.0
      %v739 = vadd.f32 %v707, 0.0
      %v740 = vadd.f32 %v708, 0.0
      %v741 = vadd.f32 %v709, 0.0
      %v742 = vadd.f32 %v710, 0.0
      %v743 = vadd.f32 %v711, 0.0
      %v744 = vadd.f32 %v712, 0.0
      %v745 = vadd.f32 %v713, 0.0
      %v746 = vadd.f32 %v714, 0.0
      %v747 = vadd.f32 %v715, 0.0
      %v748 = vadd.f32 %v716, 0.0
      %v749 = vld [vmem:[%s682 + $0x3] sm:$0x1]
      %v750 = vperm.slane %v749, 0
      %v751 = vmul.f32 %v644, %v750
      %v752 = vmul.f32 %v645, %v750
      %v753 = vmul.f32 %v646, %v750
      %v754 = vmul.f32 %v647, %v750
      %v755 = vmul.f32 %v648, %v750
      %v756 = vmul.f32 %v649, %v750
      %v757 = vmul.f32 %v650, %v750
      %v758 = vmul.f32 %v651, %v750
      %v759 = vmul.f32 %v652, %v750
      %v760 = vmul.f32 %v653, %v750
      %v761 = vmul.f32 %v654, %v750
      %v762 = vmul.f32 %v655, %v750
      %v763 = vmul.f32 %v656, %v750
      %v764 = vmul.f32 %v657, %v750
      %v765 = vmul.f32 %v658, %v750
      %v766 = vmul.f32 %v659, %v750
      %v767 = vmul.f32 %v660, %v750
      %v768 = vmul.f32 %v661, %v750
      %v769 = vmul.f32 %v662, %v750
      %v770 = vmul.f32 %v663, %v750
      %v771 = vmul.f32 %v664, %v750
      %v772 = vmul.f32 %v665, %v750
      %v773 = vmul.f32 %v666, %v750
      %v774 = vmul.f32 %v667, %v750
      %v775 = vmul.f32 %v668, %v750
      %v776 = vmul.f32 %v669, %v750
      %v777 = vmul.f32 %v670, %v750
      %v778 = vmul.f32 %v671, %v750
      %v779 = vmul.f32 %v672, %v750
      %v780 = vmul.f32 %v673, %v750
      %v781 = vmul.f32 %v674, %v750
      %v782 = vmul.f32 %v675, %v750
      %v783 = vadd.f32 %v717, %v751
      %v784 = vadd.f32 %v718, %v752
      %v785 = vadd.f32 %v719, %v753
      %v786 = vadd.f32 %v720, %v754
      %v787 = vadd.f32 %v721, %v755
      %v788 = vadd.f32 %v722, %v756
      %v789 = vadd.f32 %v723, %v757
      %v790 = vadd.f32 %v724, %v758
      %v791 = vadd.f32 %v725, %v759
      %v792 = vadd.f32 %v726, %v760
      %v793 = vadd.f32 %v727, %v761
      %v794 = vadd.f32 %v728, %v762
      %v795 = vadd.f32 %v729, %v763
      %v796 = vadd.f32 %v730, %v764
      %v797 = vadd.f32 %v731, %v765
      %v798 = vadd.f32 %v732, %v766
      %v799 = vadd.f32 %v733, %v767
      %v800 = vadd.f32 %v734, %v768
      %v801 = vadd.f32 %v735, %v769
      %v802 = vadd.f32 %v736, %v770
      %v803 = vadd.f32 %v737, %v771
      %v804 = vadd.f32 %v738, %v772
      %v805 = vadd.f32 %v739, %v773
      %v806 = vadd.f32 %v740, %v774
      %v807 = vadd.f32 %v741, %v775
      %v808 = vadd.f32 %v742, %v776
      %v809 = vadd.f32 %v743, %v777
      %v810 = vadd.f32 %v744, %v778
      %v811 = vadd.f32 %v745, %v779
      %v812 = vadd.f32 %v746, %v780
      %v813 = vadd.f32 %v747, %v781
      %v814 = vadd.f32 %v748, %v782
      %v815 = vld [vmem:[%s682 + $0x6] sm:$0x1]
      %v816 = vperm.slane %v815, 0
      %v817 = vmul.f32 %v650, %v816
      %v818 = vmul.f32 %v651, %v816
      %v819 = vmul.f32 %v652, %v816
      %v820 = vmul.f32 %v653, %v816
      %v821 = vmul.f32 %v654, %v816
      %v822 = vmul.f32 %v655, %v816
      %v823 = vmul.f32 %v656, %v816
      %v824 = vmul.f32 %v657, %v816
      %v825 = vmul.f32 %v658, %v816
      %v826 = vmul.f32 %v659, %v816
      %v827 = vmul.f32 %v660, %v816
      %v828 = vmul.f32 %v661, %v816
      %v829 = vmul.f32 %v662, %v816
      %v830 = vmul.f32 %v663, %v816
      %v831 = vmul.f32 %v664, %v816
      %v832 = vmul.f32 %v665, %v816
      %v833 = vmul.f32 %v666, %v816
      %v834 = vmul.f32 %v667, %v816
      %v835 = vmul.f32 %v668, %v816
      %v836 = vmul.f32 %v669, %v816
      %v837 = vmul.f32 %v670, %v816
      %v838 = vmul.f32 %v671, %v816
      %v839 = vmul.f32 %v672, %v816
      %v840 = vmul.f32 %v673, %v816
      %v841 = vmul.f32 %v674, %v816
      %v842 = vmul.f32 %v675, %v816
      %v843 = vmul.f32 %v676, %v816
      %v844 = vmul.f32 %v677, %v816
      %v845 = vmul.f32 %v678, %v816
      %v846 = vmul.f32 %v679, %v816
      %v847 = vmul.f32 %v680, %v816
      %v848 = vmul.f32 %v681, %v816
      %v849 = vadd.f32 %v783, %v817
      %v850 = vadd.f32 %v784, %v818
      %v851 = vadd.f32 %v785, %v819
      %v852 = vadd.f32 %v786, %v820
      %v853 = vadd.f32 %v787, %v821
      %v854 = vadd.f32 %v788, %v822
      %v855 = vadd.f32 %v789, %v823
      %v856 = vadd.f32 %v790, %v824
      %v857 = vadd.f32 %v791, %v825
      %v858 = vadd.f32 %v792, %v826
      %v859 = vadd.f32 %v793, %v827
      %v860 = vadd.f32 %v794, %v828
      %v861 = vadd.f32 %v795, %v829
      %v862 = vadd.f32 %v796, %v830
      %v863 = vadd.f32 %v797, %v831
      %v864 = vadd.f32 %v798, %v832
      %v865 = vadd.f32 %v799, %v833
      %v866 = vadd.f32 %v800, %v834
      %v867 = vadd.f32 %v801, %v835
      %v868 = vadd.f32 %v802, %v836
      %v869 = vadd.f32 %v803, %v837
      %v870 = vadd.f32 %v804, %v838
      %v871 = vadd.f32 %v805, %v839
      %v872 = vadd.f32 %v806, %v840
      %v873 = vadd.f32 %v807, %v841
      %v874 = vadd.f32 %v808, %v842
      %v875 = vadd.f32 %v809, %v843
      %v876 = vadd.f32 %v810, %v844
      %v877 = vadd.f32 %v811, %v845
      %v878 = vadd.f32 %v812, %v846
      %v879 = vadd.f32 %v813, %v847
      %v880 = vadd.f32 %v814, %v848
      %v881 = vrot.slane %v285, 6
      %v882 = vrot.slane %v287, 6
      %v883 = vrot.slane %v289, 6
      %v884 = vrot.slane %v291, 6
      %v885 = vrot.slane %v293, 6
      %v886 = vrot.slane %v295, 6
      %v887 = vrot.slane %v297, 6
      %v888 = vrot.slane %v299, 6
      %v889 = vrot.slane %v301, 6
      %v890 = vrot.slane %v303, 6
      %v891 = vrot.slane %v305, 6
      %v892 = vrot.slane %v307, 6
      %v893 = vrot.slane %v309, 6
      %v894 = vrot.slane %v311, 6
      %v895 = vrot.slane %v313, 6
      %v896 = vrot.slane %v315, 6
      %v897 = vrot.slane %v317, 6
      %v898 = vrot.slane %v319, 6
      %v899 = vrot.slane %v321, 6
      %v900 = vrot.slane %v323, 6
      %v901 = vrot.slane %v286, 6
      %v902 = vrot.slane %v288, 6
      %v903 = vrot.slane %v290, 6
      %v904 = vrot.slane %v292, 6
      %v905 = vrot.slane %v294, 6
      %v906 = vrot.slane %v296, 6
      %v907 = vrot.slane %v298, 6
      %v908 = vrot.slane %v300, 6
      %v909 = vrot.slane %v302, 6
      %v910 = vrot.slane %v304, 6
      %v911 = vrot.slane %v306, 6
      %v912 = vrot.slane %v308, 6
      %v913 = vrot.slane %v310, 6
      %v914 = vrot.slane %v312, 6
      %v915 = vrot.slane %v314, 6
      %v916 = vrot.slane %v316, 6
      %v917 = vrot.slane %v318, 6
      %v918 = vrot.slane %v320, 6
      %v919 = vrot.slane %v322, 6
      %v920 = vrot.slane %v324, 6
      %vm921 = vcmp.lt.s32.totalorder %v539, 2
      %v922 = vsel %vm921, %v881, %v901
      %v923 = vsel %vm921, %v882, %v902
      %v924 = vsel %vm921, %v883, %v903
      %v925 = vsel %vm921, %v884, %v904
      %v926 = vsel %vm921, %v885, %v905
      %v927 = vsel %vm921, %v886, %v906
      %v928 = vsel %vm921, %v887, %v907
      %v929 = vsel %vm921, %v888, %v908
      %v930 = vsel %vm921, %v889, %v909
      %v931 = vsel %vm921, %v890, %v910
      %v932 = vsel %vm921, %v891, %v911
      %v933 = vsel %vm921, %v892, %v912
      %v934 = vsel %vm921, %v893, %v913
      %v935 = vsel %vm921, %v894, %v914
      %v936 = vsel %vm921, %v895, %v915
      %v937 = vsel %vm921, %v896, %v916
      %v938 = vsel %vm921, %v897, %v917
      %v939 = vsel %vm921, %v898, %v918
      %v940 = vsel %vm921, %v899, %v919
      %v941 = vsel %vm921, %v900, %v920
      %v942 = vsel %vm921, %v901, %v881
      %v943 = vsel %vm921, %v902, %v882
      %v944 = vsel %vm921, %v903, %v883
      %v945 = vsel %vm921, %v904, %v884
      %v946 = vsel %vm921, %v905, %v885
      %v947 = vsel %vm921, %v906, %v886
      %v948 = vsel %vm921, %v907, %v887
      %v949 = vsel %vm921, %v908, %v888
      %v950 = vsel %vm921, %v909, %v889
      %v951 = vsel %vm921, %v910, %v890
      %v952 = vsel %vm921, %v911, %v891
      %v953 = vsel %vm921, %v912, %v892
      %v954 = vsel %vm921, %v913, %v893
      %v955 = vsel %vm921, %v914, %v894
      %v956 = vsel %vm921, %v915, %v895
      %v957 = vsel %vm921, %v916, %v896
      %v958 = vsel %vm921, %v917, %v897
      %v959 = vsel %vm921, %v918, %v898
      %v960 = vsel %vm921, %v919, %v899
      %v961 = vsel %vm921, %v920, %v900
      %v962 = vadd.s32 %v539, 4294967294
      %v963 = vadd.s32 %v540, 4294967294
      %vm964 = vcmp.ge.s32.totalorder %v962, 0
      %vm965 = vcmp.ge.s32.totalorder %v963, 0
      %vm966 = vcmp.lt.s32.totalorder %v962, 16
      %vm967 = vcmp.lt.s32.totalorder %v963, 16
      %vm968 = vmand %vm964, %vm966
      %vm969 = vmand %vm965, %vm967
      %v970 = vsel %vm968, %v942, 0.0
      %v971 = vsel %vm969, %v922, 0.0
      %v972 = vsel %vm968, %v943, 0.0
      %v973 = vsel %vm969, %v923, 0.0
      %v974 = vsel %vm968, %v944, 0.0
      %v975 = vsel %vm969, %v924, 0.0
      %v976 = vsel %vm968, %v945, 0.0
      %v977 = vsel %vm969, %v925, 0.0
      %v978 = vsel %vm968, %v946, 0.0
      %v979 = vsel %vm969, %v926, 0.0
      %v980 = vsel %vm968, %v947, 0.0
      %v981 = vsel %vm969, %v927, 0.0
      %v982 = vsel %vm968, %v948, 0.0
      %v983 = vsel %vm969, %v928, 0.0
      %v984 = vsel %vm968, %v949, 0.0
      %v985 = vsel %vm969, %v929, 0.0
      %v986 = vsel %vm968, %v950, 0.0
      %v987 = vsel %vm969, %v930, 0.0
      %v988 = vsel %vm968, %v951, 0.0
      %v989 = vsel %vm969, %v931, 0.0
      %v990 = vsel %vm968, %v952, 0.0
      %v991 = vsel %vm969, %v932, 0.0
      %v992 = vsel %vm968, %v953, 0.0
      %v993 = vsel %vm969, %v933, 0.0
      %v994 = vsel %vm968, %v954, 0.0
      %v995 = vsel %vm969, %v934, 0.0
      %v996 = vsel %vm968, %v955, 0.0
      %v997 = vsel %vm969, %v935, 0.0
      %v998 = vsel %vm968, %v956, 0.0
      %v999 = vsel %vm969, %v936, 0.0
      %v1000 = vsel %vm968, %v957, 0.0
      %v1001 = vsel %vm969, %v937, 0.0
      %v1002 = vsel %vm968, %v958, 0.0
      %v1003 = vsel %vm969, %v938, 0.0
      %v1004 = vsel %vm968, %v959, 0.0
      %v1005 = vsel %vm969, %v939, 0.0
      %v1006 = vsel %vm968, %v960, 0.0
      %v1007 = vsel %vm969, %v940, 0.0
      %v1008 = vsel %vm968, %v961, 0.0
      %v1009 = vsel %vm969, %v941, 0.0
      %s1010 = scalar_lea.vmem %s2, 16
      %v1011 = vld [vmem:[%s1010] sm:$0x1]
      %v1012 = vperm.slane %v1011, 0
      %v1013 = vmul.f32 %v970, %v1012
      %v1014 = vmul.f32 %v971, %v1012
      %v1015 = vmul.f32 %v972, %v1012
      %v1016 = vmul.f32 %v973, %v1012
      %v1017 = vmul.f32 %v974, %v1012
      %v1018 = vmul.f32 %v975, %v1012
      %v1019 = vmul.f32 %v976, %v1012
      %v1020 = vmul.f32 %v977, %v1012
      %v1021 = vmul.f32 %v978, %v1012
      %v1022 = vmul.f32 %v979, %v1012
      %v1023 = vmul.f32 %v980, %v1012
      %v1024 = vmul.f32 %v981, %v1012
      %v1025 = vmul.f32 %v982, %v1012
      %v1026 = vmul.f32 %v983, %v1012
      %v1027 = vmul.f32 %v984, %v1012
      %v1028 = vmul.f32 %v985, %v1012
      %v1029 = vmul.f32 %v986, %v1012
      %v1030 = vmul.f32 %v987, %v1012
      %v1031 = vmul.f32 %v988, %v1012
      %v1032 = vmul.f32 %v989, %v1012
      %v1033 = vmul.f32 %v990, %v1012
      %v1034 = vmul.f32 %v991, %v1012
      %v1035 = vmul.f32 %v992, %v1012
      %v1036 = vmul.f32 %v993, %v1012
      %v1037 = vmul.f32 %v994, %v1012
      %v1038 = vmul.f32 %v995, %v1012
      %v1039 = vmul.f32 %v996, %v1012
      %v1040 = vmul.f32 %v997, %v1012
      %v1041 = vmul.f32 %v998, %v1012
      %v1042 = vmul.f32 %v999, %v1012
      %v1043 = vmul.f32 %v1000, %v1012
      %v1044 = vmul.f32 %v1001, %v1012
      %v1045 = vadd.f32 %v849, %v1013
      %v1046 = vadd.f32 %v850, %v1014
      %v1047 = vadd.f32 %v851, %v1015
      %v1048 = vadd.f32 %v852, %v1016
      %v1049 = vadd.f32 %v853, %v1017
      %v1050 = vadd.f32 %v854, %v1018
      %v1051 = vadd.f32 %v855, %v1019
      %v1052 = vadd.f32 %v856, %v1020
      %v1053 = vadd.f32 %v857, %v1021
      %v1054 = vadd.f32 %v858, %v1022
      %v1055 = vadd.f32 %v859, %v1023
      %v1056 = vadd.f32 %v860, %v1024
      %v1057 = vadd.f32 %v861, %v1025
      %v1058 = vadd.f32 %v862, %v1026
      %v1059 = vadd.f32 %v863, %v1027
      %v1060 = vadd.f32 %v864, %v1028
      %v1061 = vadd.f32 %v865, %v1029
      %v1062 = vadd.f32 %v866, %v1030
      %v1063 = vadd.f32 %v867, %v1031
      %v1064 = vadd.f32 %v868, %v1032
      %v1065 = vadd.f32 %v869, %v1033
      %v1066 = vadd.f32 %v870, %v1034
      %v1067 = vadd.f32 %v871, %v1035
      %v1068 = vadd.f32 %v872, %v1036
      %v1069 = vadd.f32 %v873, %v1037
      %v1070 = vadd.f32 %v874, %v1038
      %v1071 = vadd.f32 %v875, %v1039
      %v1072 = vadd.f32 %v876, %v1040
      %v1073 = vadd.f32 %v877, %v1041
      %v1074 = vadd.f32 %v878, %v1042
      %v1075 = vadd.f32 %v879, %v1043
      %v1076 = vadd.f32 %v880, %v1044
      %v1077 = vld [vmem:[%s1010 + $0x3] sm:$0x1]
      %v1078 = vperm.slane %v1077, 0
      %v1079 = vmul.f32 %v974, %v1078
      %v1080 = vmul.f32 %v975, %v1078
      %v1081 = vmul.f32 %v976, %v1078
      %v1082 = vmul.f32 %v977, %v1078
      %v1083 = vmul.f32 %v978, %v1078
      %v1084 = vmul.f32 %v979, %v1078
      %v1085 = vmul.f32 %v980, %v1078
      %v1086 = vmul.f32 %v981, %v1078
      %v1087 = vmul.f32 %v982, %v1078
      %v1088 = vmul.f32 %v983, %v1078
      %v1089 = vmul.f32 %v984, %v1078
      %v1090 = vmul.f32 %v985, %v1078
      %v1091 = vmul.f32 %v986, %v1078
      %v1092 = vmul.f32 %v987, %v1078
      %v1093 = vmul.f32 %v988, %v1078
      %v1094 = vmul.f32 %v989, %v1078
      %v1095 = vmul.f32 %v990, %v1078
      %v1096 = vmul.f32 %v991, %v1078
      %v1097 = vmul.f32 %v992, %v1078
      %v1098 = vmul.f32 %v993, %v1078
      %v1099 = vmul.f32 %v994, %v1078
      %v1100 = vmul.f32 %v995, %v1078
      %v1101 = vmul.f32 %v996, %v1078
      %v1102 = vmul.f32 %v997, %v1078
      %v1103 = vmul.f32 %v998, %v1078
      %v1104 = vmul.f32 %v999, %v1078
      %v1105 = vmul.f32 %v1000, %v1078
      %v1106 = vmul.f32 %v1001, %v1078
      %v1107 = vmul.f32 %v1002, %v1078
      %v1108 = vmul.f32 %v1003, %v1078
      %v1109 = vmul.f32 %v1004, %v1078
      %v1110 = vmul.f32 %v1005, %v1078
      %v1111 = vadd.f32 %v1045, %v1079
      %v1112 = vadd.f32 %v1046, %v1080
      %v1113 = vadd.f32 %v1047, %v1081
      %v1114 = vadd.f32 %v1048, %v1082
      %v1115 = vadd.f32 %v1049, %v1083
      %v1116 = vadd.f32 %v1050, %v1084
      %v1117 = vadd.f32 %v1051, %v1085
      %v1118 = vadd.f32 %v1052, %v1086
      %v1119 = vadd.f32 %v1053, %v1087
      %v1120 = vadd.f32 %v1054, %v1088
      %v1121 = vadd.f32 %v1055, %v1089
      %v1122 = vadd.f32 %v1056, %v1090
      %v1123 = vadd.f32 %v1057, %v1091
      %v1124 = vadd.f32 %v1058, %v1092
      %v1125 = vadd.f32 %v1059, %v1093
      %v1126 = vadd.f32 %v1060, %v1094
      %v1127 = vadd.f32 %v1061, %v1095
      %v1128 = vadd.f32 %v1062, %v1096
      %v1129 = vadd.f32 %v1063, %v1097
      %v1130 = vadd.f32 %v1064, %v1098
      %v1131 = vadd.f32 %v1065, %v1099
      %v1132 = vadd.f32 %v1066, %v1100
      %v1133 = vadd.f32 %v1067, %v1101
      %v1134 = vadd.f32 %v1068, %v1102
      %v1135 = vadd.f32 %v1069, %v1103
      %v1136 = vadd.f32 %v1070, %v1104
      %v1137 = vadd.f32 %v1071, %v1105
      %v1138 = vadd.f32 %v1072, %v1106
      %v1139 = vadd.f32 %v1073, %v1107
      %v1140 = vadd.f32 %v1074, %v1108
      %v1141 = vadd.f32 %v1075, %v1109
      %v1142 = vadd.f32 %v1076, %v1110
      %v1143 = vld [vmem:[%s1010 + $0x6] sm:$0x1]
      %v1144 = vperm.slane %v1143, 0
      %v1145 = vmul.f32 %v978, %v1144
      %v1146 = vmul.f32 %v979, %v1144
      %v1147 = vmul.f32 %v980, %v1144
      %v1148 = vmul.f32 %v981, %v1144
      %v1149 = vmul.f32 %v982, %v1144
      %v1150 = vmul.f32 %v983, %v1144
      %v1151 = vmul.f32 %v984, %v1144
      %v1152 = vmul.f32 %v985, %v1144
      %v1153 = vmul.f32 %v986, %v1144
      %v1154 = vmul.f32 %v987, %v1144
      %v1155 = vmul.f32 %v988, %v1144
      %v1156 = vmul.f32 %v989, %v1144
      %v1157 = vmul.f32 %v990, %v1144
      %v1158 = vmul.f32 %v991, %v1144
      %v1159 = vmul.f32 %v992, %v1144
      %v1160 = vmul.f32 %v993, %v1144
      %v1161 = vmul.f32 %v994, %v1144
      %v1162 = vmul.f32 %v995, %v1144
      %v1163 = vmul.f32 %v996, %v1144
      %v1164 = vmul.f32 %v997, %v1144
      %v1165 = vmul.f32 %v998, %v1144
      %v1166 = vmul.f32 %v999, %v1144
      %v1167 = vmul.f32 %v1000, %v1144
      %v1168 = vmul.f32 %v1001, %v1144
      %v1169 = vmul.f32 %v1002, %v1144
      %v1170 = vmul.f32 %v1003, %v1144
      %v1171 = vmul.f32 %v1004, %v1144
      %v1172 = vmul.f32 %v1005, %v1144
      %v1173 = vmul.f32 %v1006, %v1144
      %v1174 = vmul.f32 %v1007, %v1144
      %v1175 = vmul.f32 %v1008, %v1144
      %v1176 = vmul.f32 %v1009, %v1144
      %v1177 = vadd.f32 %v1111, %v1145
      %v1178 = vadd.f32 %v1112, %v1146
      %v1179 = vadd.f32 %v1113, %v1147
      %v1180 = vadd.f32 %v1114, %v1148
      %v1181 = vadd.f32 %v1115, %v1149
      %v1182 = vadd.f32 %v1116, %v1150
      %v1183 = vadd.f32 %v1117, %v1151
      %v1184 = vadd.f32 %v1118, %v1152
      %v1185 = vadd.f32 %v1119, %v1153
      %v1186 = vadd.f32 %v1120, %v1154
      %v1187 = vadd.f32 %v1121, %v1155
      %v1188 = vadd.f32 %v1122, %v1156
      %v1189 = vadd.f32 %v1123, %v1157
      %v1190 = vadd.f32 %v1124, %v1158
      %v1191 = vadd.f32 %v1125, %v1159
      %v1192 = vadd.f32 %v1126, %v1160
      %v1193 = vadd.f32 %v1127, %v1161
      %v1194 = vadd.f32 %v1128, %v1162
      %v1195 = vadd.f32 %v1129, %v1163
      %v1196 = vadd.f32 %v1130, %v1164
      %v1197 = vadd.f32 %v1131, %v1165
      %v1198 = vadd.f32 %v1132, %v1166
      %v1199 = vadd.f32 %v1133, %v1167
      %v1200 = vadd.f32 %v1134, %v1168
      %v1201 = vadd.f32 %v1135, %v1169
      %v1202 = vadd.f32 %v1136, %v1170
      %v1203 = vadd.f32 %v1137, %v1171
      %v1204 = vadd.f32 %v1138, %v1172
      %v1205 = vadd.f32 %v1139, %v1173
      %v1206 = vadd.f32 %v1140, %v1174
      %v1207 = vadd.f32 %v1141, %v1175
      %v1208 = vadd.f32 %v1142, %v1176
      %v1209 = vrot.slane %v287, 7
      %v1210 = vrot.slane %v289, 7
      %v1211 = vrot.slane %v291, 7
      %v1212 = vrot.slane %v293, 7
      %v1213 = vrot.slane %v295, 7
      %v1214 = vrot.slane %v297, 7
      %v1215 = vrot.slane %v299, 7
      %v1216 = vrot.slane %v301, 7
      %v1217 = vrot.slane %v303, 7
      %v1218 = vrot.slane %v305, 7
      %v1219 = vrot.slane %v307, 7
      %v1220 = vrot.slane %v309, 7
      %v1221 = vrot.slane %v311, 7
      %v1222 = vrot.slane %v313, 7
      %v1223 = vrot.slane %v315, 7
      %v1224 = vrot.slane %v317, 7
      %v1225 = vrot.slane %v319, 7
      %v1226 = vrot.slane %v321, 7
      %v1227 = vrot.slane %v288, 7
      %v1228 = vrot.slane %v290, 7
      %v1229 = vrot.slane %v292, 7
      %v1230 = vrot.slane %v294, 7
      %v1231 = vrot.slane %v296, 7
      %v1232 = vrot.slane %v298, 7
      %v1233 = vrot.slane %v300, 7
      %v1234 = vrot.slane %v302, 7
      %v1235 = vrot.slane %v304, 7
      %v1236 = vrot.slane %v306, 7
      %v1237 = vrot.slane %v308, 7
      %v1238 = vrot.slane %v310, 7
      %v1239 = vrot.slane %v312, 7
      %v1240 = vrot.slane %v314, 7
      %v1241 = vrot.slane %v316, 7
      %v1242 = vrot.slane %v318, 7
      %v1243 = vrot.slane %v320, 7
      %v1244 = vrot.slane %v322, 7
      %vm1245 = vcmp.lt.s32.totalorder %v539, 1
      %v1246 = vsel %vm1245, %v1209, %v1227
      %v1247 = vsel %vm1245, %v1210, %v1228
      %v1248 = vsel %vm1245, %v1211, %v1229
      %v1249 = vsel %vm1245, %v1212, %v1230
      %v1250 = vsel %vm1245, %v1213, %v1231
      %v1251 = vsel %vm1245, %v1214, %v1232
      %v1252 = vsel %vm1245, %v1215, %v1233
      %v1253 = vsel %vm1245, %v1216, %v1234
      %v1254 = vsel %vm1245, %v1217, %v1235
      %v1255 = vsel %vm1245, %v1218, %v1236
      %v1256 = vsel %vm1245, %v1219, %v1237
      %v1257 = vsel %vm1245, %v1220, %v1238
      %v1258 = vsel %vm1245, %v1221, %v1239
      %v1259 = vsel %vm1245, %v1222, %v1240
      %v1260 = vsel %vm1245, %v1223, %v1241
      %v1261 = vsel %vm1245, %v1224, %v1242
      %v1262 = vsel %vm1245, %v1225, %v1243
      %v1263 = vsel %vm1245, %v1226, %v1244
      %v1264 = vsel %vm1245, %v1227, %v1209
      %v1265 = vsel %vm1245, %v1228, %v1210
      %v1266 = vsel %vm1245, %v1229, %v1211
      %v1267 = vsel %vm1245, %v1230, %v1212
      %v1268 = vsel %vm1245, %v1231, %v1213
      %v1269 = vsel %vm1245, %v1232, %v1214
      %v1270 = vsel %vm1245, %v1233, %v1215
      %v1271 = vsel %vm1245, %v1234, %v1216
      %v1272 = vsel %vm1245, %v1235, %v1217
      %v1273 = vsel %vm1245, %v1236, %v1218
      %v1274 = vsel %vm1245, %v1237, %v1219
      %v1275 = vsel %vm1245, %v1238, %v1220
      %v1276 = vsel %vm1245, %v1239, %v1221
      %v1277 = vsel %vm1245, %v1240, %v1222
      %v1278 = vsel %vm1245, %v1241, %v1223
      %v1279 = vsel %vm1245, %v1242, %v1224
      %v1280 = vsel %vm1245, %v1243, %v1225
      %v1281 = vsel %vm1245, %v1244, %v1226
      %v1282 = vadd.s32 %v539, 4294967295
      %v1283 = vadd.s32 %v540, 4294967295
      %vm1284 = vcmp.ge.s32.totalorder %v1282, 0
      %vm1285 = vcmp.ge.s32.totalorder %v1283, 0
      %vm1286 = vcmp.lt.s32.totalorder %v1282, 16
      %vm1287 = vcmp.lt.s32.totalorder %v1283, 16
      %vm1288 = vmand %vm1284, %vm1286
      %vm1289 = vmand %vm1285, %vm1287
      %v1290 = vsel %vm1288, %v1264, 0.0
      %v1291 = vsel %vm1289, %v1246, 0.0
      %v1292 = vsel %vm1288, %v1265, 0.0
      %v1293 = vsel %vm1289, %v1247, 0.0
      %v1294 = vsel %vm1288, %v1266, 0.0
      %v1295 = vsel %vm1289, %v1248, 0.0
      %v1296 = vsel %vm1288, %v1267, 0.0
      %v1297 = vsel %vm1289, %v1249, 0.0
      %v1298 = vsel %vm1288, %v1268, 0.0
      %v1299 = vsel %vm1289, %v1250, 0.0
      %v1300 = vsel %vm1288, %v1269, 0.0
      %v1301 = vsel %vm1289, %v1251, 0.0
      %v1302 = vsel %vm1288, %v1270, 0.0
      %v1303 = vsel %vm1289, %v1252, 0.0
      %v1304 = vsel %vm1288, %v1271, 0.0
      %v1305 = vsel %vm1289, %v1253, 0.0
      %v1306 = vsel %vm1288, %v1272, 0.0
      %v1307 = vsel %vm1289, %v1254, 0.0
      %v1308 = vsel %vm1288, %v1273, 0.0
      %v1309 = vsel %vm1289, %v1255, 0.0
      %v1310 = vsel %vm1288, %v1274, 0.0
      %v1311 = vsel %vm1289, %v1256, 0.0
      %v1312 = vsel %vm1288, %v1275, 0.0
      %v1313 = vsel %vm1289, %v1257, 0.0
      %v1314 = vsel %vm1288, %v1276, 0.0
      %v1315 = vsel %vm1289, %v1258, 0.0
      %v1316 = vsel %vm1288, %v1277, 0.0
      %v1317 = vsel %vm1289, %v1259, 0.0
      %v1318 = vsel %vm1288, %v1278, 0.0
      %v1319 = vsel %vm1289, %v1260, 0.0
      %v1320 = vsel %vm1288, %v1279, 0.0
      %v1321 = vsel %vm1289, %v1261, 0.0
      %v1322 = vsel %vm1288, %v1280, 0.0
      %v1323 = vsel %vm1289, %v1262, 0.0
      %v1324 = vsel %vm1288, %v1281, 0.0
      %v1325 = vsel %vm1289, %v1263, 0.0
      %v1326 = vld [vmem:[%s2] sm:$0x1]
      %v1327 = vperm.slane %v1326, 0
      %v1328 = vmul.f32 %v1290, %v1327
      %v1329 = vmul.f32 %v1291, %v1327
      %v1330 = vmul.f32 %v1292, %v1327
      %v1331 = vmul.f32 %v1293, %v1327
      %v1332 = vmul.f32 %v1294, %v1327
      %v1333 = vmul.f32 %v1295, %v1327
      %v1334 = vmul.f32 %v1296, %v1327
      %v1335 = vmul.f32 %v1297, %v1327
      %v1336 = vmul.f32 %v1298, %v1327
      %v1337 = vmul.f32 %v1299, %v1327
      %v1338 = vmul.f32 %v1300, %v1327
      %v1339 = vmul.f32 %v1301, %v1327
      %v1340 = vmul.f32 %v1302, %v1327
      %v1341 = vmul.f32 %v1303, %v1327
      %v1342 = vmul.f32 %v1304, %v1327
      %v1343 = vmul.f32 %v1305, %v1327
      %v1344 = vmul.f32 %v1306, %v1327
      %v1345 = vmul.f32 %v1307, %v1327
      %v1346 = vmul.f32 %v1308, %v1327
      %v1347 = vmul.f32 %v1309, %v1327
      %v1348 = vmul.f32 %v1310, %v1327
      %v1349 = vmul.f32 %v1311, %v1327
      %v1350 = vmul.f32 %v1312, %v1327
      %v1351 = vmul.f32 %v1313, %v1327
      %v1352 = vmul.f32 %v1314, %v1327
      %v1353 = vmul.f32 %v1315, %v1327
      %v1354 = vmul.f32 %v1316, %v1327
      %v1355 = vmul.f32 %v1317, %v1327
      %v1356 = vmul.f32 %v1318, %v1327
      %v1357 = vmul.f32 %v1319, %v1327
      %v1358 = vmul.f32 %v1320, %v1327
      %v1359 = vmul.f32 %v1321, %v1327
      %v1360 = vadd.f32 %v1177, %v1328
      %v1361 = vadd.f32 %v1178, %v1329
      %v1362 = vadd.f32 %v1179, %v1330
      %v1363 = vadd.f32 %v1180, %v1331
      %v1364 = vadd.f32 %v1181, %v1332
      %v1365 = vadd.f32 %v1182, %v1333
      %v1366 = vadd.f32 %v1183, %v1334
      %v1367 = vadd.f32 %v1184, %v1335
      %v1368 = vadd.f32 %v1185, %v1336
      %v1369 = vadd.f32 %v1186, %v1337
      %v1370 = vadd.f32 %v1187, %v1338
      %v1371 = vadd.f32 %v1188, %v1339
      %v1372 = vadd.f32 %v1189, %v1340
      %v1373 = vadd.f32 %v1190, %v1341
      %v1374 = vadd.f32 %v1191, %v1342
      %v1375 = vadd.f32 %v1192, %v1343
      %v1376 = vadd.f32 %v1193, %v1344
      %v1377 = vadd.f32 %v1194, %v1345
      %v1378 = vadd.f32 %v1195, %v1346
      %v1379 = vadd.f32 %v1196, %v1347
      %v1380 = vadd.f32 %v1197, %v1348
      %v1381 = vadd.f32 %v1198, %v1349
      %v1382 = vadd.f32 %v1199, %v1350
      %v1383 = vadd.f32 %v1200, %v1351
      %v1384 = vadd.f32 %v1201, %v1352
      %v1385 = vadd.f32 %v1202, %v1353
      %v1386 = vadd.f32 %v1203, %v1354
      %v1387 = vadd.f32 %v1204, %v1355
      %v1388 = vadd.f32 %v1205, %v1356
      %v1389 = vadd.f32 %v1206, %v1357
      %v1390 = vadd.f32 %v1207, %v1358
      %v1391 = vadd.f32 %v1208, %v1359
      %v1392 = vld [vmem:[%s2 + $0x3] sm:$0x1]
      %v1393 = vperm.slane %v1392, 0
      %v1394 = vmul.f32 %v1292, %v1393
      %v1395 = vmul.f32 %v1293, %v1393
      %v1396 = vmul.f32 %v1294, %v1393
      %v1397 = vmul.f32 %v1295, %v1393
      %v1398 = vmul.f32 %v1296, %v1393
      %v1399 = vmul.f32 %v1297, %v1393
      %v1400 = vmul.f32 %v1298, %v1393
      %v1401 = vmul.f32 %v1299, %v1393
      %v1402 = vmul.f32 %v1300, %v1393
      %v1403 = vmul.f32 %v1301, %v1393
      %v1404 = vmul.f32 %v1302, %v1393
      %v1405 = vmul.f32 %v1303, %v1393
      %v1406 = vmul.f32 %v1304, %v1393
      %v1407 = vmul.f32 %v1305, %v1393
      %v1408 = vmul.f32 %v1306, %v1393
      %v1409 = vmul.f32 %v1307, %v1393
      %v1410 = vmul.f32 %v1308, %v1393
      %v1411 = vmul.f32 %v1309, %v1393
      %v1412 = vmul.f32 %v1310, %v1393
      %v1413 = vmul.f32 %v1311, %v1393
      %v1414 = vmul.f32 %v1312, %v1393
      %v1415 = vmul.f32 %v1313, %v1393
      %v1416 = vmul.f32 %v1314, %v1393
      %v1417 = vmul.f32 %v1315, %v1393
      %v1418 = vmul.f32 %v1316, %v1393
      %v1419 = vmul.f32 %v1317, %v1393
      %v1420 = vmul.f32 %v1318, %v1393
      %v1421 = vmul.f32 %v1319, %v1393
      %v1422 = vmul.f32 %v1320, %v1393
      %v1423 = vmul.f32 %v1321, %v1393
      %v1424 = vmul.f32 %v1322, %v1393
      %v1425 = vmul.f32 %v1323, %v1393
      %v1426 = vadd.f32 %v1360, %v1394
      %v1427 = vadd.f32 %v1361, %v1395
      %v1428 = vadd.f32 %v1362, %v1396
      %v1429 = vadd.f32 %v1363, %v1397
      %v1430 = vadd.f32 %v1364, %v1398
      %v1431 = vadd.f32 %v1365, %v1399
      %v1432 = vadd.f32 %v1366, %v1400
      %v1433 = vadd.f32 %v1367, %v1401
      %v1434 = vadd.f32 %v1368, %v1402
      %v1435 = vadd.f32 %v1369, %v1403
      %v1436 = vadd.f32 %v1370, %v1404
      %v1437 = vadd.f32 %v1371, %v1405
      %v1438 = vadd.f32 %v1372, %v1406
      %v1439 = vadd.f32 %v1373, %v1407
      %v1440 = vadd.f32 %v1374, %v1408
      %v1441 = vadd.f32 %v1375, %v1409
      %v1442 = vadd.f32 %v1376, %v1410
      %v1443 = vadd.f32 %v1377, %v1411
      %v1444 = vadd.f32 %v1378, %v1412
      %v1445 = vadd.f32 %v1379, %v1413
      %v1446 = vadd.f32 %v1380, %v1414
      %v1447 = vadd.f32 %v1381, %v1415
      %v1448 = vadd.f32 %v1382, %v1416
      %v1449 = vadd.f32 %v1383, %v1417
      %v1450 = vadd.f32 %v1384, %v1418
      %v1451 = vadd.f32 %v1385, %v1419
      %v1452 = vadd.f32 %v1386, %v1420
      %v1453 = vadd.f32 %v1387, %v1421
      %v1454 = vadd.f32 %v1388, %v1422
      %v1455 = vadd.f32 %v1389, %v1423
      %v1456 = vadd.f32 %v1390, %v1424
      %v1457 = vadd.f32 %v1391, %v1425
      %v1458 = vld [vmem:[%s2 + $0x6] sm:$0x1]
      %v1459 = vperm.slane %v1458, 0
      %v1460 = vmul.f32 %v1294, %v1459
      %v1461 = vmul.f32 %v1295, %v1459
      %v1462 = vmul.f32 %v1296, %v1459
      %v1463 = vmul.f32 %v1297, %v1459
      %v1464 = vmul.f32 %v1298, %v1459
      %v1465 = vmul.f32 %v1299, %v1459
      %v1466 = vmul.f32 %v1300, %v1459
      %v1467 = vmul.f32 %v1301, %v1459
      %v1468 = vmul.f32 %v1302, %v1459
      %v1469 = vmul.f32 %v1303, %v1459
      %v1470 = vmul.f32 %v1304, %v1459
      %v1471 = vmul.f32 %v1305, %v1459
      %v1472 = vmul.f32 %v1306, %v1459
      %v1473 = vmul.f32 %v1307, %v1459
      %v1474 = vmul.f32 %v1308, %v1459
      %v1475 = vmul.f32 %v1309, %v1459
      %v1476 = vmul.f32 %v1310, %v1459
      %v1477 = vmul.f32 %v1311, %v1459
      %v1478 = vmul.f32 %v1312, %v1459
      %v1479 = vmul.f32 %v1313, %v1459
      %v1480 = vmul.f32 %v1314, %v1459
      %v1481 = vmul.f32 %v1315, %v1459
      %v1482 = vmul.f32 %v1316, %v1459
      %v1483 = vmul.f32 %v1317, %v1459
      %v1484 = vmul.f32 %v1318, %v1459
      %v1485 = vmul.f32 %v1319, %v1459
      %v1486 = vmul.f32 %v1320, %v1459
      %v1487 = vmul.f32 %v1321, %v1459
      %v1488 = vmul.f32 %v1322, %v1459
      %v1489 = vmul.f32 %v1323, %v1459
      %v1490 = vmul.f32 %v1324, %v1459
      %v1491 = vmul.f32 %v1325, %v1459
      %v1492 = vadd.f32 %v1426, %v1460
      %v1493 = vadd.f32 %v1427, %v1461
      %v1494 = vadd.f32 %v1428, %v1462
      %v1495 = vadd.f32 %v1429, %v1463
      %v1496 = vadd.f32 %v1430, %v1464
      %v1497 = vadd.f32 %v1431, %v1465
      %v1498 = vadd.f32 %v1432, %v1466
      %v1499 = vadd.f32 %v1433, %v1467
      %v1500 = vadd.f32 %v1434, %v1468
      %v1501 = vadd.f32 %v1435, %v1469
      %v1502 = vadd.f32 %v1436, %v1470
      %v1503 = vadd.f32 %v1437, %v1471
      %v1504 = vadd.f32 %v1438, %v1472
      %v1505 = vadd.f32 %v1439, %v1473
      %v1506 = vadd.f32 %v1440, %v1474
      %v1507 = vadd.f32 %v1441, %v1475
      %v1508 = vadd.f32 %v1442, %v1476
      %v1509 = vadd.f32 %v1443, %v1477
      %v1510 = vadd.f32 %v1444, %v1478
      %v1511 = vadd.f32 %v1445, %v1479
      %v1512 = vadd.f32 %v1446, %v1480
      %v1513 = vadd.f32 %v1447, %v1481
      %v1514 = vadd.f32 %v1448, %v1482
      %v1515 = vadd.f32 %v1449, %v1483
      %v1516 = vadd.f32 %v1450, %v1484
      %v1517 = vadd.f32 %v1451, %v1485
      %v1518 = vadd.f32 %v1452, %v1486
      %v1519 = vadd.f32 %v1453, %v1487
      %v1520 = vadd.f32 %v1454, %v1488
      %v1521 = vadd.f32 %v1455, %v1489
      %v1522 = vadd.f32 %v1456, %v1490
      %v1523 = vadd.f32 %v1457, %v1491
      %v1524 = vld [vmem:[%s2 + $0x1] sm:$0x1]
      %v1525 = vperm.slane %v1524, 0
      %v1526 = vmul.f32 %v287, %v1525
      %v1527 = vmul.f32 %v288, %v1525
      %v1528 = vmul.f32 %v289, %v1525
      %v1529 = vmul.f32 %v290, %v1525
      %v1530 = vmul.f32 %v291, %v1525
      %v1531 = vmul.f32 %v292, %v1525
      %v1532 = vmul.f32 %v293, %v1525
      %v1533 = vmul.f32 %v294, %v1525
      %v1534 = vmul.f32 %v295, %v1525
      %v1535 = vmul.f32 %v296, %v1525
      %v1536 = vmul.f32 %v297, %v1525
      %v1537 = vmul.f32 %v298, %v1525
      %v1538 = vmul.f32 %v299, %v1525
      %v1539 = vmul.f32 %v300, %v1525
      %v1540 = vmul.f32 %v301, %v1525
      %v1541 = vmul.f32 %v302, %v1525
      %v1542 = vmul.f32 %v303, %v1525
      %v1543 = vmul.f32 %v304, %v1525
      %v1544 = vmul.f32 %v305, %v1525
      %v1545 = vmul.f32 %v306, %v1525
      %v1546 = vmul.f32 %v307, %v1525
      %v1547 = vmul.f32 %v308, %v1525
      %v1548 = vmul.f32 %v309, %v1525
      %v1549 = vmul.f32 %v310, %v1525
      %v1550 = vmul.f32 %v311, %v1525
      %v1551 = vmul.f32 %v312, %v1525
      %v1552 = vmul.f32 %v313, %v1525
      %v1553 = vmul.f32 %v314, %v1525
      %v1554 = vmul.f32 %v315, %v1525
      %v1555 = vmul.f32 %v316, %v1525
      %v1556 = vmul.f32 %v317, %v1525
      %v1557 = vmul.f32 %v318, %v1525
      %v1558 = vadd.f32 %v1492, %v1526
      %v1559 = vadd.f32 %v1493, %v1527
      %v1560 = vadd.f32 %v1494, %v1528
      %v1561 = vadd.f32 %v1495, %v1529
      %v1562 = vadd.f32 %v1496, %v1530
      %v1563 = vadd.f32 %v1497, %v1531
      %v1564 = vadd.f32 %v1498, %v1532
      %v1565 = vadd.f32 %v1499, %v1533
      %v1566 = vadd.f32 %v1500, %v1534
      %v1567 = vadd.f32 %v1501, %v1535
      %v1568 = vadd.f32 %v1502, %v1536
      %v1569 = vadd.f32 %v1503, %v1537
      %v1570 = vadd.f32 %v1504, %v1538
      %v1571 = vadd.f32 %v1505, %v1539
      %v1572 = vadd.f32 %v1506, %v1540
      %v1573 = vadd.f32 %v1507, %v1541
      %v1574 = vadd.f32 %v1508, %v1542
      %v1575 = vadd.f32 %v1509, %v1543
      %v1576 = vadd.f32 %v1510, %v1544
      %v1577 = vadd.f32 %v1511, %v1545
      %v1578 = vadd.f32 %v1512, %v1546
      %v1579 = vadd.f32 %v1513, %v1547
      %v1580 = vadd.f32 %v1514, %v1548
      %v1581 = vadd.f32 %v1515, %v1549
      %v1582 = vadd.f32 %v1516, %v1550
      %v1583 = vadd.f32 %v1517, %v1551
      %v1584 = vadd.f32 %v1518, %v1552
      %v1585 = vadd.f32 %v1519, %v1553
      %v1586 = vadd.f32 %v1520, %v1554
      %v1587 = vadd.f32 %v1521, %v1555
      %v1588 = vadd.f32 %v1522, %v1556
      %v1589 = vadd.f32 %v1523, %v1557
      %v1590 = vld [vmem:[%s2 + $0x4] sm:$0x1]
      %v1591 = vperm.slane %v1590, 0
      %v1592 = vmul.f32 %v289, %v1591
      %v1593 = vmul.f32 %v290, %v1591
      %v1594 = vmul.f32 %v291, %v1591
      %v1595 = vmul.f32 %v292, %v1591
      %v1596 = vmul.f32 %v293, %v1591
      %v1597 = vmul.f32 %v294, %v1591
      %v1598 = vmul.f32 %v295, %v1591
      %v1599 = vmul.f32 %v296, %v1591
      %v1600 = vmul.f32 %v297, %v1591
      %v1601 = vmul.f32 %v298, %v1591
      %v1602 = vmul.f32 %v299, %v1591
      %v1603 = vmul.f32 %v300, %v1591
      %v1604 = vmul.f32 %v301, %v1591
      %v1605 = vmul.f32 %v302, %v1591
      %v1606 = vmul.f32 %v303, %v1591
      %v1607 = vmul.f32 %v304, %v1591
      %v1608 = vmul.f32 %v305, %v1591
      %v1609 = vmul.f32 %v306, %v1591
      %v1610 = vmul.f32 %v307, %v1591
      %v1611 = vmul.f32 %v308, %v1591
      %v1612 = vmul.f32 %v309, %v1591
      %v1613 = vmul.f32 %v310, %v1591
      %v1614 = vmul.f32 %v311, %v1591
      %v1615 = vmul.f32 %v312, %v1591
      %v1616 = vmul.f32 %v313, %v1591
      %v1617 = vmul.f32 %v314, %v1591
      %v1618 = vmul.f32 %v315, %v1591
      %v1619 = vmul.f32 %v316, %v1591
      %v1620 = vmul.f32 %v317, %v1591
      %v1621 = vmul.f32 %v318, %v1591
      %v1622 = vmul.f32 %v319, %v1591
      %v1623 = vmul.f32 %v320, %v1591
      %v1624 = vadd.f32 %v1558, %v1592
      %v1625 = vadd.f32 %v1559, %v1593
      %v1626 = vadd.f32 %v1560, %v1594
      %v1627 = vadd.f32 %v1561, %v1595
      %v1628 = vadd.f32 %v1562, %v1596
      %v1629 = vadd.f32 %v1563, %v1597
      %v1630 = vadd.f32 %v1564, %v1598
      %v1631 = vadd.f32 %v1565, %v1599
      %v1632 = vadd.f32 %v1566, %v1600
      %v1633 = vadd.f32 %v1567, %v1601
      %v1634 = vadd.f32 %v1568, %v1602
      %v1635 = vadd.f32 %v1569, %v1603
      %v1636 = vadd.f32 %v1570, %v1604
      %v1637 = vadd.f32 %v1571, %v1605
      %v1638 = vadd.f32 %v1572, %v1606
      %v1639 = vadd.f32 %v1573, %v1607
      %v1640 = vadd.f32 %v1574, %v1608
      %v1641 = vadd.f32 %v1575, %v1609
      %v1642 = vadd.f32 %v1576, %v1610
      %v1643 = vadd.f32 %v1577, %v1611
      %v1644 = vadd.f32 %v1578, %v1612
      %v1645 = vadd.f32 %v1579, %v1613
      %v1646 = vadd.f32 %v1580, %v1614
      %v1647 = vadd.f32 %v1581, %v1615
      %v1648 = vadd.f32 %v1582, %v1616
      %v1649 = vadd.f32 %v1583, %v1617
      %v1650 = vadd.f32 %v1584, %v1618
      %v1651 = vadd.f32 %v1585, %v1619
      %v1652 = vadd.f32 %v1586, %v1620
      %v1653 = vadd.f32 %v1587, %v1621
      %v1654 = vadd.f32 %v1588, %v1622
      %v1655 = vadd.f32 %v1589, %v1623
      %v1656 = vld [vmem:[%s2 + $0x7] sm:$0x1]
      %v1657 = vperm.slane %v1656, 0
      %v1658 = vmul.f32 %v291, %v1657
      %v1659 = vmul.f32 %v292, %v1657
      %v1660 = vmul.f32 %v293, %v1657
      %v1661 = vmul.f32 %v294, %v1657
      %v1662 = vmul.f32 %v295, %v1657
      %v1663 = vmul.f32 %v296, %v1657
      %v1664 = vmul.f32 %v297, %v1657
      %v1665 = vmul.f32 %v298, %v1657
      %v1666 = vmul.f32 %v299, %v1657
      %v1667 = vmul.f32 %v300, %v1657
      %v1668 = vmul.f32 %v301, %v1657
      %v1669 = vmul.f32 %v302, %v1657
      %v1670 = vmul.f32 %v303, %v1657
      %v1671 = vmul.f32 %v304, %v1657
      %v1672 = vmul.f32 %v305, %v1657
      %v1673 = vmul.f32 %v306, %v1657
      %v1674 = vmul.f32 %v307, %v1657
      %v1675 = vmul.f32 %v308, %v1657
      %v1676 = vmul.f32 %v309, %v1657
      %v1677 = vmul.f32 %v310, %v1657
      %v1678 = vmul.f32 %v311, %v1657
      %v1679 = vmul.f32 %v312, %v1657
      %v1680 = vmul.f32 %v313, %v1657
      %v1681 = vmul.f32 %v314, %v1657
      %v1682 = vmul.f32 %v315, %v1657
      %v1683 = vmul.f32 %v316, %v1657
      %v1684 = vmul.f32 %v317, %v1657
      %v1685 = vmul.f32 %v318, %v1657
      %v1686 = vmul.f32 %v319, %v1657
      %v1687 = vmul.f32 %v320, %v1657
      %v1688 = vmul.f32 %v321, %v1657
      %v1689 = vmul.f32 %v322, %v1657
      %v1690 = vadd.f32 %v1624, %v1658
      %v1691 = vadd.f32 %v1625, %v1659
      %v1692 = vadd.f32 %v1626, %v1660
      %v1693 = vadd.f32 %v1627, %v1661
      %v1694 = vadd.f32 %v1628, %v1662
      %v1695 = vadd.f32 %v1629, %v1663
      %v1696 = vadd.f32 %v1630, %v1664
      %v1697 = vadd.f32 %v1631, %v1665
      %v1698 = vadd.f32 %v1632, %v1666
      %v1699 = vadd.f32 %v1633, %v1667
      %v1700 = vadd.f32 %v1634, %v1668
      %v1701 = vadd.f32 %v1635, %v1669
      %v1702 = vadd.f32 %v1636, %v1670
      %v1703 = vadd.f32 %v1637, %v1671
      %v1704 = vadd.f32 %v1638, %v1672
      %v1705 = vadd.f32 %v1639, %v1673
      %v1706 = vadd.f32 %v1640, %v1674
      %v1707 = vadd.f32 %v1641, %v1675
      %v1708 = vadd.f32 %v1642, %v1676
      %v1709 = vadd.f32 %v1643, %v1677
      %v1710 = vadd.f32 %v1644, %v1678
      %v1711 = vadd.f32 %v1645, %v1679
      %v1712 = vadd.f32 %v1646, %v1680
      %v1713 = vadd.f32 %v1647, %v1681
      %v1714 = vadd.f32 %v1648, %v1682
      %v1715 = vadd.f32 %v1649, %v1683
      %v1716 = vadd.f32 %v1650, %v1684
      %v1717 = vadd.f32 %v1651, %v1685
      %v1718 = vadd.f32 %v1652, %v1686
      %v1719 = vadd.f32 %v1653, %v1687
      %v1720 = vadd.f32 %v1654, %v1688
      %v1721 = vadd.f32 %v1655, %v1689
      %v1722 = vld [vmem:[%s1010 + $0x1] sm:$0x1]
      %v1723 = vperm.slane %v1722, 0
      %v1724 = vmul.f32 %v285, %v1723
      %v1725 = vmul.f32 %v286, %v1723
      %v1726 = vmul.f32 %v287, %v1723
      %v1727 = vmul.f32 %v288, %v1723
      %v1728 = vmul.f32 %v289, %v1723
      %v1729 = vmul.f32 %v290, %v1723
      %v1730 = vmul.f32 %v291, %v1723
      %v1731 = vmul.f32 %v292, %v1723
      %v1732 = vmul.f32 %v293, %v1723
      %v1733 = vmul.f32 %v294, %v1723
      %v1734 = vmul.f32 %v295, %v1723
      %v1735 = vmul.f32 %v296, %v1723
      %v1736 = vmul.f32 %v297, %v1723
      %v1737 = vmul.f32 %v298, %v1723
      %v1738 = vmul.f32 %v299, %v1723
      %v1739 = vmul.f32 %v300, %v1723
      %v1740 = vmul.f32 %v301, %v1723
      %v1741 = vmul.f32 %v302, %v1723
      %v1742 = vmul.f32 %v303, %v1723
      %v1743 = vmul.f32 %v304, %v1723
      %v1744 = vmul.f32 %v305, %v1723
      %v1745 = vmul.f32 %v306, %v1723
      %v1746 = vmul.f32 %v307, %v1723
      %v1747 = vmul.f32 %v308, %v1723
      %v1748 = vmul.f32 %v309, %v1723
      %v1749 = vmul.f32 %v310, %v1723
      %v1750 = vmul.f32 %v311, %v1723
      %v1751 = vmul.f32 %v312, %v1723
      %v1752 = vmul.f32 %v313, %v1723
      %v1753 = vmul.f32 %v314, %v1723
      %v1754 = vmul.f32 %v315, %v1723
      %v1755 = vmul.f32 %v316, %v1723
      %v1756 = vadd.f32 %v1690, %v1724
      %v1757 = vadd.f32 %v1691, %v1725
      %v1758 = vadd.f32 %v1692, %v1726
      %v1759 = vadd.f32 %v1693, %v1727
      %v1760 = vadd.f32 %v1694, %v1728
      %v1761 = vadd.f32 %v1695, %v1729
      %v1762 = vadd.f32 %v1696, %v1730
      %v1763 = vadd.f32 %v1697, %v1731
      %v1764 = vadd.f32 %v1698, %v1732
      %v1765 = vadd.f32 %v1699, %v1733
      %v1766 = vadd.f32 %v1700, %v1734
      %v1767 = vadd.f32 %v1701, %v1735
      %v1768 = vadd.f32 %v1702, %v1736
      %v1769 = vadd.f32 %v1703, %v1737
      %v1770 = vadd.f32 %v1704, %v1738
      %v1771 = vadd.f32 %v1705, %v1739
      %v1772 = vadd.f32 %v1706, %v1740
      %v1773 = vadd.f32 %v1707, %v1741
      %v1774 = vadd.f32 %v1708, %v1742
      %v1775 = vadd.f32 %v1709, %v1743
      %v1776 = vadd.f32 %v1710, %v1744
      %v1777 = vadd.f32 %v1711, %v1745
      %v1778 = vadd.f32 %v1712, %v1746
      %v1779 = vadd.f32 %v1713, %v1747
      %v1780 = vadd.f32 %v1714, %v1748
      %v1781 = vadd.f32 %v1715, %v1749
      %v1782 = vadd.f32 %v1716, %v1750
      %v1783 = vadd.f32 %v1717, %v1751
      %v1784 = vadd.f32 %v1718, %v1752
      %v1785 = vadd.f32 %v1719, %v1753
      %v1786 = vadd.f32 %v1720, %v1754
      %v1787 = vadd.f32 %v1721, %v1755
      %v1788 = vld [vmem:[%s1010 + $0x4] sm:$0x1]
      %v1789 = vperm.slane %v1788, 0
      %v1790 = vmul.f32 %v289, %v1789
      %v1791 = vmul.f32 %v290, %v1789
      %v1792 = vmul.f32 %v291, %v1789
      %v1793 = vmul.f32 %v292, %v1789
      %v1794 = vmul.f32 %v293, %v1789
      %v1795 = vmul.f32 %v294, %v1789
      %v1796 = vmul.f32 %v295, %v1789
      %v1797 = vmul.f32 %v296, %v1789
      %v1798 = vmul.f32 %v297, %v1789
      %v1799 = vmul.f32 %v298, %v1789
      %v1800 = vmul.f32 %v299, %v1789
      %v1801 = vmul.f32 %v300, %v1789
      %v1802 = vmul.f32 %v301, %v1789
      %v1803 = vmul.f32 %v302, %v1789
      %v1804 = vmul.f32 %v303, %v1789
      %v1805 = vmul.f32 %v304, %v1789
      %v1806 = vmul.f32 %v305, %v1789
      %v1807 = vmul.f32 %v306, %v1789
      %v1808 = vmul.f32 %v307, %v1789
      %v1809 = vmul.f32 %v308, %v1789
      %v1810 = vmul.f32 %v309, %v1789
      %v1811 = vmul.f32 %v310, %v1789
      %v1812 = vmul.f32 %v311, %v1789
      %v1813 = vmul.f32 %v312, %v1789
      %v1814 = vmul.f32 %v313, %v1789
      %v1815 = vmul.f32 %v314, %v1789
      %v1816 = vmul.f32 %v315, %v1789
      %v1817 = vmul.f32 %v316, %v1789
      %v1818 = vmul.f32 %v317, %v1789
      %v1819 = vmul.f32 %v318, %v1789
      %v1820 = vmul.f32 %v319, %v1789
      %v1821 = vmul.f32 %v320, %v1789
      %v1822 = vadd.f32 %v1756, %v1790
      %v1823 = vadd.f32 %v1757, %v1791
      %v1824 = vadd.f32 %v1758, %v1792
      %v1825 = vadd.f32 %v1759, %v1793
      %v1826 = vadd.f32 %v1760, %v1794
      %v1827 = vadd.f32 %v1761, %v1795
      %v1828 = vadd.f32 %v1762, %v1796
      %v1829 = vadd.f32 %v1763, %v1797
      %v1830 = vadd.f32 %v1764, %v1798
      %v1831 = vadd.f32 %v1765, %v1799
      %v1832 = vadd.f32 %v1766, %v1800
      %v1833 = vadd.f32 %v1767, %v1801
      %v1834 = vadd.f32 %v1768, %v1802
      %v1835 = vadd.f32 %v1769, %v1803
      %v1836 = vadd.f32 %v1770, %v1804
      %v1837 = vadd.f32 %v1771, %v1805
      %v1838 = vadd.f32 %v1772, %v1806
      %v1839 = vadd.f32 %v1773, %v1807
      %v1840 = vadd.f32 %v1774, %v1808
      %v1841 = vadd.f32 %v1775, %v1809
      %v1842 = vadd.f32 %v1776, %v1810
      %v1843 = vadd.f32 %v1777, %v1811
      %v1844 = vadd.f32 %v1778, %v1812
      %v1845 = vadd.f32 %v1779, %v1813
      %v1846 = vadd.f32 %v1780, %v1814
      %v1847 = vadd.f32 %v1781, %v1815
      %v1848 = vadd.f32 %v1782, %v1816
      %v1849 = vadd.f32 %v1783, %v1817
      %v1850 = vadd.f32 %v1784, %v1818
      %v1851 = vadd.f32 %v1785, %v1819
      %v1852 = vadd.f32 %v1786, %v1820
      %v1853 = vadd.f32 %v1787, %v1821
      %v1854 = vld [vmem:[%s1010 + $0x7] sm:$0x1]
      %v1855 = vperm.slane %v1854, 0
      %v1856 = vmul.f32 %v293, %v1855
      %v1857 = vmul.f32 %v294, %v1855
      %v1858 = vmul.f32 %v295, %v1855
      %v1859 = vmul.f32 %v296, %v1855
      %v1860 = vmul.f32 %v297, %v1855
      %v1861 = vmul.f32 %v298, %v1855
      %v1862 = vmul.f32 %v299, %v1855
      %v1863 = vmul.f32 %v300, %v1855
      %v1864 = vmul.f32 %v301, %v1855
      %v1865 = vmul.f32 %v302, %v1855
      %v1866 = vmul.f32 %v303, %v1855
      %v1867 = vmul.f32 %v304, %v1855
      %v1868 = vmul.f32 %v305, %v1855
      %v1869 = vmul.f32 %v306, %v1855
      %v1870 = vmul.f32 %v307, %v1855
      %v1871 = vmul.f32 %v308, %v1855
      %v1872 = vmul.f32 %v309, %v1855
      %v1873 = vmul.f32 %v310, %v1855
      %v1874 = vmul.f32 %v311, %v1855
      %v1875 = vmul.f32 %v312, %v1855
      %v1876 = vmul.f32 %v313, %v1855
      %v1877 = vmul.f32 %v314, %v1855
      %v1878 = vmul.f32 %v315, %v1855
      %v1879 = vmul.f32 %v316, %v1855
      %v1880 = vmul.f32 %v317, %v1855
      %v1881 = vmul.f32 %v318, %v1855
      %v1882 = vmul.f32 %v319, %v1855
      %v1883 = vmul.f32 %v320, %v1855
      %v1884 = vmul.f32 %v321, %v1855
      %v1885 = vmul.f32 %v322, %v1855
      %v1886 = vmul.f32 %v323, %v1855
      %v1887 = vmul.f32 %v324, %v1855
      %v1888 = vadd.f32 %v1822, %v1856
      %v1889 = vadd.f32 %v1823, %v1857
      %v1890 = vadd.f32 %v1824, %v1858
      %v1891 = vadd.f32 %v1825, %v1859
      %v1892 = vadd.f32 %v1826, %v1860
      %v1893 = vadd.f32 %v1827, %v1861
      %v1894 = vadd.f32 %v1828, %v1862
      %v1895 = vadd.f32 %v1829, %v1863
      %v1896 = vadd.f32 %v1830, %v1864
      %v1897 = vadd.f32 %v1831, %v1865
      %v1898 = vadd.f32 %v1832, %v1866
      %v1899 = vadd.f32 %v1833, %v1867
      %v1900 = vadd.f32 %v1834, %v1868
      %v1901 = vadd.f32 %v1835, %v1869
      %v1902 = vadd.f32 %v1836, %v1870
      %v1903 = vadd.f32 %v1837, %v1871
      %v1904 = vadd.f32 %v1838, %v1872
      %v1905 = vadd.f32 %v1839, %v1873
      %v1906 = vadd.f32 %v1840, %v1874
      %v1907 = vadd.f32 %v1841, %v1875
      %v1908 = vadd.f32 %v1842, %v1876
      %v1909 = vadd.f32 %v1843, %v1877
      %v1910 = vadd.f32 %v1844, %v1878
      %v1911 = vadd.f32 %v1845, %v1879
      %v1912 = vadd.f32 %v1846, %v1880
      %v1913 = vadd.f32 %v1847, %v1881
      %v1914 = vadd.f32 %v1848, %v1882
      %v1915 = vadd.f32 %v1849, %v1883
      %v1916 = vadd.f32 %v1850, %v1884
      %v1917 = vadd.f32 %v1851, %v1885
      %v1918 = vadd.f32 %v1852, %v1886
      %v1919 = vadd.f32 %v1853, %v1887
      %v1920 = vld [vmem:[%s682 + $0x1] sm:$0x1]
      %v1921 = vperm.slane %v1920, 0
      %v1922 = vmul.f32 %v283, %v1921
      %v1923 = vmul.f32 %v284, %v1921
      %v1924 = vmul.f32 %v285, %v1921
      %v1925 = vmul.f32 %v286, %v1921
      %v1926 = vmul.f32 %v287, %v1921
      %v1927 = vmul.f32 %v288, %v1921
      %v1928 = vmul.f32 %v289, %v1921
      %v1929 = vmul.f32 %v290, %v1921
      %v1930 = vmul.f32 %v291, %v1921
      %v1931 = vmul.f32 %v292, %v1921
      %v1932 = vmul.f32 %v293, %v1921
      %v1933 = vmul.f32 %v294, %v1921
      %v1934 = vmul.f32 %v295, %v1921
      %v1935 = vmul.f32 %v296, %v1921
      %v1936 = vmul.f32 %v297, %v1921
      %v1937 = vmul.f32 %v298, %v1921
      %v1938 = vmul.f32 %v299, %v1921
      %v1939 = vmul.f32 %v300, %v1921
      %v1940 = vmul.f32 %v301, %v1921
      %v1941 = vmul.f32 %v302, %v1921
      %v1942 = vmul.f32 %v303, %v1921
      %v1943 = vmul.f32 %v304, %v1921
      %v1944 = vmul.f32 %v305, %v1921
      %v1945 = vmul.f32 %v306, %v1921
      %v1946 = vmul.f32 %v307, %v1921
      %v1947 = vmul.f32 %v308, %v1921
      %v1948 = vmul.f32 %v309, %v1921
      %v1949 = vmul.f32 %v310, %v1921
      %v1950 = vmul.f32 %v311, %v1921
      %v1951 = vmul.f32 %v312, %v1921
      %v1952 = vmul.f32 %v313, %v1921
      %v1953 = vmul.f32 %v314, %v1921
      %v1954 = vadd.f32 %v1888, %v1922
      %v1955 = vadd.f32 %v1889, %v1923
      %v1956 = vadd.f32 %v1890, %v1924
      %v1957 = vadd.f32 %v1891, %v1925
      %v1958 = vadd.f32 %v1892, %v1926
      %v1959 = vadd.f32 %v1893, %v1927
      %v1960 = vadd.f32 %v1894, %v1928
      %v1961 = vadd.f32 %v1895, %v1929
      %v1962 = vadd.f32 %v1896, %v1930
      %v1963 = vadd.f32 %v1897, %v1931
      %v1964 = vadd.f32 %v1898, %v1932
      %v1965 = vadd.f32 %v1899, %v1933
      %v1966 = vadd.f32 %v1900, %v1934
      %v1967 = vadd.f32 %v1901, %v1935
      %v1968 = vadd.f32 %v1902, %v1936
      %v1969 = vadd.f32 %v1903, %v1937
      %v1970 = vadd.f32 %v1904, %v1938
      %v1971 = vadd.f32 %v1905, %v1939
      %v1972 = vadd.f32 %v1906, %v1940
      %v1973 = vadd.f32 %v1907, %v1941
      %v1974 = vadd.f32 %v1908, %v1942
      %v1975 = vadd.f32 %v1909, %v1943
      %v1976 = vadd.f32 %v1910, %v1944
      %v1977 = vadd.f32 %v1911, %v1945
      %v1978 = vadd.f32 %v1912, %v1946
      %v1979 = vadd.f32 %v1913, %v1947
      %v1980 = vadd.f32 %v1914, %v1948
      %v1981 = vadd.f32 %v1915, %v1949
      %v1982 = vadd.f32 %v1916, %v1950
      %v1983 = vadd.f32 %v1917, %v1951
      %v1984 = vadd.f32 %v1918, %v1952
      %v1985 = vadd.f32 %v1919, %v1953
      %v1986 = vld [vmem:[%s682 + $0x4] sm:$0x1]
      %v1987 = vperm.slane %v1986, 0
      %v1988 = vmul.f32 %v289, %v1987
      %v1989 = vmul.f32 %v290, %v1987
      %v1990 = vmul.f32 %v291, %v1987
      %v1991 = vmul.f32 %v292, %v1987
      %v1992 = vmul.f32 %v293, %v1987
      %v1993 = vmul.f32 %v294, %v1987
      %v1994 = vmul.f32 %v295, %v1987
      %v1995 = vmul.f32 %v296, %v1987
      %v1996 = vmul.f32 %v297, %v1987
      %v1997 = vmul.f32 %v298, %v1987
      %v1998 = vmul.f32 %v299, %v1987
      %v1999 = vmul.f32 %v300, %v1987
      %v2000 = vmul.f32 %v301, %v1987
      %v2001 = vmul.f32 %v302, %v1987
      %v2002 = vmul.f32 %v303, %v1987
      %v2003 = vmul.f32 %v304, %v1987
      %v2004 = vmul.f32 %v305, %v1987
      %v2005 = vmul.f32 %v306, %v1987
      %v2006 = vmul.f32 %v307, %v1987
      %v2007 = vmul.f32 %v308, %v1987
      %v2008 = vmul.f32 %v309, %v1987
      %v2009 = vmul.f32 %v310, %v1987
      %v2010 = vmul.f32 %v311, %v1987
      %v2011 = vmul.f32 %v312, %v1987
      %v2012 = vmul.f32 %v313, %v1987
      %v2013 = vmul.f32 %v314, %v1987
      %v2014 = vmul.f32 %v315, %v1987
      %v2015 = vmul.f32 %v316, %v1987
      %v2016 = vmul.f32 %v317, %v1987
      %v2017 = vmul.f32 %v318, %v1987
      %v2018 = vmul.f32 %v319, %v1987
      %v2019 = vmul.f32 %v320, %v1987
      %v2020 = vadd.f32 %v1954, %v1988
      %v2021 = vadd.f32 %v1955, %v1989
      %v2022 = vadd.f32 %v1956, %v1990
      %v2023 = vadd.f32 %v1957, %v1991
      %v2024 = vadd.f32 %v1958, %v1992
      %v2025 = vadd.f32 %v1959, %v1993
      %v2026 = vadd.f32 %v1960, %v1994
      %v2027 = vadd.f32 %v1961, %v1995
      %v2028 = vadd.f32 %v1962, %v1996
      %v2029 = vadd.f32 %v1963, %v1997
      %v2030 = vadd.f32 %v1964, %v1998
      %v2031 = vadd.f32 %v1965, %v1999
      %v2032 = vadd.f32 %v1966, %v2000
      %v2033 = vadd.f32 %v1967, %v2001
      %v2034 = vadd.f32 %v1968, %v2002
      %v2035 = vadd.f32 %v1969, %v2003
      %v2036 = vadd.f32 %v1970, %v2004
      %v2037 = vadd.f32 %v1971, %v2005
      %v2038 = vadd.f32 %v1972, %v2006
      %v2039 = vadd.f32 %v1973, %v2007
      %v2040 = vadd.f32 %v1974, %v2008
      %v2041 = vadd.f32 %v1975, %v2009
      %v2042 = vadd.f32 %v1976, %v2010
      %v2043 = vadd.f32 %v1977, %v2011
      %v2044 = vadd.f32 %v1978, %v2012
      %v2045 = vadd.f32 %v1979, %v2013
      %v2046 = vadd.f32 %v1980, %v2014
      %v2047 = vadd.f32 %v1981, %v2015
      %v2048 = vadd.f32 %v1982, %v2016
      %v2049 = vadd.f32 %v1983, %v2017
      %v2050 = vadd.f32 %v1984, %v2018
      %v2051 = vadd.f32 %v1985, %v2019
      %v2052 = vld [vmem:[%s682 + $0x7] sm:$0x1]
      %v2053 = vperm.slane %v2052, 0
      %v2054 = vmul.f32 %v295, %v2053
      %v2055 = vmul.f32 %v296, %v2053
      %v2056 = vmul.f32 %v297, %v2053
      %v2057 = vmul.f32 %v298, %v2053
      %v2058 = vmul.f32 %v299, %v2053
      %v2059 = vmul.f32 %v300, %v2053
      %v2060 = vmul.f32 %v301, %v2053
      %v2061 = vmul.f32 %v302, %v2053
      %v2062 = vmul.f32 %v303, %v2053
      %v2063 = vmul.f32 %v304, %v2053
      %v2064 = vmul.f32 %v305, %v2053
      %v2065 = vmul.f32 %v306, %v2053
      %v2066 = vmul.f32 %v307, %v2053
      %v2067 = vmul.f32 %v308, %v2053
      %v2068 = vmul.f32 %v309, %v2053
      %v2069 = vmul.f32 %v310, %v2053
      %v2070 = vmul.f32 %v311, %v2053
      %v2071 = vmul.f32 %v312, %v2053
      %v2072 = vmul.f32 %v313, %v2053
      %v2073 = vmul.f32 %v314, %v2053
      %v2074 = vmul.f32 %v315, %v2053
      %v2075 = vmul.f32 %v316, %v2053
      %v2076 = vmul.f32 %v317, %v2053
      %v2077 = vmul.f32 %v318, %v2053
      %v2078 = vmul.f32 %v319, %v2053
      %v2079 = vmul.f32 %v320, %v2053
      %v2080 = vmul.f32 %v321, %v2053
      %v2081 = vmul.f32 %v322, %v2053
      %v2082 = vmul.f32 %v323, %v2053
      %v2083 = vmul.f32 %v324, %v2053
      %v2084 = vmul.f32 %v325, %v2053
      %v2085 = vmul.f32 %v326, %v2053
      %v2086 = vadd.f32 %v2020, %v2054
      %v2087 = vadd.f32 %v2021, %v2055
      %v2088 = vadd.f32 %v2022, %v2056
      %v2089 = vadd.f32 %v2023, %v2057
      %v2090 = vadd.f32 %v2024, %v2058
      %v2091 = vadd.f32 %v2025, %v2059
      %v2092 = vadd.f32 %v2026, %v2060
      %v2093 = vadd.f32 %v2027, %v2061
      %v2094 = vadd.f32 %v2028, %v2062
      %v2095 = vadd.f32 %v2029, %v2063
      %v2096 = vadd.f32 %v2030, %v2064
      %v2097 = vadd.f32 %v2031, %v2065
      %v2098 = vadd.f32 %v2032, %v2066
      %v2099 = vadd.f32 %v2033, %v2067
      %v2100 = vadd.f32 %v2034, %v2068
      %v2101 = vadd.f32 %v2035, %v2069
      %v2102 = vadd.f32 %v2036, %v2070
      %v2103 = vadd.f32 %v2037, %v2071
      %v2104 = vadd.f32 %v2038, %v2072
      %v2105 = vadd.f32 %v2039, %v2073
      %v2106 = vadd.f32 %v2040, %v2074
      %v2107 = vadd.f32 %v2041, %v2075
      %v2108 = vadd.f32 %v2042, %v2076
      %v2109 = vadd.f32 %v2043, %v2077
      %v2110 = vadd.f32 %v2044, %v2078
      %v2111 = vadd.f32 %v2045, %v2079
      %v2112 = vadd.f32 %v2046, %v2080
      %v2113 = vadd.f32 %v2047, %v2081
      %v2114 = vadd.f32 %v2048, %v2082
      %v2115 = vadd.f32 %v2049, %v2083
      %v2116 = vadd.f32 %v2050, %v2084
      %v2117 = vadd.f32 %v2051, %v2085
      %v2118 = vrot.slane %v287, 1
      %v2119 = vrot.slane %v289, 1
      %v2120 = vrot.slane %v291, 1
      %v2121 = vrot.slane %v293, 1
      %v2122 = vrot.slane %v295, 1
      %v2123 = vrot.slane %v297, 1
      %v2124 = vrot.slane %v299, 1
      %v2125 = vrot.slane %v301, 1
      %v2126 = vrot.slane %v303, 1
      %v2127 = vrot.slane %v305, 1
      %v2128 = vrot.slane %v307, 1
      %v2129 = vrot.slane %v309, 1
      %v2130 = vrot.slane %v311, 1
      %v2131 = vrot.slane %v313, 1
      %v2132 = vrot.slane %v315, 1
      %v2133 = vrot.slane %v317, 1
      %v2134 = vrot.slane %v319, 1
      %v2135 = vrot.slane %v321, 1
      %v2136 = vrot.slane %v288, 1
      %v2137 = vrot.slane %v290, 1
      %v2138 = vrot.slane %v292, 1
      %v2139 = vrot.slane %v294, 1
      %v2140 = vrot.slane %v296, 1
      %v2141 = vrot.slane %v298, 1
      %v2142 = vrot.slane %v300, 1
      %v2143 = vrot.slane %v302, 1
      %v2144 = vrot.slane %v304, 1
      %v2145 = vrot.slane %v306, 1
      %v2146 = vrot.slane %v308, 1
      %v2147 = vrot.slane %v310, 1
      %v2148 = vrot.slane %v312, 1
      %v2149 = vrot.slane %v314, 1
      %v2150 = vrot.slane %v316, 1
      %v2151 = vrot.slane %v318, 1
      %v2152 = vrot.slane %v320, 1
      %v2153 = vrot.slane %v322, 1
      %vm2154 = vcmp.lt.s32.totalorder %v539, 7
      %v2155 = vsel %vm2154, %v2118, %v2136
      %v2156 = vsel %vm2154, %v2119, %v2137
      %v2157 = vsel %vm2154, %v2120, %v2138
      %v2158 = vsel %vm2154, %v2121, %v2139
      %v2159 = vsel %vm2154, %v2122, %v2140
      %v2160 = vsel %vm2154, %v2123, %v2141
      %v2161 = vsel %vm2154, %v2124, %v2142
      %v2162 = vsel %vm2154, %v2125, %v2143
      %v2163 = vsel %vm2154, %v2126, %v2144
      %v2164 = vsel %vm2154, %v2127, %v2145
      %v2165 = vsel %vm2154, %v2128, %v2146
      %v2166 = vsel %vm2154, %v2129, %v2147
      %v2167 = vsel %vm2154, %v2130, %v2148
      %v2168 = vsel %vm2154, %v2131, %v2149
      %v2169 = vsel %vm2154, %v2132, %v2150
      %v2170 = vsel %vm2154, %v2133, %v2151
      %v2171 = vsel %vm2154, %v2134, %v2152
      %v2172 = vsel %vm2154, %v2135, %v2153
      %v2173 = vsel %vm2154, %v2136, %v2118
      %v2174 = vsel %vm2154, %v2137, %v2119
      %v2175 = vsel %vm2154, %v2138, %v2120
      %v2176 = vsel %vm2154, %v2139, %v2121
      %v2177 = vsel %vm2154, %v2140, %v2122
      %v2178 = vsel %vm2154, %v2141, %v2123
      %v2179 = vsel %vm2154, %v2142, %v2124
      %v2180 = vsel %vm2154, %v2143, %v2125
      %v2181 = vsel %vm2154, %v2144, %v2126
      %v2182 = vsel %vm2154, %v2145, %v2127
      %v2183 = vsel %vm2154, %v2146, %v2128
      %v2184 = vsel %vm2154, %v2147, %v2129
      %v2185 = vsel %vm2154, %v2148, %v2130
      %v2186 = vsel %vm2154, %v2149, %v2131
      %v2187 = vsel %vm2154, %v2150, %v2132
      %v2188 = vsel %vm2154, %v2151, %v2133
      %v2189 = vsel %vm2154, %v2152, %v2134
      %v2190 = vsel %vm2154, %v2153, %v2135
      %v2191 = vadd.s32 %v539, 1
      %v2192 = vadd.s32 %v540, 1
      %vm2193 = vcmp.ge.s32.totalorder %v2191, 0
      %vm2194 = vcmp.ge.s32.totalorder %v2192, 0
      %vm2195 = vcmp.lt.s32.totalorder %v2191, 16
      %vm2196 = vcmp.lt.s32.totalorder %v2192, 16
      %vm2197 = vmand %vm2193, %vm2195
      %vm2198 = vmand %vm2194, %vm2196
      %v2199 = vsel %vm2197, %v2155, 0.0
      %v2200 = vsel %vm2198, %v2173, 0.0
      %v2201 = vsel %vm2197, %v2156, 0.0
      %v2202 = vsel %vm2198, %v2174, 0.0
      %v2203 = vsel %vm2197, %v2157, 0.0
      %v2204 = vsel %vm2198, %v2175, 0.0
      %v2205 = vsel %vm2197, %v2158, 0.0
      %v2206 = vsel %vm2198, %v2176, 0.0
      %v2207 = vsel %vm2197, %v2159, 0.0
      %v2208 = vsel %vm2198, %v2177, 0.0
      %v2209 = vsel %vm2197, %v2160, 0.0
      %v2210 = vsel %vm2198, %v2178, 0.0
      %v2211 = vsel %vm2197, %v2161, 0.0
      %v2212 = vsel %vm2198, %v2179, 0.0
      %v2213 = vsel %vm2197, %v2162, 0.0
      %v2214 = vsel %vm2198, %v2180, 0.0
      %v2215 = vsel %vm2197, %v2163, 0.0
      %v2216 = vsel %vm2198, %v2181, 0.0
      %v2217 = vsel %vm2197, %v2164, 0.0
      %v2218 = vsel %vm2198, %v2182, 0.0
      %v2219 = vsel %vm2197, %v2165, 0.0
      %v2220 = vsel %vm2198, %v2183, 0.0
      %v2221 = vsel %vm2197, %v2166, 0.0
      %v2222 = vsel %vm2198, %v2184, 0.0
      %v2223 = vsel %vm2197, %v2167, 0.0
      %v2224 = vsel %vm2198, %v2185, 0.0
      %v2225 = vsel %vm2197, %v2168, 0.0
      %v2226 = vsel %vm2198, %v2186, 0.0
      %v2227 = vsel %vm2197, %v2169, 0.0
      %v2228 = vsel %vm2198, %v2187, 0.0
      %v2229 = vsel %vm2197, %v2170, 0.0
      %v2230 = vsel %vm2198, %v2188, 0.0
      %v2231 = vsel %vm2197, %v2171, 0.0
      %v2232 = vsel %vm2198, %v2189, 0.0
      %v2233 = vsel %vm2197, %v2172, 0.0
      %v2234 = vsel %vm2198, %v2190, 0.0
      %v2235 = vld [vmem:[%s2 + $0x2] sm:$0x1]
      %v2236 = vperm.slane %v2235, 0
      %v2237 = vmul.f32 %v2199, %v2236
      %v2238 = vmul.f32 %v2200, %v2236
      %v2239 = vmul.f32 %v2201, %v2236
      %v2240 = vmul.f32 %v2202, %v2236
      %v2241 = vmul.f32 %v2203, %v2236
      %v2242 = vmul.f32 %v2204, %v2236
      %v2243 = vmul.f32 %v2205, %v2236
      %v2244 = vmul.f32 %v2206, %v2236
      %v2245 = vmul.f32 %v2207, %v2236
      %v2246 = vmul.f32 %v2208, %v2236
      %v2247 = vmul.f32 %v2209, %v2236
      %v2248 = vmul.f32 %v2210, %v2236
      %v2249 = vmul.f32 %v2211, %v2236
      %v2250 = vmul.f32 %v2212, %v2236
      %v2251 = vmul.f32 %v2213, %v2236
      %v2252 = vmul.f32 %v2214, %v2236
      %v2253 = vmul.f32 %v2215, %v2236
      %v2254 = vmul.f32 %v2216, %v2236
      %v2255 = vmul.f32 %v2217, %v2236
      %v2256 = vmul.f32 %v2218, %v2236
      %v2257 = vmul.f32 %v2219, %v2236
      %v2258 = vmul.f32 %v2220, %v2236
      %v2259 = vmul.f32 %v2221, %v2236
      %v2260 = vmul.f32 %v2222, %v2236
      %v2261 = vmul.f32 %v2223, %v2236
      %v2262 = vmul.f32 %v2224, %v2236
      %v2263 = vmul.f32 %v2225, %v2236
      %v2264 = vmul.f32 %v2226, %v2236
      %v2265 = vmul.f32 %v2227, %v2236
      %v2266 = vmul.f32 %v2228, %v2236
      %v2267 = vmul.f32 %v2229, %v2236
      %v2268 = vmul.f32 %v2230, %v2236
      %v2269 = vadd.f32 %v2086, %v2237
      %v2270 = vadd.f32 %v2087, %v2238
      %v2271 = vadd.f32 %v2088, %v2239
      %v2272 = vadd.f32 %v2089, %v2240
      %v2273 = vadd.f32 %v2090, %v2241
      %v2274 = vadd.f32 %v2091, %v2242
      %v2275 = vadd.f32 %v2092, %v2243
      %v2276 = vadd.f32 %v2093, %v2244
      %v2277 = vadd.f32 %v2094, %v2245
      %v2278 = vadd.f32 %v2095, %v2246
      %v2279 = vadd.f32 %v2096, %v2247
      %v2280 = vadd.f32 %v2097, %v2248
      %v2281 = vadd.f32 %v2098, %v2249
      %v2282 = vadd.f32 %v2099, %v2250
      %v2283 = vadd.f32 %v2100, %v2251
      %v2284 = vadd.f32 %v2101, %v2252
      %v2285 = vadd.f32 %v2102, %v2253
      %v2286 = vadd.f32 %v2103, %v2254
      %v2287 = vadd.f32 %v2104, %v2255
      %v2288 = vadd.f32 %v2105, %v2256
      %v2289 = vadd.f32 %v2106, %v2257
      %v2290 = vadd.f32 %v2107, %v2258
      %v2291 = vadd.f32 %v2108, %v2259
      %v2292 = vadd.f32 %v2109, %v2260
      %v2293 = vadd.f32 %v2110, %v2261
      %v2294 = vadd.f32 %v2111, %v2262
      %v2295 = vadd.f32 %v2112, %v2263
      %v2296 = vadd.f32 %v2113, %v2264
      %v2297 = vadd.f32 %v2114, %v2265
      %v2298 = vadd.f32 %v2115, %v2266
      %v2299 = vadd.f32 %v2116, %v2267
      %v2300 = vadd.f32 %v2117, %v2268
      %v2301 = vld [vmem:[%s2 + $0x5] sm:$0x1]
      %v2302 = vperm.slane %v2301, 0
      %v2303 = vmul.f32 %v2201, %v2302
      %v2304 = vmul.f32 %v2202, %v2302
      %v2305 = vmul.f32 %v2203, %v2302
      %v2306 = vmul.f32 %v2204, %v2302
      %v2307 = vmul.f32 %v2205, %v2302
      %v2308 = vmul.f32 %v2206, %v2302
      %v2309 = vmul.f32 %v2207, %v2302
      %v2310 = vmul.f32 %v2208, %v2302
      %v2311 = vmul.f32 %v2209, %v2302
      %v2312 = vmul.f32 %v2210, %v2302
      %v2313 = vmul.f32 %v2211, %v2302
      %v2314 = vmul.f32 %v2212, %v2302
      %v2315 = vmul.f32 %v2213, %v2302
      %v2316 = vmul.f32 %v2214, %v2302
      %v2317 = vmul.f32 %v2215, %v2302
      %v2318 = vmul.f32 %v2216, %v2302
      %v2319 = vmul.f32 %v2217, %v2302
      %v2320 = vmul.f32 %v2218, %v2302
      %v2321 = vmul.f32 %v2219, %v2302
      %v2322 = vmul.f32 %v2220, %v2302
      %v2323 = vmul.f32 %v2221, %v2302
      %v2324 = vmul.f32 %v2222, %v2302
      %v2325 = vmul.f32 %v2223, %v2302
      %v2326 = vmul.f32 %v2224, %v2302
      %v2327 = vmul.f32 %v2225, %v2302
      %v2328 = vmul.f32 %v2226, %v2302
      %v2329 = vmul.f32 %v2227, %v2302
      %v2330 = vmul.f32 %v2228, %v2302
      %v2331 = vmul.f32 %v2229, %v2302
      %v2332 = vmul.f32 %v2230, %v2302
      %v2333 = vmul.f32 %v2231, %v2302
      %v2334 = vmul.f32 %v2232, %v2302
      %v2335 = vadd.f32 %v2269, %v2303
      %v2336 = vadd.f32 %v2270, %v2304
      %v2337 = vadd.f32 %v2271, %v2305
      %v2338 = vadd.f32 %v2272, %v2306
      %v2339 = vadd.f32 %v2273, %v2307
      %v2340 = vadd.f32 %v2274, %v2308
      %v2341 = vadd.f32 %v2275, %v2309
      %v2342 = vadd.f32 %v2276, %v2310
      %v2343 = vadd.f32 %v2277, %v2311
      %v2344 = vadd.f32 %v2278, %v2312
      %v2345 = vadd.f32 %v2279, %v2313
      %v2346 = vadd.f32 %v2280, %v2314
      %v2347 = vadd.f32 %v2281, %v2315
      %v2348 = vadd.f32 %v2282, %v2316
      %v2349 = vadd.f32 %v2283, %v2317
      %v2350 = vadd.f32 %v2284, %v2318
      %v2351 = vadd.f32 %v2285, %v2319
      %v2352 = vadd.f32 %v2286, %v2320
      %v2353 = vadd.f32 %v2287, %v2321
      %v2354 = vadd.f32 %v2288, %v2322
      %v2355 = vadd.f32 %v2289, %v2323
      %v2356 = vadd.f32 %v2290, %v2324
      %v2357 = vadd.f32 %v2291, %v2325
      %v2358 = vadd.f32 %v2292, %v2326
      %v2359 = vadd.f32 %v2293, %v2327
      %v2360 = vadd.f32 %v2294, %v2328
      %v2361 = vadd.f32 %v2295, %v2329
      %v2362 = vadd.f32 %v2296, %v2330
      %v2363 = vadd.f32 %v2297, %v2331
      %v2364 = vadd.f32 %v2298, %v2332
      %v2365 = vadd.f32 %v2299, %v2333
      %v2366 = vadd.f32 %v2300, %v2334
      %v2367 = vld [vmem:[%s2 + $0x8] sm:$0x1]
      %v2368 = vperm.slane %v2367, 0
      %v2369 = vmul.f32 %v2203, %v2368
      %v2370 = vmul.f32 %v2204, %v2368
      %v2371 = vmul.f32 %v2205, %v2368
      %v2372 = vmul.f32 %v2206, %v2368
      %v2373 = vmul.f32 %v2207, %v2368
      %v2374 = vmul.f32 %v2208, %v2368
      %v2375 = vmul.f32 %v2209, %v2368
      %v2376 = vmul.f32 %v2210, %v2368
      %v2377 = vmul.f32 %v2211, %v2368
      %v2378 = vmul.f32 %v2212, %v2368
      %v2379 = vmul.f32 %v2213, %v2368
      %v2380 = vmul.f32 %v2214, %v2368
      %v2381 = vmul.f32 %v2215, %v2368
      %v2382 = vmul.f32 %v2216, %v2368
      %v2383 = vmul.f32 %v2217, %v2368
      %v2384 = vmul.f32 %v2218, %v2368
      %v2385 = vmul.f32 %v2219, %v2368
      %v2386 = vmul.f32 %v2220, %v2368
      %v2387 = vmul.f32 %v2221, %v2368
      %v2388 = vmul.f32 %v2222, %v2368
      %v2389 = vmul.f32 %v2223, %v2368
      %v2390 = vmul.f32 %v2224, %v2368
      %v2391 = vmul.f32 %v2225, %v2368
      %v2392 = vmul.f32 %v2226, %v2368
      %v2393 = vmul.f32 %v2227, %v2368
      %v2394 = vmul.f32 %v2228, %v2368
      %v2395 = vmul.f32 %v2229, %v2368
      %v2396 = vmul.f32 %v2230, %v2368
      %v2397 = vmul.f32 %v2231, %v2368
      %v2398 = vmul.f32 %v2232, %v2368
      %v2399 = vmul.f32 %v2233, %v2368
      %v2400 = vmul.f32 %v2234, %v2368
      %v2401 = vadd.f32 %v2335, %v2369
      %v2402 = vadd.f32 %v2336, %v2370
      %v2403 = vadd.f32 %v2337, %v2371
      %v2404 = vadd.f32 %v2338, %v2372
      %v2405 = vadd.f32 %v2339, %v2373
      %v2406 = vadd.f32 %v2340, %v2374
      %v2407 = vadd.f32 %v2341, %v2375
      %v2408 = vadd.f32 %v2342, %v2376
      %v2409 = vadd.f32 %v2343, %v2377
      %v2410 = vadd.f32 %v2344, %v2378
      %v2411 = vadd.f32 %v2345, %v2379
      %v2412 = vadd.f32 %v2346, %v2380
      %v2413 = vadd.f32 %v2347, %v2381
      %v2414 = vadd.f32 %v2348, %v2382
      %v2415 = vadd.f32 %v2349, %v2383
      %v2416 = vadd.f32 %v2350, %v2384
      %v2417 = vadd.f32 %v2351, %v2385
      %v2418 = vadd.f32 %v2352, %v2386
      %v2419 = vadd.f32 %v2353, %v2387
      %v2420 = vadd.f32 %v2354, %v2388
      %v2421 = vadd.f32 %v2355, %v2389
      %v2422 = vadd.f32 %v2356, %v2390
      %v2423 = vadd.f32 %v2357, %v2391
      %v2424 = vadd.f32 %v2358, %v2392
      %v2425 = vadd.f32 %v2359, %v2393
      %v2426 = vadd.f32 %v2360, %v2394
      %v2427 = vadd.f32 %v2361, %v2395
      %v2428 = vadd.f32 %v2362, %v2396
      %v2429 = vadd.f32 %v2363, %v2397
      %v2430 = vadd.f32 %v2364, %v2398
      %v2431 = vadd.f32 %v2365, %v2399
      %v2432 = vadd.f32 %v2366, %v2400
      %v2433 = vrot.slane %v285, 2
      %v2434 = vrot.slane %v287, 2
      %v2435 = vrot.slane %v289, 2
      %v2436 = vrot.slane %v291, 2
      %v2437 = vrot.slane %v293, 2
      %v2438 = vrot.slane %v295, 2
      %v2439 = vrot.slane %v297, 2
      %v2440 = vrot.slane %v299, 2
      %v2441 = vrot.slane %v301, 2
      %v2442 = vrot.slane %v303, 2
      %v2443 = vrot.slane %v305, 2
      %v2444 = vrot.slane %v307, 2
      %v2445 = vrot.slane %v309, 2
      %v2446 = vrot.slane %v311, 2
      %v2447 = vrot.slane %v313, 2
      %v2448 = vrot.slane %v315, 2
      %v2449 = vrot.slane %v317, 2
      %v2450 = vrot.slane %v319, 2
      %v2451 = vrot.slane %v321, 2
      %v2452 = vrot.slane %v323, 2
      %v2453 = vrot.slane %v286, 2
      %v2454 = vrot.slane %v288, 2
      %v2455 = vrot.slane %v290, 2
      %v2456 = vrot.slane %v292, 2
      %v2457 = vrot.slane %v294, 2
      %v2458 = vrot.slane %v296, 2
      %v2459 = vrot.slane %v298, 2
      %v2460 = vrot.slane %v300, 2
      %v2461 = vrot.slane %v302, 2
      %v2462 = vrot.slane %v304, 2
      %v2463 = vrot.slane %v306, 2
      %v2464 = vrot.slane %v308, 2
      %v2465 = vrot.slane %v310, 2
      %v2466 = vrot.slane %v312, 2
      %v2467 = vrot.slane %v314, 2
      %v2468 = vrot.slane %v316, 2
      %v2469 = vrot.slane %v318, 2
      %v2470 = vrot.slane %v320, 2
      %v2471 = vrot.slane %v322, 2
      %v2472 = vrot.slane %v324, 2
      %vm2473 = vcmp.lt.s32.totalorder %v539, 6
      %v2474 = vsel %vm2473, %v2433, %v2453
      %v2475 = vsel %vm2473, %v2434, %v2454
      %v2476 = vsel %vm2473, %v2435, %v2455
      %v2477 = vsel %vm2473, %v2436, %v2456
      %v2478 = vsel %vm2473, %v2437, %v2457
      %v2479 = vsel %vm2473, %v2438, %v2458
      %v2480 = vsel %vm2473, %v2439, %v2459
      %v2481 = vsel %vm2473, %v2440, %v2460
      %v2482 = vsel %vm2473, %v2441, %v2461
      %v2483 = vsel %vm2473, %v2442, %v2462
      %v2484 = vsel %vm2473, %v2443, %v2463
      %v2485 = vsel %vm2473, %v2444, %v2464
      %v2486 = vsel %vm2473, %v2445, %v2465
      %v2487 = vsel %vm2473, %v2446, %v2466
      %v2488 = vsel %vm2473, %v2447, %v2467
      %v2489 = vsel %vm2473, %v2448, %v2468
      %v2490 = vsel %vm2473, %v2449, %v2469
      %v2491 = vsel %vm2473, %v2450, %v2470
      %v2492 = vsel %vm2473, %v2451, %v2471
      %v2493 = vsel %vm2473, %v2452, %v2472
      %v2494 = vsel %vm2473, %v2453, %v2433
      %v2495 = vsel %vm2473, %v2454, %v2434
      %v2496 = vsel %vm2473, %v2455, %v2435
      %v2497 = vsel %vm2473, %v2456, %v2436
      %v2498 = vsel %vm2473, %v2457, %v2437
      %v2499 = vsel %vm2473, %v2458, %v2438
      %v2500 = vsel %vm2473, %v2459, %v2439
      %v2501 = vsel %vm2473, %v2460, %v2440
      %v2502 = vsel %vm2473, %v2461, %v2441
      %v2503 = vsel %vm2473, %v2462, %v2442
      %v2504 = vsel %vm2473, %v2463, %v2443
      %v2505 = vsel %vm2473, %v2464, %v2444
      %v2506 = vsel %vm2473, %v2465, %v2445
      %v2507 = vsel %vm2473, %v2466, %v2446
      %v2508 = vsel %vm2473, %v2467, %v2447
      %v2509 = vsel %vm2473, %v2468, %v2448
      %v2510 = vsel %vm2473, %v2469, %v2449
      %v2511 = vsel %vm2473, %v2470, %v2450
      %v2512 = vsel %vm2473, %v2471, %v2451
      %v2513 = vsel %vm2473, %v2472, %v2452
      %v2514 = vadd.s32 %v539, 2
      %v2515 = vadd.s32 %v540, 2
      %vm2516 = vcmp.ge.s32.totalorder %v2514, 0
      %vm2517 = vcmp.ge.s32.totalorder %v2515, 0
      %vm2518 = vcmp.lt.s32.totalorder %v2514, 16
      %vm2519 = vcmp.lt.s32.totalorder %v2515, 16
      %vm2520 = vmand %vm2516, %vm2518
      %vm2521 = vmand %vm2517, %vm2519
      %v2522 = vsel %vm2520, %v2474, 0.0
      %v2523 = vsel %vm2521, %v2494, 0.0
      %v2524 = vsel %vm2520, %v2475, 0.0
      %v2525 = vsel %vm2521, %v2495, 0.0
      %v2526 = vsel %vm2520, %v2476, 0.0
      %v2527 = vsel %vm2521, %v2496, 0.0
      %v2528 = vsel %vm2520, %v2477, 0.0
      %v2529 = vsel %vm2521, %v2497, 0.0
      %v2530 = vsel %vm2520, %v2478, 0.0
      %v2531 = vsel %vm2521, %v2498, 0.0
      %v2532 = vsel %vm2520, %v2479, 0.0
      %v2533 = vsel %vm2521, %v2499, 0.0
      %v2534 = vsel %vm2520, %v2480, 0.0
      %v2535 = vsel %vm2521, %v2500, 0.0
      %v2536 = vsel %vm2520, %v2481, 0.0
      %v2537 = vsel %vm2521, %v2501, 0.0
      %v2538 = vsel %vm2520, %v2482, 0.0
      %v2539 = vsel %vm2521, %v2502, 0.0
      %v2540 = vsel %vm2520, %v2483, 0.0
      %v2541 = vsel %vm2521, %v2503, 0.0
      %v2542 = vsel %vm2520, %v2484, 0.0
      %v2543 = vsel %vm2521, %v2504, 0.0
      %v2544 = vsel %vm2520, %v2485, 0.0
      %v2545 = vsel %vm2521, %v2505, 0.0
      %v2546 = vsel %vm2520, %v2486, 0.0
      %v2547 = vsel %vm2521, %v2506, 0.0
      %v2548 = vsel %vm2520, %v2487, 0.0
      %v2549 = vsel %vm2521, %v2507, 0.0
      %v2550 = vsel %vm2520, %v2488, 0.0
      %v2551 = vsel %vm2521, %v2508, 0.0
      %v2552 = vsel %vm2520, %v2489, 0.0
      %v2553 = vsel %vm2521, %v2509, 0.0
      %v2554 = vsel %vm2520, %v2490, 0.0
      %v2555 = vsel %vm2521, %v2510, 0.0
      %v2556 = vsel %vm2520, %v2491, 0.0
      %v2557 = vsel %vm2521, %v2511, 0.0
      %v2558 = vsel %vm2520, %v2492, 0.0
      %v2559 = vsel %vm2521, %v2512, 0.0
      %v2560 = vsel %vm2520, %v2493, 0.0
      %v2561 = vsel %vm2521, %v2513, 0.0
      %v2562 = vld [vmem:[%s1010 + $0x2] sm:$0x1]
      %v2563 = vperm.slane %v2562, 0
      %v2564 = vmul.f32 %v2522, %v2563
      %v2565 = vmul.f32 %v2523, %v2563
      %v2566 = vmul.f32 %v2524, %v2563
      %v2567 = vmul.f32 %v2525, %v2563
      %v2568 = vmul.f32 %v2526, %v2563
      %v2569 = vmul.f32 %v2527, %v2563
      %v2570 = vmul.f32 %v2528, %v2563
      %v2571 = vmul.f32 %v2529, %v2563
      %v2572 = vmul.f32 %v2530, %v2563
      %v2573 = vmul.f32 %v2531, %v2563
      %v2574 = vmul.f32 %v2532, %v2563
      %v2575 = vmul.f32 %v2533, %v2563
      %v2576 = vmul.f32 %v2534, %v2563
      %v2577 = vmul.f32 %v2535, %v2563
      %v2578 = vmul.f32 %v2536, %v2563
      %v2579 = vmul.f32 %v2537, %v2563
      %v2580 = vmul.f32 %v2538, %v2563
      %v2581 = vmul.f32 %v2539, %v2563
      %v2582 = vmul.f32 %v2540, %v2563
      %v2583 = vmul.f32 %v2541, %v2563
      %v2584 = vmul.f32 %v2542, %v2563
      %v2585 = vmul.f32 %v2543, %v2563
      %v2586 = vmul.f32 %v2544, %v2563
      %v2587 = vmul.f32 %v2545, %v2563
      %v2588 = vmul.f32 %v2546, %v2563
      %v2589 = vmul.f32 %v2547, %v2563
      %v2590 = vmul.f32 %v2548, %v2563
      %v2591 = vmul.f32 %v2549, %v2563
      %v2592 = vmul.f32 %v2550, %v2563
      %v2593 = vmul.f32 %v2551, %v2563
      %v2594 = vmul.f32 %v2552, %v2563
      %v2595 = vmul.f32 %v2553, %v2563
      %v2596 = vadd.f32 %v2401, %v2564
      %v2597 = vadd.f32 %v2402, %v2565
      %v2598 = vadd.f32 %v2403, %v2566
      %v2599 = vadd.f32 %v2404, %v2567
      %v2600 = vadd.f32 %v2405, %v2568
      %v2601 = vadd.f32 %v2406, %v2569
      %v2602 = vadd.f32 %v2407, %v2570
      %v2603 = vadd.f32 %v2408, %v2571
      %v2604 = vadd.f32 %v2409, %v2572
      %v2605 = vadd.f32 %v2410, %v2573
      %v2606 = vadd.f32 %v2411, %v2574
      %v2607 = vadd.f32 %v2412, %v2575
      %v2608 = vadd.f32 %v2413, %v2576
      %v2609 = vadd.f32 %v2414, %v2577
      %v2610 = vadd.f32 %v2415, %v2578
      %v2611 = vadd.f32 %v2416, %v2579
      %v2612 = vadd.f32 %v2417, %v2580
      %v2613 = vadd.f32 %v2418, %v2581
      %v2614 = vadd.f32 %v2419, %v2582
      %v2615 = vadd.f32 %v2420, %v2583
      %v2616 = vadd.f32 %v2421, %v2584
      %v2617 = vadd.f32 %v2422, %v2585
      %v2618 = vadd.f32 %v2423, %v2586
      %v2619 = vadd.f32 %v2424, %v2587
      %v2620 = vadd.f32 %v2425, %v2588
      %v2621 = vadd.f32 %v2426, %v2589
      %v2622 = vadd.f32 %v2427, %v2590
      %v2623 = vadd.f32 %v2428, %v2591
      %v2624 = vadd.f32 %v2429, %v2592
      %v2625 = vadd.f32 %v2430, %v2593
      %v2626 = vadd.f32 %v2431, %v2594
      %v2627 = vadd.f32 %v2432, %v2595
      %v2628 = vld [vmem:[%s1010 + $0x5] sm:$0x1]
      %v2629 = vperm.slane %v2628, 0
      %v2630 = vmul.f32 %v2526, %v2629
      %v2631 = vmul.f32 %v2527, %v2629
      %v2632 = vmul.f32 %v2528, %v2629
      %v2633 = vmul.f32 %v2529, %v2629
      %v2634 = vmul.f32 %v2530, %v2629
      %v2635 = vmul.f32 %v2531, %v2629
      %v2636 = vmul.f32 %v2532, %v2629
      %v2637 = vmul.f32 %v2533, %v2629
      %v2638 = vmul.f32 %v2534, %v2629
      %v2639 = vmul.f32 %v2535, %v2629
      %v2640 = vmul.f32 %v2536, %v2629
      %v2641 = vmul.f32 %v2537, %v2629
      %v2642 = vmul.f32 %v2538, %v2629
      %v2643 = vmul.f32 %v2539, %v2629
      %v2644 = vmul.f32 %v2540, %v2629
      %v2645 = vmul.f32 %v2541, %v2629
      %v2646 = vmul.f32 %v2542, %v2629
      %v2647 = vmul.f32 %v2543, %v2629
      %v2648 = vmul.f32 %v2544, %v2629
      %v2649 = vmul.f32 %v2545, %v2629
      %v2650 = vmul.f32 %v2546, %v2629
      %v2651 = vmul.f32 %v2547, %v2629
      %v2652 = vmul.f32 %v2548, %v2629
      %v2653 = vmul.f32 %v2549, %v2629
      %v2654 = vmul.f32 %v2550, %v2629
      %v2655 = vmul.f32 %v2551, %v2629
      %v2656 = vmul.f32 %v2552, %v2629
      %v2657 = vmul.f32 %v2553, %v2629
      %v2658 = vmul.f32 %v2554, %v2629
      %v2659 = vmul.f32 %v2555, %v2629
      %v2660 = vmul.f32 %v2556, %v2629
      %v2661 = vmul.f32 %v2557, %v2629
      %v2662 = vadd.f32 %v2596, %v2630
      %v2663 = vadd.f32 %v2597, %v2631
      %v2664 = vadd.f32 %v2598, %v2632
      %v2665 = vadd.f32 %v2599, %v2633
      %v2666 = vadd.f32 %v2600, %v2634
      %v2667 = vadd.f32 %v2601, %v2635
      %v2668 = vadd.f32 %v2602, %v2636
      %v2669 = vadd.f32 %v2603, %v2637
      %v2670 = vadd.f32 %v2604, %v2638
      %v2671 = vadd.f32 %v2605, %v2639
      %v2672 = vadd.f32 %v2606, %v2640
      %v2673 = vadd.f32 %v2607, %v2641
      %v2674 = vadd.f32 %v2608, %v2642
      %v2675 = vadd.f32 %v2609, %v2643
      %v2676 = vadd.f32 %v2610, %v2644
      %v2677 = vadd.f32 %v2611, %v2645
      %v2678 = vadd.f32 %v2612, %v2646
      %v2679 = vadd.f32 %v2613, %v2647
      %v2680 = vadd.f32 %v2614, %v2648
      %v2681 = vadd.f32 %v2615, %v2649
      %v2682 = vadd.f32 %v2616, %v2650
      %v2683 = vadd.f32 %v2617, %v2651
      %v2684 = vadd.f32 %v2618, %v2652
      %v2685 = vadd.f32 %v2619, %v2653
      %v2686 = vadd.f32 %v2620, %v2654
      %v2687 = vadd.f32 %v2621, %v2655
      %v2688 = vadd.f32 %v2622, %v2656
      %v2689 = vadd.f32 %v2623, %v2657
      %v2690 = vadd.f32 %v2624, %v2658
      %v2691 = vadd.f32 %v2625, %v2659
      %v2692 = vadd.f32 %v2626, %v2660
      %v2693 = vadd.f32 %v2627, %v2661
      %v2694 = vld [vmem:[%s1010 + $0x8] sm:$0x1]
      %v2695 = vperm.slane %v2694, 0
      %v2696 = vmul.f32 %v2530, %v2695
      %v2697 = vmul.f32 %v2531, %v2695
      %v2698 = vmul.f32 %v2532, %v2695
      %v2699 = vmul.f32 %v2533, %v2695
      %v2700 = vmul.f32 %v2534, %v2695
      %v2701 = vmul.f32 %v2535, %v2695
      %v2702 = vmul.f32 %v2536, %v2695
      %v2703 = vmul.f32 %v2537, %v2695
      %v2704 = vmul.f32 %v2538, %v2695
      %v2705 = vmul.f32 %v2539, %v2695
      %v2706 = vmul.f32 %v2540, %v2695
      %v2707 = vmul.f32 %v2541, %v2695
      %v2708 = vmul.f32 %v2542, %v2695
      %v2709 = vmul.f32 %v2543, %v2695
      %v2710 = vmul.f32 %v2544, %v2695
      %v2711 = vmul.f32 %v2545, %v2695
      %v2712 = vmul.f32 %v2546, %v2695
      %v2713 = vmul.f32 %v2547, %v2695
      %v2714 = vmul.f32 %v2548, %v2695
      %v2715 = vmul.f32 %v2549, %v2695
      %v2716 = vmul.f32 %v2550, %v2695
      %v2717 = vmul.f32 %v2551, %v2695
      %v2718 = vmul.f32 %v2552, %v2695
      %v2719 = vmul.f32 %v2553, %v2695
      %v2720 = vmul.f32 %v2554, %v2695
      %v2721 = vmul.f32 %v2555, %v2695
      %v2722 = vmul.f32 %v2556, %v2695
      %v2723 = vmul.f32 %v2557, %v2695
      %v2724 = vmul.f32 %v2558, %v2695
      %v2725 = vmul.f32 %v2559, %v2695
      %v2726 = vmul.f32 %v2560, %v2695
      %v2727 = vmul.f32 %v2561, %v2695
      %v2728 = vadd.f32 %v2662, %v2696
      %v2729 = vadd.f32 %v2663, %v2697
      %v2730 = vadd.f32 %v2664, %v2698
      %v2731 = vadd.f32 %v2665, %v2699
      %v2732 = vadd.f32 %v2666, %v2700
      %v2733 = vadd.f32 %v2667, %v2701
      %v2734 = vadd.f32 %v2668, %v2702
      %v2735 = vadd.f32 %v2669, %v2703
      %v2736 = vadd.f32 %v2670, %v2704
      %v2737 = vadd.f32 %v2671, %v2705
      %v2738 = vadd.f32 %v2672, %v2706
      %v2739 = vadd.f32 %v2673, %v2707
      %v2740 = vadd.f32 %v2674, %v2708
      %v2741 = vadd.f32 %v2675, %v2709
      %v2742 = vadd.f32 %v2676, %v2710
      %v2743 = vadd.f32 %v2677, %v2711
      %v2744 = vadd.f32 %v2678, %v2712
      %v2745 = vadd.f32 %v2679, %v2713
      %v2746 = vadd.f32 %v2680, %v2714
      %v2747 = vadd.f32 %v2681, %v2715
      %v2748 = vadd.f32 %v2682, %v2716
      %v2749 = vadd.f32 %v2683, %v2717
      %v2750 = vadd.f32 %v2684, %v2718
      %v2751 = vadd.f32 %v2685, %v2719
      %v2752 = vadd.f32 %v2686, %v2720
      %v2753 = vadd.f32 %v2687, %v2721
      %v2754 = vadd.f32 %v2688, %v2722
      %v2755 = vadd.f32 %v2689, %v2723
      %v2756 = vadd.f32 %v2690, %v2724
      %v2757 = vadd.f32 %v2691, %v2725
      %v2758 = vadd.f32 %v2692, %v2726
      %v2759 = vadd.f32 %v2693, %v2727
      %v2760 = vrot.slane %v283, 3
      %v2761 = vrot.slane %v285, 3
      %v2762 = vrot.slane %v287, 3
      %v2763 = vrot.slane %v289, 3
      %v2764 = vrot.slane %v291, 3
      %v2765 = vrot.slane %v293, 3
      %v2766 = vrot.slane %v295, 3
      %v2767 = vrot.slane %v297, 3
      %v2768 = vrot.slane %v299, 3
      %v2769 = vrot.slane %v301, 3
      %v2770 = vrot.slane %v303, 3
      %v2771 = vrot.slane %v305, 3
      %v2772 = vrot.slane %v307, 3
      %v2773 = vrot.slane %v309, 3
      %v2774 = vrot.slane %v311, 3
      %v2775 = vrot.slane %v313, 3
      %v2776 = vrot.slane %v315, 3
      %v2777 = vrot.slane %v317, 3
      %v2778 = vrot.slane %v319, 3
      %v2779 = vrot.slane %v321, 3
      %v2780 = vrot.slane %v323, 3
      %v2781 = vrot.slane %v325, 3
      %v2782 = vrot.slane %v284, 3
      %v2783 = vrot.slane %v286, 3
      %v2784 = vrot.slane %v288, 3
      %v2785 = vrot.slane %v290, 3
      %v2786 = vrot.slane %v292, 3
      %v2787 = vrot.slane %v294, 3
      %v2788 = vrot.slane %v296, 3
      %v2789 = vrot.slane %v298, 3
      %v2790 = vrot.slane %v300, 3
      %v2791 = vrot.slane %v302, 3
      %v2792 = vrot.slane %v304, 3
      %v2793 = vrot.slane %v306, 3
      %v2794 = vrot.slane %v308, 3
      %v2795 = vrot.slane %v310, 3
      %v2796 = vrot.slane %v312, 3
      %v2797 = vrot.slane %v314, 3
      %v2798 = vrot.slane %v316, 3
      %v2799 = vrot.slane %v318, 3
      %v2800 = vrot.slane %v320, 3
      %v2801 = vrot.slane %v322, 3
      %v2802 = vrot.slane %v324, 3
      %v2803 = vrot.slane %v326, 3
      %vm2804 = vcmp.lt.s32.totalorder %v539, 5
      %v2805 = vsel %vm2804, %v2760, %v2782
      %v2806 = vsel %vm2804, %v2761, %v2783
      %v2807 = vsel %vm2804, %v2762, %v2784
      %v2808 = vsel %vm2804, %v2763, %v2785
      %v2809 = vsel %vm2804, %v2764, %v2786
      %v2810 = vsel %vm2804, %v2765, %v2787
      %v2811 = vsel %vm2804, %v2766, %v2788
      %v2812 = vsel %vm2804, %v2767, %v2789
      %v2813 = vsel %vm2804, %v2768, %v2790
      %v2814 = vsel %vm2804, %v2769, %v2791
      %v2815 = vsel %vm2804, %v2770, %v2792
      %v2816 = vsel %vm2804, %v2771, %v2793
      %v2817 = vsel %vm2804, %v2772, %v2794
      %v2818 = vsel %vm2804, %v2773, %v2795
      %v2819 = vsel %vm2804, %v2774, %v2796
      %v2820 = vsel %vm2804, %v2775, %v2797
      %v2821 = vsel %vm2804, %v2776, %v2798
      %v2822 = vsel %vm2804, %v2777, %v2799
      %v2823 = vsel %vm2804, %v2778, %v2800
      %v2824 = vsel %vm2804, %v2779, %v2801
      %v2825 = vsel %vm2804, %v2780, %v2802
      %v2826 = vsel %vm2804, %v2781, %v2803
      %v2827 = vsel %vm2804, %v2782, %v2760
      %v2828 = vsel %vm2804, %v2783, %v2761
      %v2829 = vsel %vm2804, %v2784, %v2762
      %v2830 = vsel %vm2804, %v2785, %v2763
      %v2831 = vsel %vm2804, %v2786, %v2764
      %v2832 = vsel %vm2804, %v2787, %v2765
      %v2833 = vsel %vm2804, %v2788, %v2766
      %v2834 = vsel %vm2804, %v2789, %v2767
      %v2835 = vsel %vm2804, %v2790, %v2768
      %v2836 = vsel %vm2804, %v2791, %v2769
      %v2837 = vsel %vm2804, %v2792, %v2770
      %v2838 = vsel %vm2804, %v2793, %v2771
      %v2839 = vsel %vm2804, %v2794, %v2772
      %v2840 = vsel %vm2804, %v2795, %v2773
      %v2841 = vsel %vm2804, %v2796, %v2774
      %v2842 = vsel %vm2804, %v2797, %v2775
      %v2843 = vsel %vm2804, %v2798, %v2776
      %v2844 = vsel %vm2804, %v2799, %v2777
      %v2845 = vsel %vm2804, %v2800, %v2778
      %v2846 = vsel %vm2804, %v2801, %v2779
      %v2847 = vsel %vm2804, %v2802, %v2780
      %v2848 = vsel %vm2804, %v2803, %v2781
      %v2849 = vadd.s32 %v539, 3
      %v2850 = vadd.s32 %v540, 3
      %vm2851 = vcmp.ge.s32.totalorder %v2849, 0
      %vm2852 = vcmp.ge.s32.totalorder %v2850, 0
      %vm2853 = vcmp.lt.s32.totalorder %v2849, 16
      %vm2854 = vcmp.lt.s32.totalorder %v2850, 16
      %vm2855 = vmand %vm2851, %vm2853
      %vm2856 = vmand %vm2852, %vm2854
      %v2857 = vsel %vm2855, %v2805, 0.0
      %v2858 = vsel %vm2856, %v2827, 0.0
      %v2859 = vsel %vm2855, %v2806, 0.0
      %v2860 = vsel %vm2856, %v2828, 0.0
      %v2861 = vsel %vm2855, %v2807, 0.0
      %v2862 = vsel %vm2856, %v2829, 0.0
      %v2863 = vsel %vm2855, %v2808, 0.0
      %v2864 = vsel %vm2856, %v2830, 0.0
      %v2865 = vsel %vm2855, %v2809, 0.0
      %v2866 = vsel %vm2856, %v2831, 0.0
      %v2867 = vsel %vm2855, %v2810, 0.0
      %v2868 = vsel %vm2856, %v2832, 0.0
      %v2869 = vsel %vm2855, %v2811, 0.0
      %v2870 = vsel %vm2856, %v2833, 0.0
      %v2871 = vsel %vm2855, %v2812, 0.0
      %v2872 = vsel %vm2856, %v2834, 0.0
      %v2873 = vsel %vm2855, %v2813, 0.0
      %v2874 = vsel %vm2856, %v2835, 0.0
      %v2875 = vsel %vm2855, %v2814, 0.0
      %v2876 = vsel %vm2856, %v2836, 0.0
      %v2877 = vsel %vm2855, %v2815, 0.0
      %v2878 = vsel %vm2856, %v2837, 0.0
      %v2879 = vsel %vm2855, %v2816, 0.0
      %v2880 = vsel %vm2856, %v2838, 0.0
      %v2881 = vsel %vm2855, %v2817, 0.0
      %v2882 = vsel %vm2856, %v2839, 0.0
      %v2883 = vsel %vm2855, %v2818, 0.0
      %v2884 = vsel %vm2856, %v2840, 0.0
      %v2885 = vsel %vm2855, %v2819, 0.0
      %v2886 = vsel %vm2856, %v2841, 0.0
      %v2887 = vsel %vm2855, %v2820, 0.0
      %v2888 = vsel %vm2856, %v2842, 0.0
      %v2889 = vsel %vm2855, %v2821, 0.0
      %v2890 = vsel %vm2856, %v2843, 0.0
      %v2891 = vsel %vm2855, %v2822, 0.0
      %v2892 = vsel %vm2856, %v2844, 0.0
      %v2893 = vsel %vm2855, %v2823, 0.0
      %v2894 = vsel %vm2856, %v2845, 0.0
      %v2895 = vsel %vm2855, %v2824, 0.0
      %v2896 = vsel %vm2856, %v2846, 0.0
      %v2897 = vsel %vm2855, %v2825, 0.0
      %v2898 = vsel %vm2856, %v2847, 0.0
      %v2899 = vsel %vm2855, %v2826, 0.0
      %v2900 = vsel %vm2856, %v2848, 0.0
      %v2901 = vld [vmem:[%s682 + $0x2] sm:$0x1]
      %v2902 = vperm.slane %v2901, 0
      %v2903 = vmul.f32 %v2857, %v2902
      %v2904 = vmul.f32 %v2858, %v2902
      %v2905 = vmul.f32 %v2859, %v2902
      %v2906 = vmul.f32 %v2860, %v2902
      %v2907 = vmul.f32 %v2861, %v2902
      %v2908 = vmul.f32 %v2862, %v2902
      %v2909 = vmul.f32 %v2863, %v2902
      %v2910 = vmul.f32 %v2864, %v2902
      %v2911 = vmul.f32 %v2865, %v2902
      %v2912 = vmul.f32 %v2866, %v2902
      %v2913 = vmul.f32 %v2867, %v2902
      %v2914 = vmul.f32 %v2868, %v2902
      %v2915 = vmul.f32 %v2869, %v2902
      %v2916 = vmul.f32 %v2870, %v2902
      %v2917 = vmul.f32 %v2871, %v2902
      %v2918 = vmul.f32 %v2872, %v2902
      %v2919 = vmul.f32 %v2873, %v2902
      %v2920 = vmul.f32 %v2874, %v2902
      %v2921 = vmul.f32 %v2875, %v2902
      %v2922 = vmul.f32 %v2876, %v2902
      %v2923 = vmul.f32 %v2877, %v2902
      %v2924 = vmul.f32 %v2878, %v2902
      %v2925 = vmul.f32 %v2879, %v2902
      %v2926 = vmul.f32 %v2880, %v2902
      %v2927 = vmul.f32 %v2881, %v2902
      %v2928 = vmul.f32 %v2882, %v2902
      %v2929 = vmul.f32 %v2883, %v2902
      %v2930 = vmul.f32 %v2884, %v2902
      %v2931 = vmul.f32 %v2885, %v2902
      %v2932 = vmul.f32 %v2886, %v2902
      %v2933 = vmul.f32 %v2887, %v2902
      %v2934 = vmul.f32 %v2888, %v2902
      %v2935 = vadd.f32 %v2728, %v2903
      %v2936 = vadd.f32 %v2729, %v2904
      %v2937 = vadd.f32 %v2730, %v2905
      %v2938 = vadd.f32 %v2731, %v2906
      %v2939 = vadd.f32 %v2732, %v2907
      %v2940 = vadd.f32 %v2733, %v2908
      %v2941 = vadd.f32 %v2734, %v2909
      %v2942 = vadd.f32 %v2735, %v2910
      %v2943 = vadd.f32 %v2736, %v2911
      %v2944 = vadd.f32 %v2737, %v2912
      %v2945 = vadd.f32 %v2738, %v2913
      %v2946 = vadd.f32 %v2739, %v2914
      %v2947 = vadd.f32 %v2740, %v2915
      %v2948 = vadd.f32 %v2741, %v2916
      %v2949 = vadd.f32 %v2742, %v2917
      %v2950 = vadd.f32 %v2743, %v2918
      %v2951 = vadd.f32 %v2744, %v2919
      %v2952 = vadd.f32 %v2745, %v2920
      %v2953 = vadd.f32 %v2746, %v2921
      %v2954 = vadd.f32 %v2747, %v2922
      %v2955 = vadd.f32 %v2748, %v2923
      %v2956 = vadd.f32 %v2749, %v2924
      %v2957 = vadd.f32 %v2750, %v2925
      %v2958 = vadd.f32 %v2751, %v2926
      %v2959 = vadd.f32 %v2752, %v2927
      %v2960 = vadd.f32 %v2753, %v2928
      %v2961 = vadd.f32 %v2754, %v2929
      %v2962 = vadd.f32 %v2755, %v2930
      %v2963 = vadd.f32 %v2756, %v2931
      %v2964 = vadd.f32 %v2757, %v2932
      %v2965 = vadd.f32 %v2758, %v2933
      %v2966 = vadd.f32 %v2759, %v2934
      %v2967 = vld [vmem:[%s682 + $0x5] sm:$0x1]
      %v2968 = vperm.slane %v2967, 0
      %v2969 = vmul.f32 %v2863, %v2968
      %v2970 = vmul.f32 %v2864, %v2968
      %v2971 = vmul.f32 %v2865, %v2968
      %v2972 = vmul.f32 %v2866, %v2968
      %v2973 = vmul.f32 %v2867, %v2968
      %v2974 = vmul.f32 %v2868, %v2968
      %v2975 = vmul.f32 %v2869, %v2968
      %v2976 = vmul.f32 %v2870, %v2968
      %v2977 = vmul.f32 %v2871, %v2968
      %v2978 = vmul.f32 %v2872, %v2968
      %v2979 = vmul.f32 %v2873, %v2968
      %v2980 = vmul.f32 %v2874, %v2968
      %v2981 = vmul.f32 %v2875, %v2968
      %v2982 = vmul.f32 %v2876, %v2968
      %v2983 = vmul.f32 %v2877, %v2968
      %v2984 = vmul.f32 %v2878, %v2968
      %v2985 = vmul.f32 %v2879, %v2968
      %v2986 = vmul.f32 %v2880, %v2968
      %v2987 = vmul.f32 %v2881, %v2968
      %v2988 = vmul.f32 %v2882, %v2968
      %v2989 = vmul.f32 %v2883, %v2968
      %v2990 = vmul.f32 %v2884, %v2968
      %v2991 = vmul.f32 %v2885, %v2968
      %v2992 = vmul.f32 %v2886, %v2968
      %v2993 = vmul.f32 %v2887, %v2968
      %v2994 = vmul.f32 %v2888, %v2968
      %v2995 = vmul.f32 %v2889, %v2968
      %v2996 = vmul.f32 %v2890, %v2968
      %v2997 = vmul.f32 %v2891, %v2968
      %v2998 = vmul.f32 %v2892, %v2968
      %v2999 = vmul.f32 %v2893, %v2968
      %v3000 = vmul.f32 %v2894, %v2968
      %v3001 = vadd.f32 %v2935, %v2969
      %v3002 = vadd.f32 %v2936, %v2970
      %v3003 = vadd.f32 %v2937, %v2971
      %v3004 = vadd.f32 %v2938, %v2972
      %v3005 = vadd.f32 %v2939, %v2973
      %v3006 = vadd.f32 %v2940, %v2974
      %v3007 = vadd.f32 %v2941, %v2975
      %v3008 = vadd.f32 %v2942, %v2976
      %v3009 = vadd.f32 %v2943, %v2977
      %v3010 = vadd.f32 %v2944, %v2978
      %v3011 = vadd.f32 %v2945, %v2979
      %v3012 = vadd.f32 %v2946, %v2980
      %v3013 = vadd.f32 %v2947, %v2981
      %v3014 = vadd.f32 %v2948, %v2982
      %v3015 = vadd.f32 %v2949, %v2983
      %v3016 = vadd.f32 %v2950, %v2984
      %v3017 = vadd.f32 %v2951, %v2985
      %v3018 = vadd.f32 %v2952, %v2986
      %v3019 = vadd.f32 %v2953, %v2987
      %v3020 = vadd.f32 %v2954, %v2988
      %v3021 = vadd.f32 %v2955, %v2989
      %v3022 = vadd.f32 %v2956, %v2990
      %v3023 = vadd.f32 %v2957, %v2991
      %v3024 = vadd.f32 %v2958, %v2992
      %v3025 = vadd.f32 %v2959, %v2993
      %v3026 = vadd.f32 %v2960, %v2994
      %v3027 = vadd.f32 %v2961, %v2995
      %v3028 = vadd.f32 %v2962, %v2996
      %v3029 = vadd.f32 %v2963, %v2997
      %v3030 = vadd.f32 %v2964, %v2998
      %v3031 = vadd.f32 %v2965, %v2999
      %v3032 = vadd.f32 %v2966, %v3000
      %v3033 = vld [vmem:[%s682 + $0x8] sm:$0x1]
      %v3034 = vperm.slane %v3033, 0
      %v3035 = vmul.f32 %v2869, %v3034
      %v3036 = vmul.f32 %v2870, %v3034
      %v3037 = vmul.f32 %v2871, %v3034
      %v3038 = vmul.f32 %v2872, %v3034
      %v3039 = vmul.f32 %v2873, %v3034
      %v3040 = vmul.f32 %v2874, %v3034
      %v3041 = vmul.f32 %v2875, %v3034
      %v3042 = vmul.f32 %v2876, %v3034
      %v3043 = vmul.f32 %v2877, %v3034
      %v3044 = vmul.f32 %v2878, %v3034
      %v3045 = vmul.f32 %v2879, %v3034
      %v3046 = vmul.f32 %v2880, %v3034
      %v3047 = vmul.f32 %v2881, %v3034
      %v3048 = vmul.f32 %v2882, %v3034
      %v3049 = vmul.f32 %v2883, %v3034
      %v3050 = vmul.f32 %v2884, %v3034
      %v3051 = vmul.f32 %v2885, %v3034
      %v3052 = vmul.f32 %v2886, %v3034
      %v3053 = vmul.f32 %v2887, %v3034
      %v3054 = vmul.f32 %v2888, %v3034
      %v3055 = vmul.f32 %v2889, %v3034
      %v3056 = vmul.f32 %v2890, %v3034
      %v3057 = vmul.f32 %v2891, %v3034
      %v3058 = vmul.f32 %v2892, %v3034
      %v3059 = vmul.f32 %v2893, %v3034
      %v3060 = vmul.f32 %v2894, %v3034
      %v3061 = vmul.f32 %v2895, %v3034
      %v3062 = vmul.f32 %v2896, %v3034
      %v3063 = vmul.f32 %v2897, %v3034
      %v3064 = vmul.f32 %v2898, %v3034
      %v3065 = vmul.f32 %v2899, %v3034
      %v3066 = vmul.f32 %v2900, %v3034
      %v3067 = vadd.f32 %v3001, %v3035
      %v3068 = vadd.f32 %v3002, %v3036
      %v3069 = vadd.f32 %v3003, %v3037
      %v3070 = vadd.f32 %v3004, %v3038
      %v3071 = vadd.f32 %v3005, %v3039
      %v3072 = vadd.f32 %v3006, %v3040
      %v3073 = vadd.f32 %v3007, %v3041
      %v3074 = vadd.f32 %v3008, %v3042
      %v3075 = vadd.f32 %v3009, %v3043
      %v3076 = vadd.f32 %v3010, %v3044
      %v3077 = vadd.f32 %v3011, %v3045
      %v3078 = vadd.f32 %v3012, %v3046
      %v3079 = vadd.f32 %v3013, %v3047
      %v3080 = vadd.f32 %v3014, %v3048
      %v3081 = vadd.f32 %v3015, %v3049
      %v3082 = vadd.f32 %v3016, %v3050
      %v3083 = vadd.f32 %v3017, %v3051
      %v3084 = vadd.f32 %v3018, %v3052
      %v3085 = vadd.f32 %v3019, %v3053
      %v3086 = vadd.f32 %v3020, %v3054
      %v3087 = vadd.f32 %v3021, %v3055
      %v3088 = vadd.f32 %v3022, %v3056
      %v3089 = vadd.f32 %v3023, %v3057
      %v3090 = vadd.f32 %v3024, %v3058
      %v3091 = vadd.f32 %v3025, %v3059
      %v3092 = vadd.f32 %v3026, %v3060
      %v3093 = vadd.f32 %v3027, %v3061
      %v3094 = vadd.f32 %v3028, %v3062
      %v3095 = vadd.f32 %v3029, %v3063
      %v3096 = vadd.f32 %v3030, %v3064
      %v3097 = vadd.f32 %v3031, %v3065
      %v3098 = vadd.f32 %v3032, %v3066
      %v3099 = vadd.f32 %v443, %v3067
      %v3100 = vadd.f32 %v446, %v3068
      %v3101 = vadd.f32 %v449, %v3069
      %v3102 = vadd.f32 %v452, %v3070
      %v3103 = vadd.f32 %v455, %v3071
      %v3104 = vadd.f32 %v458, %v3072
      %v3105 = vadd.f32 %v461, %v3073
      %v3106 = vadd.f32 %v464, %v3074
      %v3107 = vadd.f32 %v467, %v3075
      %v3108 = vadd.f32 %v470, %v3076
      %v3109 = vadd.f32 %v473, %v3077
      %v3110 = vadd.f32 %v476, %v3078
      %v3111 = vadd.f32 %v479, %v3079
      %v3112 = vadd.f32 %v482, %v3080
      %v3113 = vadd.f32 %v485, %v3081
      %v3114 = vadd.f32 %v488, %v3082
      %v3115 = vadd.f32 %v491, %v3083
      %v3116 = vadd.f32 %v494, %v3084
      %v3117 = vadd.f32 %v497, %v3085
      %v3118 = vadd.f32 %v500, %v3086
      %v3119 = vadd.f32 %v503, %v3087
      %v3120 = vadd.f32 %v506, %v3088
      %v3121 = vadd.f32 %v509, %v3089
      %v3122 = vadd.f32 %v512, %v3090
      %v3123 = vadd.f32 %v515, %v3091
      %v3124 = vadd.f32 %v518, %v3092
      %v3125 = vadd.f32 %v521, %v3093
      %v3126 = vadd.f32 %v524, %v3094
      %v3127 = vadd.f32 %v527, %v3095
      %v3128 = vadd.f32 %v530, %v3096
      %v3129 = vadd.f32 %v533, %v3097
      %v3130 = vadd.f32 %v536, %v3098
      %v3131 = vld [vmem:[%s3] sm:$0x1]
      %v3133 = vperm.slane %v3131, 0
      %v3135 = vadd.f32 %v3099, %v3133
      %v3136 = vadd.f32 %v3100, %v3133
      %v3137 = vadd.f32 %v3101, %v3133
      %v3138 = vadd.f32 %v3102, %v3133
      %v3139 = vadd.f32 %v3103, %v3133
      %v3140 = vadd.f32 %v3104, %v3133
      %v3141 = vadd.f32 %v3105, %v3133
      %v3142 = vadd.f32 %v3106, %v3133
      %v3143 = vadd.f32 %v3107, %v3133
      %v3144 = vadd.f32 %v3108, %v3133
      %v3145 = vadd.f32 %v3109, %v3133
      %v3146 = vadd.f32 %v3110, %v3133
      %v3147 = vadd.f32 %v3111, %v3133
      %v3148 = vadd.f32 %v3112, %v3133
      %v3149 = vadd.f32 %v3113, %v3133
      %v3150 = vadd.f32 %v3114, %v3133
      %v3151 = vadd.f32 %v3115, %v3133
      %v3152 = vadd.f32 %v3116, %v3133
      %v3153 = vadd.f32 %v3117, %v3133
      %v3154 = vadd.f32 %v3118, %v3133
      %v3155 = vadd.f32 %v3119, %v3133
      %v3156 = vadd.f32 %v3120, %v3133
      %v3157 = vadd.f32 %v3121, %v3133
      %v3158 = vadd.f32 %v3122, %v3133
      %v3159 = vadd.f32 %v3123, %v3133
      %v3160 = vadd.f32 %v3124, %v3133
      %v3161 = vadd.f32 %v3125, %v3133
      %v3162 = vadd.f32 %v3126, %v3133
      %v3163 = vadd.f32 %v3127, %v3133
      %v3164 = vadd.f32 %v3128, %v3133
      %v3165 = vadd.f32 %v3129, %v3133
      %v3166 = vadd.f32 %v3130, %v3133
      %3167 = vst.msk [vmem:[%s274] sm:$0xff] %vm328, %v3135
      %3168 = vst.msk [vmem:[%s274 + $0x8] sm:$0xff] %vm328, %v3136
      %3169 = vst.msk [vmem:[%s274 + $0x10] sm:$0xff] %vm328, %v3137
      %3170 = vst.msk [vmem:[%s274 + $0x18] sm:$0xff] %vm328, %v3138
      %3171 = vst.msk [vmem:[%s274 + $0x20] sm:$0xff] %vm328, %v3139
      %3172 = vst.msk [vmem:[%s274 + $0x28] sm:$0xff] %vm328, %v3140
      %3173 = vst.msk [vmem:[%s274 + $0x30] sm:$0xff] %vm328, %v3141
      %3174 = vst.msk [vmem:[%s274 + $0x38] sm:$0xff] %vm328, %v3142
      %3175 = vst.msk [vmem:[%s274 + $0x40] sm:$0xff] %vm328, %v3143
      %3176 = vst.msk [vmem:[%s274 + $0x48] sm:$0xff] %vm328, %v3144
      %3177 = vst.msk [vmem:[%s274 + $0x50] sm:$0xff] %vm328, %v3145
      %3178 = vst.msk [vmem:[%s274 + $0x58] sm:$0xff] %vm328, %v3146
      %3179 = vst.msk [vmem:[%s274 + $0x60] sm:$0xff] %vm328, %v3147
      %3180 = vst.msk [vmem:[%s274 + $0x68] sm:$0xff] %vm328, %v3148
      %3181 = vst.msk [vmem:[%s274 + $0x70] sm:$0xff] %vm328, %v3149
      %3182 = vst.msk [vmem:[%s274 + $0x78] sm:$0xff] %vm328, %v3150
      %3183 = vst.msk [vmem:[%s274 + $0x80] sm:$0xff] %vm328, %v3151
      %3184 = vst.msk [vmem:[%s274 + $0x88] sm:$0xff] %vm328, %v3152
      %3185 = vst.msk [vmem:[%s274 + $0x90] sm:$0xff] %vm328, %v3153
      %3186 = vst.msk [vmem:[%s274 + $0x98] sm:$0xff] %vm328, %v3154
      %3187 = vst.msk [vmem:[%s274 + $0xa0] sm:$0xff] %vm328, %v3155
      %3188 = vst.msk [vmem:[%s274 + $0xa8] sm:$0xff] %vm328, %v3156
      %3189 = vst.msk [vmem:[%s274 + $0xb0] sm:$0xff] %vm328, %v3157
      %3190 = vst.msk [vmem:[%s274 + $0xb8] sm:$0xff] %vm328, %v3158
      %3191 = vst.msk [vmem:[%s274 + $0xc0] sm:$0xff] %vm328, %v3159
      %3192 = vst.msk [vmem:[%s274 + $0xc8] sm:$0xff] %vm328, %v3160
      %3193 = vst.msk [vmem:[%s274 + $0xd0] sm:$0xff] %vm328, %v3161
      %3194 = vst.msk [vmem:[%s274 + $0xd8] sm:$0xff] %vm328, %v3162
      %3195 = vst.msk [vmem:[%s274 + $0xe0] sm:$0xff] %vm328, %v3163
      %3196 = vst.msk [vmem:[%s274 + $0xe8] sm:$0xff] %vm328, %v3164
      %3197 = vst.msk [vmem:[%s274 + $0xf0] sm:$0xff] %vm328, %v3165
      %3198 = vst.msk [vmem:[%s274 + $0xf8] sm:$0xff] %vm328, %v3166
      %v3199 = vsel %vm328, %v3135, 0.0
      %v3200 = vsel %vm328, %v3136, 0.0
      %v3201 = vadd.f32 %v3199, %v3200
      %v3202 = vsel %vm328, %v3137, 0.0
      %v3203 = vadd.f32 %v3201, %v3202
      %v3204 = vsel %vm328, %v3138, 0.0
      %v3205 = vadd.f32 %v3203, %v3204
      %v3206 = vsel %vm328, %v3139, 0.0
      %v3207 = vadd.f32 %v3205, %v3206
      %v3208 = vsel %vm328, %v3140, 0.0
      %v3209 = vadd.f32 %v3207, %v3208
      %v3210 = vsel %vm328, %v3141, 0.0
      %v3211 = vadd.f32 %v3209, %v3210
      %v3212 = vsel %vm328, %v3142, 0.0
      %v3213 = vadd.f32 %v3211, %v3212
      %v3214 = vsel %vm328, %v3143, 0.0
      %v3215 = vadd.f32 %v3213, %v3214
      %v3216 = vsel %vm328, %v3144, 0.0
      %v3217 = vadd.f32 %v3215, %v3216
      %v3218 = vsel %vm328, %v3145, 0.0
      %v3219 = vadd.f32 %v3217, %v3218
      %v3220 = vsel %vm328, %v3146, 0.0
      %v3221 = vadd.f32 %v3219, %v3220
      %v3222 = vsel %vm328, %v3147, 0.0
      %v3223 = vadd.f32 %v3221, %v3222
      %v3224 = vsel %vm328, %v3148, 0.0
      %v3225 = vadd.f32 %v3223, %v3224
      %v3226 = vsel %vm328, %v3149, 0.0
      %v3227 = vadd.f32 %v3225, %v3226
      %v3228 = vsel %vm328, %v3150, 0.0
      %v3229 = vadd.f32 %v3227, %v3228
      %v3230 = vsel %vm328, %v3151, 0.0
      %v3231 = vadd.f32 %v3229, %v3230
      %v3232 = vsel %vm328, %v3152, 0.0
      %v3233 = vadd.f32 %v3231, %v3232
      %v3234 = vsel %vm328, %v3153, 0.0
      %v3235 = vadd.f32 %v3233, %v3234
      %v3236 = vsel %vm328, %v3154, 0.0
      %v3237 = vadd.f32 %v3235, %v3236
      %v3238 = vsel %vm328, %v3155, 0.0
      %v3239 = vadd.f32 %v3237, %v3238
      %v3240 = vsel %vm328, %v3156, 0.0
      %v3241 = vadd.f32 %v3239, %v3240
      %v3242 = vsel %vm328, %v3157, 0.0
      %v3243 = vadd.f32 %v3241, %v3242
      %v3244 = vsel %vm328, %v3158, 0.0
      %v3245 = vadd.f32 %v3243, %v3244
      %v3246 = vsel %vm328, %v3159, 0.0
      %v3247 = vadd.f32 %v3245, %v3246
      %v3248 = vsel %vm328, %v3160, 0.0
      %v3249 = vadd.f32 %v3247, %v3248
      %v3250 = vsel %vm328, %v3161, 0.0
      %v3251 = vadd.f32 %v3249, %v3250
      %v3252 = vsel %vm328, %v3162, 0.0
      %v3253 = vadd.f32 %v3251, %v3252
      %v3254 = vsel %vm328, %v3163, 0.0
      %v3255 = vadd.f32 %v3253, %v3254
      %v3256 = vsel %vm328, %v3164, 0.0
      %v3257 = vadd.f32 %v3255, %v3256
      %v3258 = vsel %vm328, %v3165, 0.0
      %v3259 = vadd.f32 %v3257, %v3258
      %v3260 = vsel %vm328, %v3166, 0.0
      %v3261 = vadd.f32 %v3259, %v3260
      %v3262 = vrot.slane %v3261, 4
      %v3263 = vadd.f32 %v3261, %v3262
      %v3264 = vrot.slane %v3263, 2
      %v3265 = vadd.f32 %v3263, %v3264
      %v3266 = vrot.slane %v3265, 1
      %v3267 = vadd.f32 %v3265, %v3266
      %v3268 = vmul.f32 %v3135, %v3135
      %v3269 = vmul.f32 %v3136, %v3136
      %v3270 = vmul.f32 %v3137, %v3137
      %v3271 = vmul.f32 %v3138, %v3138
      %v3272 = vmul.f32 %v3139, %v3139
      %v3273 = vmul.f32 %v3140, %v3140
      %v3274 = vmul.f32 %v3141, %v3141
      %v3275 = vmul.f32 %v3142, %v3142
      %v3276 = vmul.f32 %v3143, %v3143
      %v3277 = vmul.f32 %v3144, %v3144
      %v3278 = vmul.f32 %v3145, %v3145
      %v3279 = vmul.f32 %v3146, %v3146
      %v3280 = vmul.f32 %v3147, %v3147
      %v3281 = vmul.f32 %v3148, %v3148
      %v3282 = vmul.f32 %v3149, %v3149
      %v3283 = vmul.f32 %v3150, %v3150
      %v3284 = vmul.f32 %v3151, %v3151
      %v3285 = vmul.f32 %v3152, %v3152
      %v3286 = vmul.f32 %v3153, %v3153
      %v3287 = vmul.f32 %v3154, %v3154
      %v3288 = vmul.f32 %v3155, %v3155
      %v3289 = vmul.f32 %v3156, %v3156
      %v3290 = vmul.f32 %v3157, %v3157
      %v3291 = vmul.f32 %v3158, %v3158
      %v3292 = vmul.f32 %v3159, %v3159
      %v3293 = vmul.f32 %v3160, %v3160
      %v3294 = vmul.f32 %v3161, %v3161
      %v3295 = vmul.f32 %v3162, %v3162
      %v3296 = vmul.f32 %v3163, %v3163
      %v3297 = vmul.f32 %v3164, %v3164
      %v3298 = vmul.f32 %v3165, %v3165
      %v3299 = vmul.f32 %v3166, %v3166
      %v3300 = vsel %vm328, %v3268, 0.0
      %v3301 = vsel %vm328, %v3269, 0.0
      %v3302 = vadd.f32 %v3300, %v3301
      %v3303 = vsel %vm328, %v3270, 0.0
      %v3304 = vadd.f32 %v3302, %v3303
      %v3305 = vsel %vm328, %v3271, 0.0
      %v3306 = vadd.f32 %v3304, %v3305
      %v3307 = vsel %vm328, %v3272, 0.0
      %v3308 = vadd.f32 %v3306, %v3307
      %v3309 = vsel %vm328, %v3273, 0.0
      %v3310 = vadd.f32 %v3308, %v3309
      %v3311 = vsel %vm328, %v3274, 0.0
      %v3312 = vadd.f32 %v3310, %v3311
      %v3313 = vsel %vm328, %v3275, 0.0
      %v3314 = vadd.f32 %v3312, %v3313
      %v3315 = vsel %vm328, %v3276, 0.0
      %v3316 = vadd.f32 %v3314, %v3315
      %v3317 = vsel %vm328, %v3277, 0.0
      %v3318 = vadd.f32 %v3316, %v3317
      %v3319 = vsel %vm328, %v3278, 0.0
      %v3320 = vadd.f32 %v3318, %v3319
      %v3321 = vsel %vm328, %v3279, 0.0
      %v3322 = vadd.f32 %v3320, %v3321
      %v3323 = vsel %vm328, %v3280, 0.0
      %v3324 = vadd.f32 %v3322, %v3323
      %v3325 = vsel %vm328, %v3281, 0.0
      %v3326 = vadd.f32 %v3324, %v3325
      %v3327 = vsel %vm328, %v3282, 0.0
      %v3328 = vadd.f32 %v3326, %v3327
      %v3329 = vsel %vm328, %v3283, 0.0
      %v3330 = vadd.f32 %v3328, %v3329
      %v3331 = vsel %vm328, %v3284, 0.0
      %v3332 = vadd.f32 %v3330, %v3331
      %v3333 = vsel %vm328, %v3285, 0.0
      %v3334 = vadd.f32 %v3332, %v3333
      %v3335 = vsel %vm328, %v3286, 0.0
      %v3336 = vadd.f32 %v3334, %v3335
      %v3337 = vsel %vm328, %v3287, 0.0
      %v3338 = vadd.f32 %v3336, %v3337
      %v3339 = vsel %vm328, %v3288, 0.0
      %v3340 = vadd.f32 %v3338, %v3339
      %v3341 = vsel %vm328, %v3289, 0.0
      %v3342 = vadd.f32 %v3340, %v3341
      %v3343 = vsel %vm328, %v3290, 0.0
      %v3344 = vadd.f32 %v3342, %v3343
      %v3345 = vsel %vm328, %v3291, 0.0
      %v3346 = vadd.f32 %v3344, %v3345
      %v3347 = vsel %vm328, %v3292, 0.0
      %v3348 = vadd.f32 %v3346, %v3347
      %v3349 = vsel %vm328, %v3293, 0.0
      %v3350 = vadd.f32 %v3348, %v3349
      %v3351 = vsel %vm328, %v3294, 0.0
      %v3352 = vadd.f32 %v3350, %v3351
      %v3353 = vsel %vm328, %v3295, 0.0
      %v3354 = vadd.f32 %v3352, %v3353
      %v3355 = vsel %vm328, %v3296, 0.0
      %v3356 = vadd.f32 %v3354, %v3355
      %v3357 = vsel %vm328, %v3297, 0.0
      %v3358 = vadd.f32 %v3356, %v3357
      %v3359 = vsel %vm328, %v3298, 0.0
      %v3360 = vadd.f32 %v3358, %v3359
      %v3361 = vsel %vm328, %v3299, 0.0
      %v3362 = vadd.f32 %v3360, %v3361
      %v3363 = vrot.slane %v3362, 4
      %v3364 = vadd.f32 %v3362, %v3363
      %v3365 = vrot.slane %v3364, 2
      %v3366 = vadd.f32 %v3364, %v3365
      %v3367 = vrot.slane %v3366, 1
      %v3368 = vadd.f32 %v3366, %v3367
      %vm3369 = vcmask 1040384
      %v3370 = vsel %vm3369, %v3267, %v3368
      %vm3371 = vcmask 58368
      %3372 = vst.msk [vmem:[%s282] sm:$0x3] %vm3371, %v3370
      %s3373 = smul.u32 16, %s22
      %p3374 = scmp.lt.s32.totalorder %s21, 1
      %s3375 = scalar_select %p3374, %s21, 1
      %p3376 = scmp.lt.s32.totalorder %s3373, 15
      %s3377 = scalar_select %p3376, %s3373, 15
      %s3378 = smul.addr %s3377, 2
      %s3379 = smul.addr %s3375, 32
      %s3380 = sadd.s32 %s3378, %s3379
      %s3381 = smul.addr %s3380, 8
      %s3382 = scalar_lea.vmem %s4, %s3381
      %p3383 = scmp.lt.s32.totalorder %s21, 1
      %s3384 = scalar_select %p3383, %s21, 1
      %p3385 = scmp.lt.s32.totalorder %s22, 0
      %s3386 = scalar_select %p3385, %s22, 0
      %s3387 = sadd.s32 %s3386, %s3384
      %s3388 = smul.addr %s3387, 2
      %s3389 = scalar_lea.vmem %s5, %s3388
      // Predicated region
      $region37: #{msconv2d_forward.2} parent=35 // pred_check
        %p3390 = pneg %p140
      $region38: #{msconv2d_forward.2} parent=35 // pred_check_branch
        %3392 = sbr.rel (%p3390) target = $region40
      $region39: #{msconv2d_forward.2} parent=35 // pred_region
        %s3393 = smul.u32 16, %s22
      $region40: #{msconv2d_forward.2} parent=35 // pred_fallthru
        _
      // Predicated region
      $region41: #{msconv2d_forward.2} parent=35 // pred_check
        %p3394 = pneg %p168
      $region42: #{msconv2d_forward.2} parent=35 // pred_check_branch
        %3396 = sbr.rel (%p3394) target = $region44
      $region43: #{msconv2d_forward.2} parent=35 // pred_region
        _
      $region44: #{msconv2d_forward.2} parent=35 // pred_fallthru
        _
    $region36: #{msconv2d_forward.2} parent=5 // pred_fallthru
      _
    %p3397 = scmp.le.s32.totalorder 2, %s12
    // Predicated region
    $region45: #{msconv2d_forward.2} parent=5 // pred_check
      %p3398 = pneg %p3397
    $region46: #{msconv2d_forward.2} parent=5 // pred_check_branch
      %3400 = sbr.rel (%p3398) target = $region48
    $region47: #{msconv2d_forward.2} parent=5 // pred_region
      %s3401 = ssub.s32 %s12, 2
      // Predicated region
      $region49: #{msconv2d_forward.2} parent=47 // pred_check
        %p3402 = pneg %p146
      $region50: #{msconv2d_forward.2} parent=47 // pred_check_branch
        %3404 = sbr.rel (%p3402) target = $region52
      $region51: #{msconv2d_forward.2} parent=47 // pred_region
        %s3405 = smul.u32 16, %s24
        %p3406 = scmp.lt.s32.totalorder %s23, 1
        %s3407 = scalar_select %p3406, %s23, 1
        %p3408 = scmp.lt.s32.totalorder %s3405, 15
        %s3409 = scalar_select %p3408, %s3405, 15
        %s3410 = smul.addr %s3409, 2
        %s3411 = smul.addr %s3407, 32
        %s3412 = sadd.s32 %s3410, %s3411
        %s3413 = smul.addr %s3412, 8
        %s3414 = scalar_lea.vmem %s4, %s3413
      $region52: #{msconv2d_forward.2} parent=47 // pred_fallthru
        _
      // Predicated region
      $region53: #{msconv2d_forward.2} parent=47 // pred_check
        %p3415 = pneg %p174
      $region54: #{msconv2d_forward.2} parent=47 // pred_check_branch
        %3417 = sbr.rel (%p3415) target = $region56
      $region55: #{msconv2d_forward.2} parent=47 // pred_region
        %p3418 = scmp.lt.s32.totalorder %s23, 1
        %s3419 = scalar_select %p3418, %s23, 1
        %p3420 = scmp.lt.s32.totalorder %s24, 0
        %s3421 = scalar_select %p3420, %s24, 0
        %s3422 = sadd.s32 %s3421, %s3419
        %s3423 = smul.addr %s3422, 2
        %s3424 = scalar_lea.vmem %s5, %s3423
      $region56: #{msconv2d_forward.2} parent=47 // pred_fallthru
        _
    $region48: #{msconv2d_forward.2} parent=5 // pred_fallthru
      _
  $region6: #{msconv2d_forward.2} parent=0 // loop_footer
    %s16 = sadd.s32 1, %s12
  $region7: #{msconv2d_forward.2} parent=0 // loop_footer_branch
    %11 = sbr.rel target = $region3
  $region8: #{msconv2d_forward.2} parent=0 // loop_exit
    _

</llo_original>
